<compile_context>
chip_gen: v5e
topology: v5e:2x2
jax: 0.10.0
libtpu: 0.0.40
codegen_flags: <defaults>
</compile_context>

<pallas_src>
import jax
import jax.numpy as jnp
from jax import lax
from jax.experimental import pallas as pl
from jax.experimental.pallas import tpu as pltpu

LANE = 128


def _round_up(n, m):
    return ((n + m - 1) // m) * m


# ---------------------------------------------------------------------------
# Fused Pallas kernel: 3 x LSTM (wavefront) + FC head, all in VMEM
# ---------------------------------------------------------------------------
def _fused_lstm_fc_kernel(
    x_ref,        # (T*Bp, I)   f32
    wih0_ref,     # (I, 4Hp)    f32   (I == 1 -> pure VPU broadcast path)
    whh0_ref,     # (Hp, 4Hp)   bf16
    b0_ref,       # (1, 4Hp)    f32   (b_ih + b_hh)
    wcat1_ref,    # (2Hp, 4Hp)  bf16  [W_ih^T ; W_hh^T]
    b1_ref,       # (1, 4Hp)    f32
    wcat2_ref,    # (2Hp, 4Hp)  bf16
    b2_ref,       # (1, 4Hp)    f32
    fcw_ref,      # (1, Hp)     f32
    fcb_ref,      # (1, 1)      f32   SMEM scalar
    o_ref,        # (Bp, 1)     f32
    g0_sc,        # VMEM (T, Bp, 4Hp) f32 : hoisted x @ W_ih0 + b0
):
    T, Bp, G = g0_sc.shape
    Hp = G // 4

    # ---- layer-0 input->gates, hoisted out of the recurrence ---------------
    x = x_ref[...]                                           # (T*Bp, I)
    if x.shape[1] == 1:                                      # I == 1: VPU only
        xg0 = x * wih0_ref[...] + b0_ref[...]
    else:
        xg0 = jnp.dot(x.astype(jnp.bfloat16),
                      wih0_ref[...].astype(jnp.bfloat16),
                      preferred_element_type=jnp.float32) + b0_ref[...]
    g0_sc[...] = xg0.reshape(T, Bp, G)

    def cell(gates, c):
        """PyTorch gate order i, f, g, o; each gate is one 128-lane block."""
        i_g = jax.nn.sigmoid(gates[:, 0 * Hp:1 * Hp])
        f_g = jax.nn.sigmoid(gates[:, 1 * Hp:2 * Hp])
        g_g = jnp.tanh(gates[:, 2 * Hp:3 * Hp])
        o_g = jax.nn.sigmoid(gates[:, 3 * Hp:4 * Hp])
        c_new = f_g * c + i_g * g_g
        h_new = o_g * jnp.tanh(c_new)
        return h_new, c_new

    zeros = jnp.zeros((Bp, Hp), jnp.float32)
    h0, c0 = zeros, zeros
    h1, c1 = zeros, zeros
    h2, c2 = zeros, zeros
    y0_prev = None            # layer-0 output of the previous wave (t = w-1)
    y1_prev = None            # layer-1 output of the previous wave (t = w-2)

    # ---- (layer, t) wavefront: up to 3 independent cells per wave ----------
    for w in range(T + 2):                      # static unroll, T small & fixed
        new_y0, new_y1 = None, None

        if w < T:                               # layer 0, t = w
            g0 = g0_sc[w] + jnp.dot(h0.astype(jnp.bfloat16), whh0_ref[...],
                                    preferred_element_type=jnp.float32)
            h0, c0 = cell(g0, c0)
            new_y0 = h0

        if 1 <= w <= T:                         # layer 1, t = w - 1
            lhs1 = jnp.concatenate([y0_prev, h1], axis=1).astype(jnp.bfloat16)
            g1 = jnp.dot(lhs1, wcat1_ref[...],
                         preferred_element_type=jnp.float32) + b1_ref[...]
            h1, c1 = cell(g1, c1)
            new_y1 = h1

        if 2 <= w <= T + 1:                     # layer 2, t = w - 2
            lhs2 = jnp.concatenate([y1_prev, h2], axis=1).astype(jnp.bfloat16)
            g2 = jnp.dot(lhs2, wcat2_ref[...],
                         preferred_element_type=jnp.float32) + b2_ref[...]
            h2, c2 = cell(g2, c2)

        y0_prev, y1_prev = new_y0, new_y1

    # TODO(synk): nn.Dropout between layers is identity in eval mode; training
    # mode stochastic dropout is intentionally not applied.

    # ---- FC head: VPU multiply + row reduce (no N=1 MXU dot) ---------------
    o_ref[...] = (jnp.sum(h2 * fcw_ref[...], axis=1, keepdims=True)
                  + fcb_ref[0, 0])


# ---------------------------------------------------------------------------
# Parameter init (PyTorch-style uniform) and lane-aligned packing
# ---------------------------------------------------------------------------
def init_raw_params(key, input_size=1, hidden_size=50):
    H = hidden_size
    k = 1.0 / (H ** 0.5)
    raw = {"lstm": []}
    for layer_in in (input_size, H, H):
        key, k1, k2, k3, k4 = jax.random.split(key, 5)
        raw["lstm"].append({
            "w_ih": jax.random.uniform(k1, (4 * H, layer_in), jnp.float32, -k, k),
            "w_hh": jax.random.uniform(k2, (4 * H, H), jnp.float32, -k, k),
            "b_ih": jax.random.uniform(k3, (4 * H,), jnp.float32, -k, k),
            "b_hh": jax.random.uniform(k4, (4 * H,), jnp.float32, -k, k),
        })
    key, k1, k2 = jax.random.split(key, 3)
    raw["fc_w"] = jax.random.uniform(k1, (1, H), jnp.float32, -k, k)
    raw["fc_b"] = jax.random.uniform(k2, (1,), jnp.float32, -k, k)
    return raw


def pack_params(raw):
    """Pad each gate to a 128-lane block, hidden dim to Hp=128; weights bf16.

    Padded weight rows/cols and bias lanes are zero, so padded lanes of h/c
    stay exactly zero through the recurrence (g-gate = tanh(0) = 0).
    """
    H = raw["fc_w"].shape[1]
    Hp = _round_up(H, LANE)

    def pad_gate_cols(w_t):                       # (in, 4H) -> (in, 4Hp)
        out = jnp.zeros((w_t.shape[0], 4 * Hp), jnp.float32)
        for g in range(4):
            out = out.at[:, g * Hp:g * Hp + H].set(w_t[:, g * H:(g + 1) * H])
        return out

    def pad_rows(w, rows):
        return jnp.pad(w, ((0, rows - w.shape[0]), (0, 0)))

    l0, l1, l2 = raw["lstm"]
    packed = {}
    # layer 0: tiny (I, 4Hp) input weight stays f32 (VPU path); W_hh in bf16
    packed["wih0"] = pad_gate_cols(jnp.transpose(l0["w_ih"]))
    packed["whh0"] = pad_rows(pad_gate_cols(jnp.transpose(l0["w_hh"])), Hp
                              ).astype(jnp.bfloat16)
    packed["b0"] = pad_gate_cols((l0["b_ih"] + l0["b_hh"]).reshape(1, 4 * H))
    # layers 1/2: fused [W_ih^T ; W_hh^T] -> (2Hp, 4Hp) in bf16
    for idx, lp in ((1, l1), (2, l2)):
        wih_t = pad_rows(pad_gate_cols(jnp.transpose(lp["w_ih"])), Hp)
        whh_t = pad_rows(pad_gate_cols(jnp.transpose(lp["w_hh"])), Hp)
        packed[f"wcat{idx}"] = jnp.concatenate([wih_t, whh_t], axis=0
                                               ).astype(jnp.bfloat16)
        packed[f"b{idx}"] = pad_gate_cols((lp["b_ih"] + lp["b_hh"]).reshape(1, 4 * H))
    packed["fc_w"] = jnp.pad(raw["fc_w"], ((0, 0), (0, Hp - H)))   # (1, Hp) f32
    packed["fc_b"] = raw["fc_b"].reshape(1, 1)                     # (1, 1)  f32
    return packed


# ---------------------------------------------------------------------------
# Forward (equivalent to LSTMModel.forward in eval mode)
# ---------------------------------------------------------------------------
def lstm_model_forward(x, packed):
    """x: (B, T, input_size) float32, batch_first like PyTorch. Returns (B, 1)."""
    B, T, I = x.shape
    Hp = packed["fc_w"].shape[1]                    # static (from array shape)
    Bp = _round_up(max(B, 8), 8)                    # pad batch to sublane granule

    x_tm = jnp.transpose(x, (1, 0, 2)).astype(jnp.float32)        # (T, B, I)
    x_tm = jnp.pad(x_tm, ((0, 0), (0, Bp - B), (0, 0)))           # (T, Bp, I)
    x_flat = x_tm.reshape(T * Bp, I)

    # TODO(synk): for large batches add a leading grid axis over batch tiles
    # (dimension_semantics=("parallel",)) to use both v7x TensorCores; at the
    # module's B=2 a single program is latency-optimal.
    out = pl.pallas_call(
        _fused_lstm_fc_kernel,
        out_shape=jax.ShapeDtypeStruct((Bp, 1), jnp.float32),
        in_specs=([pl.BlockSpec(memory_space=pltpu.MemorySpace.VMEM)] * 9
                  + [pl.BlockSpec(memory_space=pltpu.MemorySpace.SMEM)]),
        out_specs=pl.BlockSpec(memory_space=pltpu.MemorySpace.VMEM),
        scratch_shapes=[
            pltpu.VMEM((T, Bp, 4 * Hp), jnp.float32),   # layer-0 precomputed gates
        ],
    )(x_flat,
      packed["wih0"], packed["whh0"], packed["b0"],
      packed["wcat1"], packed["b1"],
      packed["wcat2"], packed["b2"],
      packed["fc_w"], packed["fc_b"])
    return out[:B]


# ---------------------------------------------------------------------------
# Pure-JAX reference (unpadded, f32) for correctness checking
# ---------------------------------------------------------------------------
def _lstm_layer_ref(x_tm, w_ih, w_hh, b_ih, b_hh):
    H = w_hh.shape[1]
    B = x_tm.shape[1]
    w_ih_t, w_hh_t = jnp.transpose(w_ih), jnp.transpose(w_hh)
    b = (b_ih + b_hh)[None, :]

    def step(carry, x_t):
        h, c = carry
        gates = x_t @ w_ih_t + h @ w_hh_t + b
        i = jax.nn.sigmoid(gates[:, 0 * H:1 * H])
        f = jax.nn.sigmoid(gates[:, 1 * H:2 * H])
        g = jnp.tanh(gates[:, 2 * H:3 * H])
        o = jax.nn.sigmoid(gates[:, 3 * H:4 * H])
        c = f * c + i * g
        h = o * jnp.tanh(c)
        return (h, c), h

    init = (jnp.zeros((B, H), jnp.float32), jnp.zeros((B, H), jnp.float32))
    _, ys = lax.scan(step, init, x_tm)
    return ys


def lstm_model_reference(x, raw):
    out = jnp.transpose(x, (1, 0, 2)).astype(jnp.float32)
    for lp in raw["lstm"]:
        out = _lstm_layer_ref(out, lp["w_ih"], lp["w_hh"], lp["b_ih"], lp["b_hh"])
    last = out[-1]
    return last @ jnp.transpose(raw["fc_w"]) + raw["fc_b"][None, :]


# ---------------------------------------------------------------------------
if __name__ == "__main__":
    B, T, INPUT_SIZE, HIDDEN = 2, 8, 1, 50

    key = jax.random.PRNGKey(0)
    key_x, key_p = jax.random.split(key)
    x = jax.random.normal(key_x, (B, T, INPUT_SIZE), dtype=jnp.float32)

    raw = init_raw_params(key_p, input_size=INPUT_SIZE, hidden_size=HIDDEN)
    packed = pack_params(raw)

    y = jax.jit(lstm_model_forward)(x, packed)
    jax.block_until_ready(y)
    assert y.shape == (B, 1), y.shape

    y_ref = lstm_model_reference(x, raw)
    # bf16 MXU operands (weights + h) -> relaxed tolerance vs the pure-f32 ref.
    assert jnp.allclose(y, y_ref, atol=2.5e-2, rtol=2.5e-2), (y, y_ref)
    print("KERNEL_OK")
</pallas_src>

<mosaic_0001>
module attributes {stable_mosaic.version = 11 : i64} {
  func.func @_fused_lstm_fc_kernel(%arg0: memref<64x1xf32, #tpu.memory_space<vmem>>, %arg1: memref<1x512xf32, #tpu.memory_space<vmem>>, %arg2: memref<128x512xbf16, #tpu.memory_space<vmem>>, %arg3: memref<1x512xf32, #tpu.memory_space<vmem>>, %arg4: memref<256x512xbf16, #tpu.memory_space<vmem>>, %arg5: memref<1x512xf32, #tpu.memory_space<vmem>>, %arg6: memref<256x512xbf16, #tpu.memory_space<vmem>>, %arg7: memref<1x512xf32, #tpu.memory_space<vmem>>, %arg8: memref<1x128xf32, #tpu.memory_space<vmem>>, %arg9: memref<1x1xf32, #tpu.memory_space<smem>>, %arg10: memref<8x1xf32, #tpu.memory_space<vmem>>, %arg11: memref<8x8x512xf32, #tpu.memory_space<vmem>>) attributes {dimension_semantics = [], scalar_prefetch = 0 : i64, scratch_operands = 1 : i64, tpu.core_type = #tpu.core_type<tc>} {
    %c0 = arith.constant 0 : index
    %c0_0 = arith.constant 0 : index
    %0 = vector.load %arg0[%c0, %c0_0] : memref<64x1xf32, #tpu.memory_space<vmem>>, vector<64x1xf32>
    %c0_1 = arith.constant 0 : index
    %c0_2 = arith.constant 0 : index
    %1 = vector.load %arg1[%c0_1, %c0_2] : memref<1x512xf32, #tpu.memory_space<vmem>>, vector<1x512xf32>
    %2 = vector.broadcast %0 : vector<64x1xf32> to vector<64x512xf32>
    %3 = vector.broadcast %1 : vector<1x512xf32> to vector<64x512xf32>
    %4 = arith.mulf %2, %3 : vector<64x512xf32>
    %c0_3 = arith.constant 0 : index
    %c0_4 = arith.constant 0 : index
    %5 = vector.load %arg3[%c0_3, %c0_4] : memref<1x512xf32, #tpu.memory_space<vmem>>, vector<1x512xf32>
    %6 = vector.broadcast %5 : vector<1x512xf32> to vector<64x512xf32>
    %7 = arith.addf %4, %6 : vector<64x512xf32>
    %8 = vector.shape_cast %7 : vector<64x512xf32> to vector<8x8x512xf32>
    %c0_5 = arith.constant 0 : index
    %c0_6 = arith.constant 0 : index
    %c0_7 = arith.constant 0 : index
    %9 = vector.load %arg11[%c0_5, %c0_6, %c0_7] : memref<8x8x512xf32, #tpu.memory_space<vmem>>, vector<8x8x512xf32>
    tpu.vector_store %arg11[%c0_5, %c0_6, %c0_7], %8 {strides = array<i32>} : memref<8x8x512xf32, #tpu.memory_space<vmem>>, vector<8x8x512xf32>,
    %cst = arith.constant 0.000000e+00 : f32
    %10 = vector.broadcast %cst : f32 to vector<8x128xf32>
    %c0_8 = arith.constant 0 : index
    %c0_9 = arith.constant 0 : index
    %c0_10 = arith.constant 0 : index
    %11 = vector.load %arg11[%c0_8, %c0_9, %c0_10] : memref<8x8x512xf32, #tpu.memory_space<vmem>>, vector<1x8x512xf32>
    %12 = vector.shape_cast %11 : vector<1x8x512xf32> to vector<8x512xf32>
    %13 = arith.truncf %10 : vector<8x128xf32> to vector<8x128xbf16>
    %c0_11 = arith.constant 0 : index
    %c0_12 = arith.constant 0 : index
    %14 = vector.load %arg2[%c0_11, %c0_12] : memref<128x512xbf16, #tpu.memory_space<vmem>>, vector<128x512xbf16>
    %cst_13 = arith.constant dense<0.000000e+00> : vector<8x512xf32>
    %15 = tpu.matmul %13, %14, %cst_13 {dimension_numbers = #tpu.dot_dimension_numbers<[1], [0], [0], [1], [0, 0, 1, 1], [], []>} : vector<8x128xbf16>, vector<128x512xbf16>, vector<8x512xf32> -> vector<8x512xf32>
    %16 = arith.addf %12, %15 : vector<8x512xf32>
    %17 = vector.extract_strided_slice %16 {offsets = [0, 0], sizes = [8, 128], strides = [1, 1]} : vector<8x512xf32> to vector<8x128xf32>
    %18 = arith.negf %17 : vector<8x128xf32>
    %19 = math.exp %18 : vector<8x128xf32>
    %cst_14 = arith.constant 1.000000e+00 : f32
    %20 = vector.broadcast %cst_14 : f32 to vector<8x128xf32>
    %21 = arith.addf %20, %19 : vector<8x128xf32>
    %22 = arith.divf %20, %21 : vector<8x128xf32>
    %23 = vector.extract_strided_slice %16 {offsets = [0, 128], sizes = [8, 128], strides = [1, 1]} : vector<8x512xf32> to vector<8x128xf32>
    %24 = arith.negf %23 : vector<8x128xf32>
    %25 = math.exp %24 : vector<8x128xf32>
    %cst_15 = arith.constant 1.000000e+00 : f32
    %26 = vector.broadcast %cst_15 : f32 to vector<8x128xf32>
    %27 = arith.addf %26, %25 : vector<8x128xf32>
    %28 = arith.divf %26, %27 : vector<8x128xf32>
    %29 = vector.extract_strided_slice %16 {offsets = [0, 256], sizes = [8, 128], strides = [1, 1]} : vector<8x512xf32> to vector<8x128xf32>
    %30 = math.tanh %29 : vector<8x128xf32>
    %31 = vector.extract_strided_slice %16 {offsets = [0, 384], sizes = [8, 128], strides = [1, 1]} : vector<8x512xf32> to vector<8x128xf32>
    %32 = arith.negf %31 : vector<8x128xf32>
    %33 = math.exp %32 : vector<8x128xf32>
    %cst_16 = arith.constant 1.000000e+00 : f32
    %34 = vector.broadcast %cst_16 : f32 to vector<8x128xf32>
    %35 = arith.addf %34, %33 : vector<8x128xf32>
    %36 = arith.divf %34, %35 : vector<8x128xf32>
    %37 = arith.mulf %28, %10 : vector<8x128xf32>
    %38 = arith.mulf %22, %30 : vector<8x128xf32>
    %39 = arith.addf %37, %38 : vector<8x128xf32>
    %40 = math.tanh %39 : vector<8x128xf32>
    %41 = arith.mulf %36, %40 : vector<8x128xf32>
    %c1 = arith.constant 1 : index
    %c0_17 = arith.constant 0 : index
    %c0_18 = arith.constant 0 : index
    %42 = vector.load %arg11[%c1, %c0_17, %c0_18] : memref<8x8x512xf32, #tpu.memory_space<vmem>>, vector<1x8x512xf32>
    %43 = vector.shape_cast %42 : vector<1x8x512xf32> to vector<8x512xf32>
    %44 = arith.truncf %41 : vector<8x128xf32> to vector<8x128xbf16>
    %c0_19 = arith.constant 0 : index
    %c0_20 = arith.constant 0 : index
    %45 = vector.load %arg2[%c0_19, %c0_20] : memref<128x512xbf16, #tpu.memory_space<vmem>>, vector<128x512xbf16>
    %cst_21 = arith.constant dense<0.000000e+00> : vector<8x512xf32>
    %46 = tpu.matmul %44, %45, %cst_21 {dimension_numbers = #tpu.dot_dimension_numbers<[1], [0], [0], [1], [0, 0, 1, 1], [], []>} : vector<8x128xbf16>, vector<128x512xbf16>, vector<8x512xf32> -> vector<8x512xf32>
    %47 = arith.addf %43, %46 : vector<8x512xf32>
    %48 = vector.extract_strided_slice %47 {offsets = [0, 0], sizes = [8, 128], strides = [1, 1]} : vector<8x512xf32> to vector<8x128xf32>
    %49 = arith.negf %48 : vector<8x128xf32>
    %50 = math.exp %49 : vector<8x128xf32>
    %cst_22 = arith.constant 1.000000e+00 : f32
    %51 = vector.broadcast %cst_22 : f32 to vector<8x128xf32>
    %52 = arith.addf %51, %50 : vector<8x128xf32>
    %53 = arith.divf %51, %52 : vector<8x128xf32>
    %54 = vector.extract_strided_slice %47 {offsets = [0, 128], sizes = [8, 128], strides = [1, 1]} : vector<8x512xf32> to vector<8x128xf32>
    %55 = arith.negf %54 : vector<8x128xf32>
    %56 = math.exp %55 : vector<8x128xf32>
    %cst_23 = arith.constant 1.000000e+00 : f32
    %57 = vector.broadcast %cst_23 : f32 to vector<8x128xf32>
    %58 = arith.addf %57, %56 : vector<8x128xf32>
    %59 = arith.divf %57, %58 : vector<8x128xf32>
    %60 = vector.extract_strided_slice %47 {offsets = [0, 256], sizes = [8, 128], strides = [1, 1]} : vector<8x512xf32> to vector<8x128xf32>
    %61 = math.tanh %60 : vector<8x128xf32>
    %62 = vector.extract_strided_slice %47 {offsets = [0, 384], sizes = [8, 128], strides = [1, 1]} : vector<8x512xf32> to vector<8x128xf32>
    %63 = arith.negf %62 : vector<8x128xf32>
    %64 = math.exp %63 : vector<8x128xf32>
    %cst_24 = arith.constant 1.000000e+00 : f32
    %65 = vector.broadcast %cst_24 : f32 to vector<8x128xf32>
    %66 = arith.addf %65, %64 : vector<8x128xf32>
    %67 = arith.divf %65, %66 : vector<8x128xf32>
    %68 = arith.mulf %59, %39 : vector<8x128xf32>
    %69 = arith.mulf %53, %61 : vector<8x128xf32>
    %70 = arith.addf %68, %69 : vector<8x128xf32>
    %71 = math.tanh %70 : vector<8x128xf32>
    %72 = arith.mulf %67, %71 : vector<8x128xf32>
    %73 = tpu.concatenate %41, %10 in 1 : vector<8x128xf32>, vector<8x128xf32> -> vector<8x256xf32>
    %74 = arith.truncf %73 : vector<8x256xf32> to vector<8x256xbf16>
    %c0_25 = arith.constant 0 : index
    %c0_26 = arith.constant 0 : index
    %75 = vector.load %arg4[%c0_25, %c0_26] : memref<256x512xbf16, #tpu.memory_space<vmem>>, vector<256x512xbf16>
    %cst_27 = arith.constant dense<0.000000e+00> : vector<8x512xf32>
    %76 = tpu.matmul %74, %75, %cst_27 {dimension_numbers = #tpu.dot_dimension_numbers<[1], [0], [0], [1], [0, 0, 1, 1], [], []>} : vector<8x256xbf16>, vector<256x512xbf16>, vector<8x512xf32> -> vector<8x512xf32>
    %c0_28 = arith.constant 0 : index
    %c0_29 = arith.constant 0 : index
    %77 = vector.load %arg5[%c0_28, %c0_29] : memref<1x512xf32, #tpu.memory_space<vmem>>, vector<1x512xf32>
    %78 = vector.broadcast %77 : vector<1x512xf32> to vector<8x512xf32>
    %79 = arith.addf %76, %78 : vector<8x512xf32>
    %80 = vector.extract_strided_slice %79 {offsets = [0, 0], sizes = [8, 128], strides = [1, 1]} : vector<8x512xf32> to vector<8x128xf32>
    %81 = arith.negf %80 : vector<8x128xf32>
    %82 = math.exp %81 : vector<8x128xf32>
    %cst_30 = arith.constant 1.000000e+00 : f32
    %83 = vector.broadcast %cst_30 : f32 to vector<8x128xf32>
    %84 = arith.addf %83, %82 : vector<8x128xf32>
    %85 = arith.divf %83, %84 : vector<8x128xf32>
    %86 = vector.extract_strided_slice %79 {offsets = [0, 128], sizes = [8, 128], strides = [1, 1]} : vector<8x512xf32> to vector<8x128xf32>
    %87 = arith.negf %86 : vector<8x128xf32>
    %88 = math.exp %87 : vector<8x128xf32>
    %cst_31 = arith.constant 1.000000e+00 : f32
    %89 = vector.broadcast %cst_31 : f32 to vector<8x128xf32>
    %90 = arith.addf %89, %88 : vector<8x128xf32>
    %91 = arith.divf %89, %90 : vector<8x128xf32>
    %92 = vector.extract_strided_slice %79 {offsets = [0, 256], sizes = [8, 128], strides = [1, 1]} : vector<8x512xf32> to vector<8x128xf32>
    %93 = math.tanh %92 : vector<8x128xf32>
    %94 = vector.extract_strided_slice %79 {offsets = [0, 384], sizes = [8, 128], strides = [1, 1]} : vector<8x512xf32> to vector<8x128xf32>
    %95 = arith.negf %94 : vector<8x128xf32>
    %96 = math.exp %95 : vector<8x128xf32>
    %cst_32 = arith.constant 1.000000e+00 : f32
    %97 = vector.broadcast %cst_32 : f32 to vector<8x128xf32>
    %98 = arith.addf %97, %96 : vector<8x128xf32>
    %99 = arith.divf %97, %98 : vector<8x128xf32>
    %100 = arith.mulf %91, %10 : vector<8x128xf32>
    %101 = arith.mulf %85, %93 : vector<8x128xf32>
    %102 = arith.addf %100, %101 : vector<8x128xf32>
    %103 = math.tanh %102 : vector<8x128xf32>
    %104 = arith.mulf %99, %103 : vector<8x128xf32>
    %c2 = arith.constant 2 : index
    %c0_33 = arith.constant 0 : index
    %c0_34 = arith.constant 0 : index
    %105 = vector.load %arg11[%c2, %c0_33, %c0_34] : memref<8x8x512xf32, #tpu.memory_space<vmem>>, vector<1x8x512xf32>
    %106 = vector.shape_cast %105 : vector<1x8x512xf32> to vector<8x512xf32>
    %107 = arith.truncf %72 : vector<8x128xf32> to vector<8x128xbf16>
    %c0_35 = arith.constant 0 : index
    %c0_36 = arith.constant 0 : index
    %108 = vector.load %arg2[%c0_35, %c0_36] : memref<128x512xbf16, #tpu.memory_space<vmem>>, vector<128x512xbf16>
    %cst_37 = arith.constant dense<0.000000e+00> : vector<8x512xf32>
    %109 = tpu.matmul %107, %108, %cst_37 {dimension_numbers = #tpu.dot_dimension_numbers<[1], [0], [0], [1], [0, 0, 1, 1], [], []>} : vector<8x128xbf16>, vector<128x512xbf16>, vector<8x512xf32> -> vector<8x512xf32>
    %110 = arith.addf %106, %109 : vector<8x512xf32>
    %111 = vector.extract_strided_slice %110 {offsets = [0, 0], sizes = [8, 128], strides = [1, 1]} : vector<8x512xf32> to vector<8x128xf32>
    %112 = arith.negf %111 : vector<8x128xf32>
    %113 = math.exp %112 : vector<8x128xf32>
    %cst_38 = arith.constant 1.000000e+00 : f32
    %114 = vector.broadcast %cst_38 : f32 to vector<8x128xf32>
    %115 = arith.addf %114, %113 : vector<8x128xf32>
    %116 = arith.divf %114, %115 : vector<8x128xf32>
    %117 = vector.extract_strided_slice %110 {offsets = [0, 128], sizes = [8, 128], strides = [1, 1]} : vector<8x512xf32> to vector<8x128xf32>
    %118 = arith.negf %117 : vector<8x128xf32>
    %119 = math.exp %118 : vector<8x128xf32>
    %cst_39 = arith.constant 1.000000e+00 : f32
    %120 = vector.broadcast %cst_39 : f32 to vector<8x128xf32>
    %121 = arith.addf %120, %119 : vector<8x128xf32>
    %122 = arith.divf %120, %121 : vector<8x128xf32>
    %123 = vector.extract_strided_slice %110 {offsets = [0, 256], sizes = [8, 128], strides = [1, 1]} : vector<8x512xf32> to vector<8x128xf32>
    %124 = math.tanh %123 : vector<8x128xf32>
    %125 = vector.extract_strided_slice %110 {offsets = [0, 384], sizes = [8, 128], strides = [1, 1]} : vector<8x512xf32> to vector<8x128xf32>
    %126 = arith.negf %125 : vector<8x128xf32>
    %127 = math.exp %126 : vector<8x128xf32>
    %cst_40 = arith.constant 1.000000e+00 : f32
    %128 = vector.broadcast %cst_40 : f32 to vector<8x128xf32>
    %129 = arith.addf %128, %127 : vector<8x128xf32>
    %130 = arith.divf %128, %129 : vector<8x128xf32>
    %131 = arith.mulf %122, %70 : vector<8x128xf32>
    %132 = arith.mulf %116, %124 : vector<8x128xf32>
    %133 = arith.addf %131, %132 : vector<8x128xf32>
    %134 = math.tanh %133 : vector<8x128xf32>
    %135 = arith.mulf %130, %134 : vector<8x128xf32>
    %136 = tpu.concatenate %72, %104 in 1 : vector<8x128xf32>, vector<8x128xf32> -> vector<8x256xf32>
    %137 = arith.truncf %136 : vector<8x256xf32> to vector<8x256xbf16>
    %c0_41 = arith.constant 0 : index
    %c0_42 = arith.constant 0 : index
    %138 = vector.load %arg4[%c0_41, %c0_42] : memref<256x512xbf16, #tpu.memory_space<vmem>>, vector<256x512xbf16>
    %cst_43 = arith.constant dense<0.000000e+00> : vector<8x512xf32>
    %139 = tpu.matmul %137, %138, %cst_43 {dimension_numbers = #tpu.dot_dimension_numbers<[1], [0], [0], [1], [0, 0, 1, 1], [], []>} : vector<8x256xbf16>, vector<256x512xbf16>, vector<8x512xf32> -> vector<8x512xf32>
    %c0_44 = arith.constant 0 : index
    %c0_45 = arith.constant 0 : index
    %140 = vector.load %arg5[%c0_44, %c0_45] : memref<1x512xf32, #tpu.memory_space<vmem>>, vector<1x512xf32>
    %141 = vector.broadcast %140 : vector<1x512xf32> to vector<8x512xf32>
    %142 = arith.addf %139, %141 : vector<8x512xf32>
    %143 = vector.extract_strided_slice %142 {offsets = [0, 0], sizes = [8, 128], strides = [1, 1]} : vector<8x512xf32> to vector<8x128xf32>
    %144 = arith.negf %143 : vector<8x128xf32>
    %145 = math.exp %144 : vector<8x128xf32>
    %cst_46 = arith.constant 1.000000e+00 : f32
    %146 = vector.broadcast %cst_46 : f32 to vector<8x128xf32>
    %147 = arith.addf %146, %145 : vector<8x128xf32>
    %148 = arith.divf %146, %147 : vector<8x128xf32>
    %149 = vector.extract_strided_slice %142 {offsets = [0, 128], sizes = [8, 128], strides = [1, 1]} : vector<8x512xf32> to vector<8x128xf32>
    %150 = arith.negf %149 : vector<8x128xf32>
    %151 = math.exp %150 : vector<8x128xf32>
    %cst_47 = arith.constant 1.000000e+00 : f32
    %152 = vector.broadcast %cst_47 : f32 to vector<8x128xf32>
    %153 = arith.addf %152, %151 : vector<8x128xf32>
    %154 = arith.divf %152, %153 : vector<8x128xf32>
    %155 = vector.extract_strided_slice %142 {offsets = [0, 256], sizes = [8, 128], strides = [1, 1]} : vector<8x512xf32> to vector<8x128xf32>
    %156 = math.tanh %155 : vector<8x128xf32>
    %157 = vector.extract_strided_slice %142 {offsets = [0, 384], sizes = [8, 128], strides = [1, 1]} : vector<8x512xf32> to vector<8x128xf32>
    %158 = arith.negf %157 : vector<8x128xf32>
    %159 = math.exp %158 : vector<8x128xf32>
    %cst_48 = arith.constant 1.000000e+00 : f32
    %160 = vector.broadcast %cst_48 : f32 to vector<8x128xf32>
    %161 = arith.addf %160, %159 : vector<8x128xf32>
    %162 = arith.divf %160, %161 : vector<8x128xf32>
    %163 = arith.mulf %154, %102 : vector<8x128xf32>
    %164 = arith.mulf %148, %156 : vector<8x128xf32>
    %165 = arith.addf %163, %164 : vector<8x128xf32>
    %166 = math.tanh %165 : vector<8x128xf32>
    %167 = arith.mulf %162, %166 : vector<8x128xf32>
    %168 = tpu.concatenate %104, %10 in 1 : vector<8x128xf32>, vector<8x128xf32> -> vector<8x256xf32>
    %169 = arith.truncf %168 : vector<8x256xf32> to vector<8x256xbf16>
    %c0_49 = arith.constant 0 : index
    %c0_50 = arith.constant 0 : index
    %170 = vector.load %arg6[%c0_49, %c0_50] : memref<256x512xbf16, #tpu.memory_space<vmem>>, vector<256x512xbf16>
    %cst_51 = arith.constant dense<0.000000e+00> : vector<8x512xf32>
    %171 = tpu.matmul %169, %170, %cst_51 {dimension_numbers = #tpu.dot_dimension_numbers<[1], [0], [0], [1], [0, 0, 1, 1], [], []>} : vector<8x256xbf16>, vector<256x512xbf16>, vector<8x512xf32> -> vector<8x512xf32>
    %c0_52 = arith.constant 0 : index
    %c0_53 = arith.constant 0 : index
    %172 = vector.load %arg7[%c0_52, %c0_53] : memref<1x512xf32, #tpu.memory_space<vmem>>, vector<1x512xf32>
    %173 = vector.broadcast %172 : vector<1x512xf32> to vector<8x512xf32>
    %174 = arith.addf %171, %173 : vector<8x512xf32>
    %175 = vector.extract_strided_slice %174 {offsets = [0, 0], sizes = [8, 128], strides = [1, 1]} : vector<8x512xf32> to vector<8x128xf32>
    %176 = arith.negf %175 : vector<8x128xf32>
    %177 = math.exp %176 : vector<8x128xf32>
    %cst_54 = arith.constant 1.000000e+00 : f32
    %178 = vector.broadcast %cst_54 : f32 to vector<8x128xf32>
    %179 = arith.addf %178, %177 : vector<8x128xf32>
    %180 = arith.divf %178, %179 : vector<8x128xf32>
    %181 = vector.extract_strided_slice %174 {offsets = [0, 128], sizes = [8, 128], strides = [1, 1]} : vector<8x512xf32> to vector<8x128xf32>
    %182 = arith.negf %181 : vector<8x128xf32>
    %183 = math.exp %182 : vector<8x128xf32>
    %cst_55 = arith.constant 1.000000e+00 : f32
    %184 = vector.broadcast %cst_55 : f32 to vector<8x128xf32>
    %185 = arith.addf %184, %183 : vector<8x128xf32>
    %186 = arith.divf %184, %185 : vector<8x128xf32>
    %187 = vector.extract_strided_slice %174 {offsets = [0, 256], sizes = [8, 128], strides = [1, 1]} : vector<8x512xf32> to vector<8x128xf32>
    %188 = math.tanh %187 : vector<8x128xf32>
    %189 = vector.extract_strided_slice %174 {offsets = [0, 384], sizes = [8, 128], strides = [1, 1]} : vector<8x512xf32> to vector<8x128xf32>
    %190 = arith.negf %189 : vector<8x128xf32>
    %191 = math.exp %190 : vector<8x128xf32>
    %cst_56 = arith.constant 1.000000e+00 : f32
    %192 = vector.broadcast %cst_56 : f32 to vector<8x128xf32>
    %193 = arith.addf %192, %191 : vector<8x128xf32>
    %194 = arith.divf %192, %193 : vector<8x128xf32>
    %195 = arith.mulf %186, %10 : vector<8x128xf32>
    %196 = arith.mulf %180, %188 : vector<8x128xf32>
    %197 = arith.addf %195, %196 : vector<8x128xf32>
    %198 = math.tanh %197 : vector<8x128xf32>
    %199 = arith.mulf %194, %198 : vector<8x128xf32>
    %c3 = arith.constant 3 : index
    %c0_57 = arith.constant 0 : index
    %c0_58 = arith.constant 0 : index
    %200 = vector.load %arg11[%c3, %c0_57, %c0_58] : memref<8x8x512xf32, #tpu.memory_space<vmem>>, vector<1x8x512xf32>
    %201 = vector.shape_cast %200 : vector<1x8x512xf32> to vector<8x512xf32>
    %202 = arith.truncf %135 : vector<8x128xf32> to vector<8x128xbf16>
    %c0_59 = arith.constant 0 : index
    %c0_60 = arith.constant 0 : index
    %203 = vector.load %arg2[%c0_59, %c0_60] : memref<128x512xbf16, #tpu.memory_space<vmem>>, vector<128x512xbf16>
    %cst_61 = arith.constant dense<0.000000e+00> : vector<8x512xf32>
    %204 = tpu.matmul %202, %203, %cst_61 {dimension_numbers = #tpu.dot_dimension_numbers<[1], [0], [0], [1], [0, 0, 1, 1], [], []>} : vector<8x128xbf16>, vector<128x512xbf16>, vector<8x512xf32> -> vector<8x512xf32>
    %205 = arith.addf %201, %204 : vector<8x512xf32>
    %206 = vector.extract_strided_slice %205 {offsets = [0, 0], sizes = [8, 128], strides = [1, 1]} : vector<8x512xf32> to vector<8x128xf32>
    %207 = arith.negf %206 : vector<8x128xf32>
    %208 = math.exp %207 : vector<8x128xf32>
    %cst_62 = arith.constant 1.000000e+00 : f32
    %209 = vector.broadcast %cst_62 : f32 to vector<8x128xf32>
    %210 = arith.addf %209, %208 : vector<8x128xf32>
    %211 = arith.divf %209, %210 : vector<8x128xf32>
    %212 = vector.extract_strided_slice %205 {offsets = [0, 128], sizes = [8, 128], strides = [1, 1]} : vector<8x512xf32> to vector<8x128xf32>
    %213 = arith.negf %212 : vector<8x128xf32>
    %214 = math.exp %213 : vector<8x128xf32>
    %cst_63 = arith.constant 1.000000e+00 : f32
    %215 = vector.broadcast %cst_63 : f32 to vector<8x128xf32>
    %216 = arith.addf %215, %214 : vector<8x128xf32>
    %217 = arith.divf %215, %216 : vector<8x128xf32>
    %218 = vector.extract_strided_slice %205 {offsets = [0, 256], sizes = [8, 128], strides = [1, 1]} : vector<8x512xf32> to vector<8x128xf32>
    %219 = math.tanh %218 : vector<8x128xf32>
    %220 = vector.extract_strided_slice %205 {offsets = [0, 384], sizes = [8, 128], strides = [1, 1]} : vector<8x512xf32> to vector<8x128xf32>
    %221 = arith.negf %220 : vector<8x128xf32>
    %222 = math.exp %221 : vector<8x128xf32>
    %cst_64 = arith.constant 1.000000e+00 : f32
    %223 = vector.broadcast %cst_64 : f32 to vector<8x128xf32>
    %224 = arith.addf %223, %222 : vector<8x128xf32>
    %225 = arith.divf %223, %224 : vector<8x128xf32>
    %226 = arith.mulf %217, %133 : vector<8x128xf32>
    %227 = arith.mulf %211, %219 : vector<8x128xf32>
    %228 = arith.addf %226, %227 : vector<8x128xf32>
    %229 = math.tanh %228 : vector<8x128xf32>
    %230 = arith.mulf %225, %229 : vector<8x128xf32>
    %231 = tpu.concatenate %135, %167 in 1 : vector<8x128xf32>, vector<8x128xf32> -> vector<8x256xf32>
    %232 = arith.truncf %231 : vector<8x256xf32> to vector<8x256xbf16>
    %c0_65 = arith.constant 0 : index
    %c0_66 = arith.constant 0 : index
    %233 = vector.load %arg4[%c0_65, %c0_66] : memref<256x512xbf16, #tpu.memory_space<vmem>>, vector<256x512xbf16>
    %cst_67 = arith.constant dense<0.000000e+00> : vector<8x512xf32>
    %234 = tpu.matmul %232, %233, %cst_67 {dimension_numbers = #tpu.dot_dimension_numbers<[1], [0], [0], [1], [0, 0, 1, 1], [], []>} : vector<8x256xbf16>, vector<256x512xbf16>, vector<8x512xf32> -> vector<8x512xf32>
    %c0_68 = arith.constant 0 : index
    %c0_69 = arith.constant 0 : index
    %235 = vector.load %arg5[%c0_68, %c0_69] : memref<1x512xf32, #tpu.memory_space<vmem>>, vector<1x512xf32>
    %236 = vector.broadcast %235 : vector<1x512xf32> to vector<8x512xf32>
    %237 = arith.addf %234, %236 : vector<8x512xf32>
    %238 = vector.extract_strided_slice %237 {offsets = [0, 0], sizes = [8, 128], strides = [1, 1]} : vector<8x512xf32> to vector<8x128xf32>
    %239 = arith.negf %238 : vector<8x128xf32>
    %240 = math.exp %239 : vector<8x128xf32>
    %cst_70 = arith.constant 1.000000e+00 : f32
    %241 = vector.broadcast %cst_70 : f32 to vector<8x128xf32>
    %242 = arith.addf %241, %240 : vector<8x128xf32>
    %243 = arith.divf %241, %242 : vector<8x128xf32>
    %244 = vector.extract_strided_slice %237 {offsets = [0, 128], sizes = [8, 128], strides = [1, 1]} : vector<8x512xf32> to vector<8x128xf32>
    %245 = arith.negf %244 : vector<8x128xf32>
    %246 = math.exp %245 : vector<8x128xf32>
    %cst_71 = arith.constant 1.000000e+00 : f32
    %247 = vector.broadcast %cst_71 : f32 to vector<8x128xf32>
    %248 = arith.addf %247, %246 : vector<8x128xf32>
    %249 = arith.divf %247, %248 : vector<8x128xf32>
    %250 = vector.extract_strided_slice %237 {offsets = [0, 256], sizes = [8, 128], strides = [1, 1]} : vector<8x512xf32> to vector<8x128xf32>
    %251 = math.tanh %250 : vector<8x128xf32>
    %252 = vector.extract_strided_slice %237 {offsets = [0, 384], sizes = [8, 128], strides = [1, 1]} : vector<8x512xf32> to vector<8x128xf32>
    %253 = arith.negf %252 : vector<8x128xf32>
    %254 = math.exp %253 : vector<8x128xf32>
    %cst_72 = arith.constant 1.000000e+00 : f32
    %255 = vector.broadcast %cst_72 : f32 to vector<8x128xf32>
    %256 = arith.addf %255, %254 : vector<8x128xf32>
    %257 = arith.divf %255, %256 : vector<8x128xf32>
    %258 = arith.mulf %249, %165 : vector<8x128xf32>
    %259 = arith.mulf %243, %251 : vector<8x128xf32>
    %260 = arith.addf %258, %259 : vector<8x128xf32>
    %261 = math.tanh %260 : vector<8x128xf32>
    %262 = arith.mulf %257, %261 : vector<8x128xf32>
    %263 = tpu.concatenate %167, %199 in 1 : vector<8x128xf32>, vector<8x128xf32> -> vector<8x256xf32>
    %264 = arith.truncf %263 : vector<8x256xf32> to vector<8x256xbf16>
    %c0_73 = arith.constant 0 : index
    %c0_74 = arith.constant 0 : index
    %265 = vector.load %arg6[%c0_73, %c0_74] : memref<256x512xbf16, #tpu.memory_space<vmem>>, vector<256x512xbf16>
    %cst_75 = arith.constant dense<0.000000e+00> : vector<8x512xf32>
    %266 = tpu.matmul %264, %265, %cst_75 {dimension_numbers = #tpu.dot_dimension_numbers<[1], [0], [0], [1], [0, 0, 1, 1], [], []>} : vector<8x256xbf16>, vector<256x512xbf16>, vector<8x512xf32> -> vector<8x512xf32>
    %c0_76 = arith.constant 0 : index
    %c0_77 = arith.constant 0 : index
    %267 = vector.load %arg7[%c0_76, %c0_77] : memref<1x512xf32, #tpu.memory_space<vmem>>, vector<1x512xf32>
    %268 = vector.broadcast %267 : vector<1x512xf32> to vector<8x512xf32>
    %269 = arith.addf %266, %268 : vector<8x512xf32>
    %270 = vector.extract_strided_slice %269 {offsets = [0, 0], sizes = [8, 128], strides = [1, 1]} : vector<8x512xf32> to vector<8x128xf32>
    %271 = arith.negf %270 : vector<8x128xf32>
    %272 = math.exp %271 : vector<8x128xf32>
    %cst_78 = arith.constant 1.000000e+00 : f32
    %273 = vector.broadcast %cst_78 : f32 to vector<8x128xf32>
    %274 = arith.addf %273, %272 : vector<8x128xf32>
    %275 = arith.divf %273, %274 : vector<8x128xf32>
    %276 = vector.extract_strided_slice %269 {offsets = [0, 128], sizes = [8, 128], strides = [1, 1]} : vector<8x512xf32> to vector<8x128xf32>
    %277 = arith.negf %276 : vector<8x128xf32>
    %278 = math.exp %277 : vector<8x128xf32>
    %cst_79 = arith.constant 1.000000e+00 : f32
    %279 = vector.broadcast %cst_79 : f32 to vector<8x128xf32>
    %280 = arith.addf %279, %278 : vector<8x128xf32>
    %281 = arith.divf %279, %280 : vector<8x128xf32>
    %282 = vector.extract_strided_slice %269 {offsets = [0, 256], sizes = [8, 128], strides = [1, 1]} : vector<8x512xf32> to vector<8x128xf32>
    %283 = math.tanh %282 : vector<8x128xf32>
    %284 = vector.extract_strided_slice %269 {offsets = [0, 384], sizes = [8, 128], strides = [1, 1]} : vector<8x512xf32> to vector<8x128xf32>
    %285 = arith.negf %284 : vector<8x128xf32>
    %286 = math.exp %285 : vector<8x128xf32>
    %cst_80 = arith.constant 1.000000e+00 : f32
    %287 = vector.broadcast %cst_80 : f32 to vector<8x128xf32>
    %288 = arith.addf %287, %286 : vector<8x128xf32>
    %289 = arith.divf %287, %288 : vector<8x128xf32>
    %290 = arith.mulf %281, %197 : vector<8x128xf32>
    %291 = arith.mulf %275, %283 : vector<8x128xf32>
    %292 = arith.addf %290, %291 : vector<8x128xf32>
    %293 = math.tanh %292 : vector<8x128xf32>
    %294 = arith.mulf %289, %293 : vector<8x128xf32>
    %c4 = arith.constant 4 : index
    %c0_81 = arith.constant 0 : index
    %c0_82 = arith.constant 0 : index
    %295 = vector.load %arg11[%c4, %c0_81, %c0_82] : memref<8x8x512xf32, #tpu.memory_space<vmem>>, vector<1x8x512xf32>
    %296 = vector.shape_cast %295 : vector<1x8x512xf32> to vector<8x512xf32>
    %297 = arith.truncf %230 : vector<8x128xf32> to vector<8x128xbf16>
    %c0_83 = arith.constant 0 : index
    %c0_84 = arith.constant 0 : index
    %298 = vector.load %arg2[%c0_83, %c0_84] : memref<128x512xbf16, #tpu.memory_space<vmem>>, vector<128x512xbf16>
    %cst_85 = arith.constant dense<0.000000e+00> : vector<8x512xf32>
    %299 = tpu.matmul %297, %298, %cst_85 {dimension_numbers = #tpu.dot_dimension_numbers<[1], [0], [0], [1], [0, 0, 1, 1], [], []>} : vector<8x128xbf16>, vector<128x512xbf16>, vector<8x512xf32> -> vector<8x512xf32>
    %300 = arith.addf %296, %299 : vector<8x512xf32>
    %301 = vector.extract_strided_slice %300 {offsets = [0, 0], sizes = [8, 128], strides = [1, 1]} : vector<8x512xf32> to vector<8x128xf32>
    %302 = arith.negf %301 : vector<8x128xf32>
    %303 = math.exp %302 : vector<8x128xf32>
    %cst_86 = arith.constant 1.000000e+00 : f32
    %304 = vector.broadcast %cst_86 : f32 to vector<8x128xf32>
    %305 = arith.addf %304, %303 : vector<8x128xf32>
    %306 = arith.divf %304, %305 : vector<8x128xf32>
    %307 = vector.extract_strided_slice %300 {offsets = [0, 128], sizes = [8, 128], strides = [1, 1]} : vector<8x512xf32> to vector<8x128xf32>
    %308 = arith.negf %307 : vector<8x128xf32>
    %309 = math.exp %308 : vector<8x128xf32>
    %cst_87 = arith.constant 1.000000e+00 : f32
    %310 = vector.broadcast %cst_87 : f32 to vector<8x128xf32>
    %311 = arith.addf %310, %309 : vector<8x128xf32>
    %312 = arith.divf %310, %311 : vector<8x128xf32>
    %313 = vector.extract_strided_slice %300 {offsets = [0, 256], sizes = [8, 128], strides = [1, 1]} : vector<8x512xf32> to vector<8x128xf32>
    %314 = math.tanh %313 : vector<8x128xf32>
    %315 = vector.extract_strided_slice %300 {offsets = [0, 384], sizes = [8, 128], strides = [1, 1]} : vector<8x512xf32> to vector<8x128xf32>
    %316 = arith.negf %315 : vector<8x128xf32>
    %317 = math.exp %316 : vector<8x128xf32>
    %cst_88 = arith.constant 1.000000e+00 : f32
    %318 = vector.broadcast %cst_88 : f32 to vector<8x128xf32>
    %319 = arith.addf %318, %317 : vector<8x128xf32>
    %320 = arith.divf %318, %319 : vector<8x128xf32>
    %321 = arith.mulf %312, %228 : vector<8x128xf32>
    %322 = arith.mulf %306, %314 : vector<8x128xf32>
    %323 = arith.addf %321, %322 : vector<8x128xf32>
    %324 = math.tanh %323 : vector<8x128xf32>
    %325 = arith.mulf %320, %324 : vector<8x128xf32>
    %326 = tpu.concatenate %230, %262 in 1 : vector<8x128xf32>, vector<8x128xf32> -> vector<8x256xf32>
    %327 = arith.truncf %326 : vector<8x256xf32> to vector<8x256xbf16>
    %c0_89 = arith.constant 0 : index
    %c0_90 = arith.constant 0 : index
    %328 = vector.load %arg4[%c0_89, %c0_90] : memref<256x512xbf16, #tpu.memory_space<vmem>>, vector<256x512xbf16>
    %cst_91 = arith.constant dense<0.000000e+00> : vector<8x512xf32>
    %329 = tpu.matmul %327, %328, %cst_91 {dimension_numbers = #tpu.dot_dimension_numbers<[1], [0], [0], [1], [0, 0, 1, 1], [], []>} : vector<8x256xbf16>, vector<256x512xbf16>, vector<8x512xf32> -> vector<8x512xf32>
    %c0_92 = arith.constant 0 : index
    %c0_93 = arith.constant 0 : index
    %330 = vector.load %arg5[%c0_92, %c0_93] : memref<1x512xf32, #tpu.memory_space<vmem>>, vector<1x512xf32>
    %331 = vector.broadcast %330 : vector<1x512xf32> to vector<8x512xf32>
    %332 = arith.addf %329, %331 : vector<8x512xf32>
    %333 = vector.extract_strided_slice %332 {offsets = [0, 0], sizes = [8, 128], strides = [1, 1]} : vector<8x512xf32> to vector<8x128xf32>
    %334 = arith.negf %333 : vector<8x128xf32>
    %335 = math.exp %334 : vector<8x128xf32>
    %cst_94 = arith.constant 1.000000e+00 : f32
    %336 = vector.broadcast %cst_94 : f32 to vector<8x128xf32>
    %337 = arith.addf %336, %335 : vector<8x128xf32>
    %338 = arith.divf %336, %337 : vector<8x128xf32>
    %339 = vector.extract_strided_slice %332 {offsets = [0, 128], sizes = [8, 128], strides = [1, 1]} : vector<8x512xf32> to vector<8x128xf32>
    %340 = arith.negf %339 : vector<8x128xf32>
    %341 = math.exp %340 : vector<8x128xf32>
    %cst_95 = arith.constant 1.000000e+00 : f32
    %342 = vector.broadcast %cst_95 : f32 to vector<8x128xf32>
    %343 = arith.addf %342, %341 : vector<8x128xf32>
    %344 = arith.divf %342, %343 : vector<8x128xf32>
    %345 = vector.extract_strided_slice %332 {offsets = [0, 256], sizes = [8, 128], strides = [1, 1]} : vector<8x512xf32> to vector<8x128xf32>
    %346 = math.tanh %345 : vector<8x128xf32>
    %347 = vector.extract_strided_slice %332 {offsets = [0, 384], sizes = [8, 128], strides = [1, 1]} : vector<8x512xf32> to vector<8x128xf32>
    %348 = arith.negf %347 : vector<8x128xf32>
    %349 = math.exp %348 : vector<8x128xf32>
    %cst_96 = arith.constant 1.000000e+00 : f32
    %350 = vector.broadcast %cst_96 : f32 to vector<8x128xf32>
    %351 = arith.addf %350, %349 : vector<8x128xf32>
    %352 = arith.divf %350, %351 : vector<8x128xf32>
    %353 = arith.mulf %344, %260 : vector<8x128xf32>
    %354 = arith.mulf %338, %346 : vector<8x128xf32>
    %355 = arith.addf %353, %354 : vector<8x128xf32>
    %356 = math.tanh %355 : vector<8x128xf32>
    %357 = arith.mulf %352, %356 : vector<8x128xf32>
    %358 = tpu.concatenate %262, %294 in 1 : vector<8x128xf32>, vector<8x128xf32> -> vector<8x256xf32>
    %359 = arith.truncf %358 : vector<8x256xf32> to vector<8x256xbf16>
    %c0_97 = arith.constant 0 : index
    %c0_98 = arith.constant 0 : index
    %360 = vector.load %arg6[%c0_97, %c0_98] : memref<256x512xbf16, #tpu.memory_space<vmem>>, vector<256x512xbf16>
    %cst_99 = arith.constant dense<0.000000e+00> : vector<8x512xf32>
    %361 = tpu.matmul %359, %360, %cst_99 {dimension_numbers = #tpu.dot_dimension_numbers<[1], [0], [0], [1], [0, 0, 1, 1], [], []>} : vector<8x256xbf16>, vector<256x512xbf16>, vector<8x512xf32> -> vector<8x512xf32>
    %c0_100 = arith.constant 0 : index
    %c0_101 = arith.constant 0 : index
    %362 = vector.load %arg7[%c0_100, %c0_101] : memref<1x512xf32, #tpu.memory_space<vmem>>, vector<1x512xf32>
    %363 = vector.broadcast %362 : vector<1x512xf32> to vector<8x512xf32>
    %364 = arith.addf %361, %363 : vector<8x512xf32>
    %365 = vector.extract_strided_slice %364 {offsets = [0, 0], sizes = [8, 128], strides = [1, 1]} : vector<8x512xf32> to vector<8x128xf32>
    %366 = arith.negf %365 : vector<8x128xf32>
    %367 = math.exp %366 : vector<8x128xf32>
    %cst_102 = arith.constant 1.000000e+00 : f32
    %368 = vector.broadcast %cst_102 : f32 to vector<8x128xf32>
    %369 = arith.addf %368, %367 : vector<8x128xf32>
    %370 = arith.divf %368, %369 : vector<8x128xf32>
    %371 = vector.extract_strided_slice %364 {offsets = [0, 128], sizes = [8, 128], strides = [1, 1]} : vector<8x512xf32> to vector<8x128xf32>
    %372 = arith.negf %371 : vector<8x128xf32>
    %373 = math.exp %372 : vector<8x128xf32>
    %cst_103 = arith.constant 1.000000e+00 : f32
    %374 = vector.broadcast %cst_103 : f32 to vector<8x128xf32>
    %375 = arith.addf %374, %373 : vector<8x128xf32>
    %376 = arith.divf %374, %375 : vector<8x128xf32>
    %377 = vector.extract_strided_slice %364 {offsets = [0, 256], sizes = [8, 128], strides = [1, 1]} : vector<8x512xf32> to vector<8x128xf32>
    %378 = math.tanh %377 : vector<8x128xf32>
    %379 = vector.extract_strided_slice %364 {offsets = [0, 384], sizes = [8, 128], strides = [1, 1]} : vector<8x512xf32> to vector<8x128xf32>
    %380 = arith.negf %379 : vector<8x128xf32>
    %381 = math.exp %380 : vector<8x128xf32>
    %cst_104 = arith.constant 1.000000e+00 : f32
    %382 = vector.broadcast %cst_104 : f32 to vector<8x128xf32>
    %383 = arith.addf %382, %381 : vector<8x128xf32>
    %384 = arith.divf %382, %383 : vector<8x128xf32>
    %385 = arith.mulf %376, %292 : vector<8x128xf32>
    %386 = arith.mulf %370, %378 : vector<8x128xf32>
    %387 = arith.addf %385, %386 : vector<8x128xf32>
    %388 = math.tanh %387 : vector<8x128xf32>
    %389 = arith.mulf %384, %388 : vector<8x128xf32>
    %c5 = arith.constant 5 : index
    %c0_105 = arith.constant 0 : index
    %c0_106 = arith.constant 0 : index
    %390 = vector.load %arg11[%c5, %c0_105, %c0_106] : memref<8x8x512xf32, #tpu.memory_space<vmem>>, vector<1x8x512xf32>
    %391 = vector.shape_cast %390 : vector<1x8x512xf32> to vector<8x512xf32>
    %392 = arith.truncf %325 : vector<8x128xf32> to vector<8x128xbf16>
    %c0_107 = arith.constant 0 : index
    %c0_108 = arith.constant 0 : index
    %393 = vector.load %arg2[%c0_107, %c0_108] : memref<128x512xbf16, #tpu.memory_space<vmem>>, vector<128x512xbf16>
    %cst_109 = arith.constant dense<0.000000e+00> : vector<8x512xf32>
    %394 = tpu.matmul %392, %393, %cst_109 {dimension_numbers = #tpu.dot_dimension_numbers<[1], [0], [0], [1], [0, 0, 1, 1], [], []>} : vector<8x128xbf16>, vector<128x512xbf16>, vector<8x512xf32> -> vector<8x512xf32>
    %395 = arith.addf %391, %394 : vector<8x512xf32>
    %396 = vector.extract_strided_slice %395 {offsets = [0, 0], sizes = [8, 128], strides = [1, 1]} : vector<8x512xf32> to vector<8x128xf32>
    %397 = arith.negf %396 : vector<8x128xf32>
    %398 = math.exp %397 : vector<8x128xf32>
    %cst_110 = arith.constant 1.000000e+00 : f32
    %399 = vector.broadcast %cst_110 : f32 to vector<8x128xf32>
    %400 = arith.addf %399, %398 : vector<8x128xf32>
    %401 = arith.divf %399, %400 : vector<8x128xf32>
    %402 = vector.extract_strided_slice %395 {offsets = [0, 128], sizes = [8, 128], strides = [1, 1]} : vector<8x512xf32> to vector<8x128xf32>
    %403 = arith.negf %402 : vector<8x128xf32>
    %404 = math.exp %403 : vector<8x128xf32>
    %cst_111 = arith.constant 1.000000e+00 : f32
    %405 = vector.broadcast %cst_111 : f32 to vector<8x128xf32>
    %406 = arith.addf %405, %404 : vector<8x128xf32>
    %407 = arith.divf %405, %406 : vector<8x128xf32>
    %408 = vector.extract_strided_slice %395 {offsets = [0, 256], sizes = [8, 128], strides = [1, 1]} : vector<8x512xf32> to vector<8x128xf32>
    %409 = math.tanh %408 : vector<8x128xf32>
    %410 = vector.extract_strided_slice %395 {offsets = [0, 384], sizes = [8, 128], strides = [1, 1]} : vector<8x512xf32> to vector<8x128xf32>
    %411 = arith.negf %410 : vector<8x128xf32>
    %412 = math.exp %411 : vector<8x128xf32>
    %cst_112 = arith.constant 1.000000e+00 : f32
    %413 = vector.broadcast %cst_112 : f32 to vector<8x128xf32>
    %414 = arith.addf %413, %412 : vector<8x128xf32>
    %415 = arith.divf %413, %414 : vector<8x128xf32>
    %416 = arith.mulf %407, %323 : vector<8x128xf32>
    %417 = arith.mulf %401, %409 : vector<8x128xf32>
    %418 = arith.addf %416, %417 : vector<8x128xf32>
    %419 = math.tanh %418 : vector<8x128xf32>
    %420 = arith.mulf %415, %419 : vector<8x128xf32>
    %421 = tpu.concatenate %325, %357 in 1 : vector<8x128xf32>, vector<8x128xf32> -> vector<8x256xf32>
    %422 = arith.truncf %421 : vector<8x256xf32> to vector<8x256xbf16>
    %c0_113 = arith.constant 0 : index
    %c0_114 = arith.constant 0 : index
    %423 = vector.load %arg4[%c0_113, %c0_114] : memref<256x512xbf16, #tpu.memory_space<vmem>>, vector<256x512xbf16>
    %cst_115 = arith.constant dense<0.000000e+00> : vector<8x512xf32>
    %424 = tpu.matmul %422, %423, %cst_115 {dimension_numbers = #tpu.dot_dimension_numbers<[1], [0], [0], [1], [0, 0, 1, 1], [], []>} : vector<8x256xbf16>, vector<256x512xbf16>, vector<8x512xf32> -> vector<8x512xf32>
    %c0_116 = arith.constant 0 : index
    %c0_117 = arith.constant 0 : index
    %425 = vector.load %arg5[%c0_116, %c0_117] : memref<1x512xf32, #tpu.memory_space<vmem>>, vector<1x512xf32>
    %426 = vector.broadcast %425 : vector<1x512xf32> to vector<8x512xf32>
    %427 = arith.addf %424, %426 : vector<8x512xf32>
    %428 = vector.extract_strided_slice %427 {offsets = [0, 0], sizes = [8, 128], strides = [1, 1]} : vector<8x512xf32> to vector<8x128xf32>
    %429 = arith.negf %428 : vector<8x128xf32>
    %430 = math.exp %429 : vector<8x128xf32>
    %cst_118 = arith.constant 1.000000e+00 : f32
    %431 = vector.broadcast %cst_118 : f32 to vector<8x128xf32>
    %432 = arith.addf %431, %430 : vector<8x128xf32>
    %433 = arith.divf %431, %432 : vector<8x128xf32>
    %434 = vector.extract_strided_slice %427 {offsets = [0, 128], sizes = [8, 128], strides = [1, 1]} : vector<8x512xf32> to vector<8x128xf32>
    %435 = arith.negf %434 : vector<8x128xf32>
    %436 = math.exp %435 : vector<8x128xf32>
    %cst_119 = arith.constant 1.000000e+00 : f32
    %437 = vector.broadcast %cst_119 : f32 to vector<8x128xf32>
    %438 = arith.addf %437, %436 : vector<8x128xf32>
    %439 = arith.divf %437, %438 : vector<8x128xf32>
    %440 = vector.extract_strided_slice %427 {offsets = [0, 256], sizes = [8, 128], strides = [1, 1]} : vector<8x512xf32> to vector<8x128xf32>
    %441 = math.tanh %440 : vector<8x128xf32>
    %442 = vector.extract_strided_slice %427 {offsets = [0, 384], sizes = [8, 128], strides = [1, 1]} : vector<8x512xf32> to vector<8x128xf32>
    %443 = arith.negf %442 : vector<8x128xf32>
    %444 = math.exp %443 : vector<8x128xf32>
    %cst_120 = arith.constant 1.000000e+00 : f32
    %445 = vector.broadcast %cst_120 : f32 to vector<8x128xf32>
    %446 = arith.addf %445, %444 : vector<8x128xf32>
    %447 = arith.divf %445, %446 : vector<8x128xf32>
    %448 = arith.mulf %439, %355 : vector<8x128xf32>
    %449 = arith.mulf %433, %441 : vector<8x128xf32>
    %450 = arith.addf %448, %449 : vector<8x128xf32>
    %451 = math.tanh %450 : vector<8x128xf32>
    %452 = arith.mulf %447, %451 : vector<8x128xf32>
    %453 = tpu.concatenate %357, %389 in 1 : vector<8x128xf32>, vector<8x128xf32> -> vector<8x256xf32>
    %454 = arith.truncf %453 : vector<8x256xf32> to vector<8x256xbf16>
    %c0_121 = arith.constant 0 : index
    %c0_122 = arith.constant 0 : index
    %455 = vector.load %arg6[%c0_121, %c0_122] : memref<256x512xbf16, #tpu.memory_space<vmem>>, vector<256x512xbf16>
    %cst_123 = arith.constant dense<0.000000e+00> : vector<8x512xf32>
    %456 = tpu.matmul %454, %455, %cst_123 {dimension_numbers = #tpu.dot_dimension_numbers<[1], [0], [0], [1], [0, 0, 1, 1], [], []>} : vector<8x256xbf16>, vector<256x512xbf16>, vector<8x512xf32> -> vector<8x512xf32>
    %c0_124 = arith.constant 0 : index
    %c0_125 = arith.constant 0 : index
    %457 = vector.load %arg7[%c0_124, %c0_125] : memref<1x512xf32, #tpu.memory_space<vmem>>, vector<1x512xf32>
    %458 = vector.broadcast %457 : vector<1x512xf32> to vector<8x512xf32>
    %459 = arith.addf %456, %458 : vector<8x512xf32>
    %460 = vector.extract_strided_slice %459 {offsets = [0, 0], sizes = [8, 128], strides = [1, 1]} : vector<8x512xf32> to vector<8x128xf32>
    %461 = arith.negf %460 : vector<8x128xf32>
    %462 = math.exp %461 : vector<8x128xf32>
    %cst_126 = arith.constant 1.000000e+00 : f32
    %463 = vector.broadcast %cst_126 : f32 to vector<8x128xf32>
    %464 = arith.addf %463, %462 : vector<8x128xf32>
    %465 = arith.divf %463, %464 : vector<8x128xf32>
    %466 = vector.extract_strided_slice %459 {offsets = [0, 128], sizes = [8, 128], strides = [1, 1]} : vector<8x512xf32> to vector<8x128xf32>
    %467 = arith.negf %466 : vector<8x128xf32>
    %468 = math.exp %467 : vector<8x128xf32>
    %cst_127 = arith.constant 1.000000e+00 : f32
    %469 = vector.broadcast %cst_127 : f32 to vector<8x128xf32>
    %470 = arith.addf %469, %468 : vector<8x128xf32>
    %471 = arith.divf %469, %470 : vector<8x128xf32>
    %472 = vector.extract_strided_slice %459 {offsets = [0, 256], sizes = [8, 128], strides = [1, 1]} : vector<8x512xf32> to vector<8x128xf32>
    %473 = math.tanh %472 : vector<8x128xf32>
    %474 = vector.extract_strided_slice %459 {offsets = [0, 384], sizes = [8, 128], strides = [1, 1]} : vector<8x512xf32> to vector<8x128xf32>
    %475 = arith.negf %474 : vector<8x128xf32>
    %476 = math.exp %475 : vector<8x128xf32>
    %cst_128 = arith.constant 1.000000e+00 : f32
    %477 = vector.broadcast %cst_128 : f32 to vector<8x128xf32>
    %478 = arith.addf %477, %476 : vector<8x128xf32>
    %479 = arith.divf %477, %478 : vector<8x128xf32>
    %480 = arith.mulf %471, %387 : vector<8x128xf32>
    %481 = arith.mulf %465, %473 : vector<8x128xf32>
    %482 = arith.addf %480, %481 : vector<8x128xf32>
    %483 = math.tanh %482 : vector<8x128xf32>
    %484 = arith.mulf %479, %483 : vector<8x128xf32>
    %c6 = arith.constant 6 : index
    %c0_129 = arith.constant 0 : index
    %c0_130 = arith.constant 0 : index
    %485 = vector.load %arg11[%c6, %c0_129, %c0_130] : memref<8x8x512xf32, #tpu.memory_space<vmem>>, vector<1x8x512xf32>
    %486 = vector.shape_cast %485 : vector<1x8x512xf32> to vector<8x512xf32>
    %487 = arith.truncf %420 : vector<8x128xf32> to vector<8x128xbf16>
    %c0_131 = arith.constant 0 : index
    %c0_132 = arith.constant 0 : index
    %488 = vector.load %arg2[%c0_131, %c0_132] : memref<128x512xbf16, #tpu.memory_space<vmem>>, vector<128x512xbf16>
    %cst_133 = arith.constant dense<0.000000e+00> : vector<8x512xf32>
    %489 = tpu.matmul %487, %488, %cst_133 {dimension_numbers = #tpu.dot_dimension_numbers<[1], [0], [0], [1], [0, 0, 1, 1], [], []>} : vector<8x128xbf16>, vector<128x512xbf16>, vector<8x512xf32> -> vector<8x512xf32>
    %490 = arith.addf %486, %489 : vector<8x512xf32>
    %491 = vector.extract_strided_slice %490 {offsets = [0, 0], sizes = [8, 128], strides = [1, 1]} : vector<8x512xf32> to vector<8x128xf32>
    %492 = arith.negf %491 : vector<8x128xf32>
    %493 = math.exp %492 : vector<8x128xf32>
    %cst_134 = arith.constant 1.000000e+00 : f32
    %494 = vector.broadcast %cst_134 : f32 to vector<8x128xf32>
    %495 = arith.addf %494, %493 : vector<8x128xf32>
    %496 = arith.divf %494, %495 : vector<8x128xf32>
    %497 = vector.extract_strided_slice %490 {offsets = [0, 128], sizes = [8, 128], strides = [1, 1]} : vector<8x512xf32> to vector<8x128xf32>
    %498 = arith.negf %497 : vector<8x128xf32>
    %499 = math.exp %498 : vector<8x128xf32>
    %cst_135 = arith.constant 1.000000e+00 : f32
    %500 = vector.broadcast %cst_135 : f32 to vector<8x128xf32>
    %501 = arith.addf %500, %499 : vector<8x128xf32>
    %502 = arith.divf %500, %501 : vector<8x128xf32>
    %503 = vector.extract_strided_slice %490 {offsets = [0, 256], sizes = [8, 128], strides = [1, 1]} : vector<8x512xf32> to vector<8x128xf32>
    %504 = math.tanh %503 : vector<8x128xf32>
    %505 = vector.extract_strided_slice %490 {offsets = [0, 384], sizes = [8, 128], strides = [1, 1]} : vector<8x512xf32> to vector<8x128xf32>
    %506 = arith.negf %505 : vector<8x128xf32>
    %507 = math.exp %506 : vector<8x128xf32>
    %cst_136 = arith.constant 1.000000e+00 : f32
    %508 = vector.broadcast %cst_136 : f32 to vector<8x128xf32>
    %509 = arith.addf %508, %507 : vector<8x128xf32>
    %510 = arith.divf %508, %509 : vector<8x128xf32>
    %511 = arith.mulf %502, %418 : vector<8x128xf32>
    %512 = arith.mulf %496, %504 : vector<8x128xf32>
    %513 = arith.addf %511, %512 : vector<8x128xf32>
    %514 = math.tanh %513 : vector<8x128xf32>
    %515 = arith.mulf %510, %514 : vector<8x128xf32>
    %516 = tpu.concatenate %420, %452 in 1 : vector<8x128xf32>, vector<8x128xf32> -> vector<8x256xf32>
    %517 = arith.truncf %516 : vector<8x256xf32> to vector<8x256xbf16>
    %c0_137 = arith.constant 0 : index
    %c0_138 = arith.constant 0 : index
    %518 = vector.load %arg4[%c0_137, %c0_138] : memref<256x512xbf16, #tpu.memory_space<vmem>>, vector<256x512xbf16>
    %cst_139 = arith.constant dense<0.000000e+00> : vector<8x512xf32>
    %519 = tpu.matmul %517, %518, %cst_139 {dimension_numbers = #tpu.dot_dimension_numbers<[1], [0], [0], [1], [0, 0, 1, 1], [], []>} : vector<8x256xbf16>, vector<256x512xbf16>, vector<8x512xf32> -> vector<8x512xf32>
    %c0_140 = arith.constant 0 : index
    %c0_141 = arith.constant 0 : index
    %520 = vector.load %arg5[%c0_140, %c0_141] : memref<1x512xf32, #tpu.memory_space<vmem>>, vector<1x512xf32>
    %521 = vector.broadcast %520 : vector<1x512xf32> to vector<8x512xf32>
    %522 = arith.addf %519, %521 : vector<8x512xf32>
    %523 = vector.extract_strided_slice %522 {offsets = [0, 0], sizes = [8, 128], strides = [1, 1]} : vector<8x512xf32> to vector<8x128xf32>
    %524 = arith.negf %523 : vector<8x128xf32>
    %525 = math.exp %524 : vector<8x128xf32>
    %cst_142 = arith.constant 1.000000e+00 : f32
    %526 = vector.broadcast %cst_142 : f32 to vector<8x128xf32>
    %527 = arith.addf %526, %525 : vector<8x128xf32>
    %528 = arith.divf %526, %527 : vector<8x128xf32>
    %529 = vector.extract_strided_slice %522 {offsets = [0, 128], sizes = [8, 128], strides = [1, 1]} : vector<8x512xf32> to vector<8x128xf32>
    %530 = arith.negf %529 : vector<8x128xf32>
    %531 = math.exp %530 : vector<8x128xf32>
    %cst_143 = arith.constant 1.000000e+00 : f32
    %532 = vector.broadcast %cst_143 : f32 to vector<8x128xf32>
    %533 = arith.addf %532, %531 : vector<8x128xf32>
    %534 = arith.divf %532, %533 : vector<8x128xf32>
    %535 = vector.extract_strided_slice %522 {offsets = [0, 256], sizes = [8, 128], strides = [1, 1]} : vector<8x512xf32> to vector<8x128xf32>
    %536 = math.tanh %535 : vector<8x128xf32>
    %537 = vector.extract_strided_slice %522 {offsets = [0, 384], sizes = [8, 128], strides = [1, 1]} : vector<8x512xf32> to vector<8x128xf32>
    %538 = arith.negf %537 : vector<8x128xf32>
    %539 = math.exp %538 : vector<8x128xf32>
    %cst_144 = arith.constant 1.000000e+00 : f32
    %540 = vector.broadcast %cst_144 : f32 to vector<8x128xf32>
    %541 = arith.addf %540, %539 : vector<8x128xf32>
    %542 = arith.divf %540, %541 : vector<8x128xf32>
    %543 = arith.mulf %534, %450 : vector<8x128xf32>
    %544 = arith.mulf %528, %536 : vector<8x128xf32>
    %545 = arith.addf %543, %544 : vector<8x128xf32>
    %546 = math.tanh %545 : vector<8x128xf32>
    %547 = arith.mulf %542, %546 : vector<8x128xf32>
    %548 = tpu.concatenate %452, %484 in 1 : vector<8x128xf32>, vector<8x128xf32> -> vector<8x256xf32>
    %549 = arith.truncf %548 : vector<8x256xf32> to vector<8x256xbf16>
    %c0_145 = arith.constant 0 : index
    %c0_146 = arith.constant 0 : index
    %550 = vector.load %arg6[%c0_145, %c0_146] : memref<256x512xbf16, #tpu.memory_space<vmem>>, vector<256x512xbf16>
    %cst_147 = arith.constant dense<0.000000e+00> : vector<8x512xf32>
    %551 = tpu.matmul %549, %550, %cst_147 {dimension_numbers = #tpu.dot_dimension_numbers<[1], [0], [0], [1], [0, 0, 1, 1], [], []>} : vector<8x256xbf16>, vector<256x512xbf16>, vector<8x512xf32> -> vector<8x512xf32>
    %c0_148 = arith.constant 0 : index
    %c0_149 = arith.constant 0 : index
    %552 = vector.load %arg7[%c0_148, %c0_149] : memref<1x512xf32, #tpu.memory_space<vmem>>, vector<1x512xf32>
    %553 = vector.broadcast %552 : vector<1x512xf32> to vector<8x512xf32>
    %554 = arith.addf %551, %553 : vector<8x512xf32>
    %555 = vector.extract_strided_slice %554 {offsets = [0, 0], sizes = [8, 128], strides = [1, 1]} : vector<8x512xf32> to vector<8x128xf32>
    %556 = arith.negf %555 : vector<8x128xf32>
    %557 = math.exp %556 : vector<8x128xf32>
    %cst_150 = arith.constant 1.000000e+00 : f32
    %558 = vector.broadcast %cst_150 : f32 to vector<8x128xf32>
    %559 = arith.addf %558, %557 : vector<8x128xf32>
    %560 = arith.divf %558, %559 : vector<8x128xf32>
    %561 = vector.extract_strided_slice %554 {offsets = [0, 128], sizes = [8, 128], strides = [1, 1]} : vector<8x512xf32> to vector<8x128xf32>
    %562 = arith.negf %561 : vector<8x128xf32>
    %563 = math.exp %562 : vector<8x128xf32>
    %cst_151 = arith.constant 1.000000e+00 : f32
    %564 = vector.broadcast %cst_151 : f32 to vector<8x128xf32>
    %565 = arith.addf %564, %563 : vector<8x128xf32>
    %566 = arith.divf %564, %565 : vector<8x128xf32>
    %567 = vector.extract_strided_slice %554 {offsets = [0, 256], sizes = [8, 128], strides = [1, 1]} : vector<8x512xf32> to vector<8x128xf32>
    %568 = math.tanh %567 : vector<8x128xf32>
    %569 = vector.extract_strided_slice %554 {offsets = [0, 384], sizes = [8, 128], strides = [1, 1]} : vector<8x512xf32> to vector<8x128xf32>
    %570 = arith.negf %569 : vector<8x128xf32>
    %571 = math.exp %570 : vector<8x128xf32>
    %cst_152 = arith.constant 1.000000e+00 : f32
    %572 = vector.broadcast %cst_152 : f32 to vector<8x128xf32>
    %573 = arith.addf %572, %571 : vector<8x128xf32>
    %574 = arith.divf %572, %573 : vector<8x128xf32>
    %575 = arith.mulf %566, %482 : vector<8x128xf32>
    %576 = arith.mulf %560, %568 : vector<8x128xf32>
    %577 = arith.addf %575, %576 : vector<8x128xf32>
    %578 = math.tanh %577 : vector<8x128xf32>
    %579 = arith.mulf %574, %578 : vector<8x128xf32>
    %c7 = arith.constant 7 : index
    %c0_153 = arith.constant 0 : index
    %c0_154 = arith.constant 0 : index
    %580 = vector.load %arg11[%c7, %c0_153, %c0_154] : memref<8x8x512xf32, #tpu.memory_space<vmem>>, vector<1x8x512xf32>
    %581 = vector.shape_cast %580 : vector<1x8x512xf32> to vector<8x512xf32>
    %582 = arith.truncf %515 : vector<8x128xf32> to vector<8x128xbf16>
    %c0_155 = arith.constant 0 : index
    %c0_156 = arith.constant 0 : index
    %583 = vector.load %arg2[%c0_155, %c0_156] : memref<128x512xbf16, #tpu.memory_space<vmem>>, vector<128x512xbf16>
    %cst_157 = arith.constant dense<0.000000e+00> : vector<8x512xf32>
    %584 = tpu.matmul %582, %583, %cst_157 {dimension_numbers = #tpu.dot_dimension_numbers<[1], [0], [0], [1], [0, 0, 1, 1], [], []>} : vector<8x128xbf16>, vector<128x512xbf16>, vector<8x512xf32> -> vector<8x512xf32>
    %585 = arith.addf %581, %584 : vector<8x512xf32>
    %586 = vector.extract_strided_slice %585 {offsets = [0, 0], sizes = [8, 128], strides = [1, 1]} : vector<8x512xf32> to vector<8x128xf32>
    %587 = arith.negf %586 : vector<8x128xf32>
    %588 = math.exp %587 : vector<8x128xf32>
    %cst_158 = arith.constant 1.000000e+00 : f32
    %589 = vector.broadcast %cst_158 : f32 to vector<8x128xf32>
    %590 = arith.addf %589, %588 : vector<8x128xf32>
    %591 = arith.divf %589, %590 : vector<8x128xf32>
    %592 = vector.extract_strided_slice %585 {offsets = [0, 128], sizes = [8, 128], strides = [1, 1]} : vector<8x512xf32> to vector<8x128xf32>
    %593 = arith.negf %592 : vector<8x128xf32>
    %594 = math.exp %593 : vector<8x128xf32>
    %cst_159 = arith.constant 1.000000e+00 : f32
    %595 = vector.broadcast %cst_159 : f32 to vector<8x128xf32>
    %596 = arith.addf %595, %594 : vector<8x128xf32>
    %597 = arith.divf %595, %596 : vector<8x128xf32>
    %598 = vector.extract_strided_slice %585 {offsets = [0, 256], sizes = [8, 128], strides = [1, 1]} : vector<8x512xf32> to vector<8x128xf32>
    %599 = math.tanh %598 : vector<8x128xf32>
    %600 = vector.extract_strided_slice %585 {offsets = [0, 384], sizes = [8, 128], strides = [1, 1]} : vector<8x512xf32> to vector<8x128xf32>
    %601 = arith.negf %600 : vector<8x128xf32>
    %602 = math.exp %601 : vector<8x128xf32>
    %cst_160 = arith.constant 1.000000e+00 : f32
    %603 = vector.broadcast %cst_160 : f32 to vector<8x128xf32>
    %604 = arith.addf %603, %602 : vector<8x128xf32>
    %605 = arith.divf %603, %604 : vector<8x128xf32>
    %606 = arith.mulf %597, %513 : vector<8x128xf32>
    %607 = arith.mulf %591, %599 : vector<8x128xf32>
    %608 = arith.addf %606, %607 : vector<8x128xf32>
    %609 = math.tanh %608 : vector<8x128xf32>
    %610 = arith.mulf %605, %609 : vector<8x128xf32>
    %611 = tpu.concatenate %515, %547 in 1 : vector<8x128xf32>, vector<8x128xf32> -> vector<8x256xf32>
    %612 = arith.truncf %611 : vector<8x256xf32> to vector<8x256xbf16>
    %c0_161 = arith.constant 0 : index
    %c0_162 = arith.constant 0 : index
    %613 = vector.load %arg4[%c0_161, %c0_162] : memref<256x512xbf16, #tpu.memory_space<vmem>>, vector<256x512xbf16>
    %cst_163 = arith.constant dense<0.000000e+00> : vector<8x512xf32>
    %614 = tpu.matmul %612, %613, %cst_163 {dimension_numbers = #tpu.dot_dimension_numbers<[1], [0], [0], [1], [0, 0, 1, 1], [], []>} : vector<8x256xbf16>, vector<256x512xbf16>, vector<8x512xf32> -> vector<8x512xf32>
    %c0_164 = arith.constant 0 : index
    %c0_165 = arith.constant 0 : index
    %615 = vector.load %arg5[%c0_164, %c0_165] : memref<1x512xf32, #tpu.memory_space<vmem>>, vector<1x512xf32>
    %616 = vector.broadcast %615 : vector<1x512xf32> to vector<8x512xf32>
    %617 = arith.addf %614, %616 : vector<8x512xf32>
    %618 = vector.extract_strided_slice %617 {offsets = [0, 0], sizes = [8, 128], strides = [1, 1]} : vector<8x512xf32> to vector<8x128xf32>
    %619 = arith.negf %618 : vector<8x128xf32>
    %620 = math.exp %619 : vector<8x128xf32>
    %cst_166 = arith.constant 1.000000e+00 : f32
    %621 = vector.broadcast %cst_166 : f32 to vector<8x128xf32>
    %622 = arith.addf %621, %620 : vector<8x128xf32>
    %623 = arith.divf %621, %622 : vector<8x128xf32>
    %624 = vector.extract_strided_slice %617 {offsets = [0, 128], sizes = [8, 128], strides = [1, 1]} : vector<8x512xf32> to vector<8x128xf32>
    %625 = arith.negf %624 : vector<8x128xf32>
    %626 = math.exp %625 : vector<8x128xf32>
    %cst_167 = arith.constant 1.000000e+00 : f32
    %627 = vector.broadcast %cst_167 : f32 to vector<8x128xf32>
    %628 = arith.addf %627, %626 : vector<8x128xf32>
    %629 = arith.divf %627, %628 : vector<8x128xf32>
    %630 = vector.extract_strided_slice %617 {offsets = [0, 256], sizes = [8, 128], strides = [1, 1]} : vector<8x512xf32> to vector<8x128xf32>
    %631 = math.tanh %630 : vector<8x128xf32>
    %632 = vector.extract_strided_slice %617 {offsets = [0, 384], sizes = [8, 128], strides = [1, 1]} : vector<8x512xf32> to vector<8x128xf32>
    %633 = arith.negf %632 : vector<8x128xf32>
    %634 = math.exp %633 : vector<8x128xf32>
    %cst_168 = arith.constant 1.000000e+00 : f32
    %635 = vector.broadcast %cst_168 : f32 to vector<8x128xf32>
    %636 = arith.addf %635, %634 : vector<8x128xf32>
    %637 = arith.divf %635, %636 : vector<8x128xf32>
    %638 = arith.mulf %629, %545 : vector<8x128xf32>
    %639 = arith.mulf %623, %631 : vector<8x128xf32>
    %640 = arith.addf %638, %639 : vector<8x128xf32>
    %641 = math.tanh %640 : vector<8x128xf32>
    %642 = arith.mulf %637, %641 : vector<8x128xf32>
    %643 = tpu.concatenate %547, %579 in 1 : vector<8x128xf32>, vector<8x128xf32> -> vector<8x256xf32>
    %644 = arith.truncf %643 : vector<8x256xf32> to vector<8x256xbf16>
    %c0_169 = arith.constant 0 : index
    %c0_170 = arith.constant 0 : index
    %645 = vector.load %arg6[%c0_169, %c0_170] : memref<256x512xbf16, #tpu.memory_space<vmem>>, vector<256x512xbf16>
    %cst_171 = arith.constant dense<0.000000e+00> : vector<8x512xf32>
    %646 = tpu.matmul %644, %645, %cst_171 {dimension_numbers = #tpu.dot_dimension_numbers<[1], [0], [0], [1], [0, 0, 1, 1], [], []>} : vector<8x256xbf16>, vector<256x512xbf16>, vector<8x512xf32> -> vector<8x512xf32>
    %c0_172 = arith.constant 0 : index
    %c0_173 = arith.constant 0 : index
    %647 = vector.load %arg7[%c0_172, %c0_173] : memref<1x512xf32, #tpu.memory_space<vmem>>, vector<1x512xf32>
    %648 = vector.broadcast %647 : vector<1x512xf32> to vector<8x512xf32>
    %649 = arith.addf %646, %648 : vector<8x512xf32>
    %650 = vector.extract_strided_slice %649 {offsets = [0, 0], sizes = [8, 128], strides = [1, 1]} : vector<8x512xf32> to vector<8x128xf32>
    %651 = arith.negf %650 : vector<8x128xf32>
    %652 = math.exp %651 : vector<8x128xf32>
    %cst_174 = arith.constant 1.000000e+00 : f32
    %653 = vector.broadcast %cst_174 : f32 to vector<8x128xf32>
    %654 = arith.addf %653, %652 : vector<8x128xf32>
    %655 = arith.divf %653, %654 : vector<8x128xf32>
    %656 = vector.extract_strided_slice %649 {offsets = [0, 128], sizes = [8, 128], strides = [1, 1]} : vector<8x512xf32> to vector<8x128xf32>
    %657 = arith.negf %656 : vector<8x128xf32>
    %658 = math.exp %657 : vector<8x128xf32>
    %cst_175 = arith.constant 1.000000e+00 : f32
    %659 = vector.broadcast %cst_175 : f32 to vector<8x128xf32>
    %660 = arith.addf %659, %658 : vector<8x128xf32>
    %661 = arith.divf %659, %660 : vector<8x128xf32>
    %662 = vector.extract_strided_slice %649 {offsets = [0, 256], sizes = [8, 128], strides = [1, 1]} : vector<8x512xf32> to vector<8x128xf32>
    %663 = math.tanh %662 : vector<8x128xf32>
    %664 = vector.extract_strided_slice %649 {offsets = [0, 384], sizes = [8, 128], strides = [1, 1]} : vector<8x512xf32> to vector<8x128xf32>
    %665 = arith.negf %664 : vector<8x128xf32>
    %666 = math.exp %665 : vector<8x128xf32>
    %cst_176 = arith.constant 1.000000e+00 : f32
    %667 = vector.broadcast %cst_176 : f32 to vector<8x128xf32>
    %668 = arith.addf %667, %666 : vector<8x128xf32>
    %669 = arith.divf %667, %668 : vector<8x128xf32>
    %670 = arith.mulf %661, %577 : vector<8x128xf32>
    %671 = arith.mulf %655, %663 : vector<8x128xf32>
    %672 = arith.addf %670, %671 : vector<8x128xf32>
    %673 = math.tanh %672 : vector<8x128xf32>
    %674 = arith.mulf %669, %673 : vector<8x128xf32>
    %675 = tpu.concatenate %610, %642 in 1 : vector<8x128xf32>, vector<8x128xf32> -> vector<8x256xf32>
    %676 = arith.truncf %675 : vector<8x256xf32> to vector<8x256xbf16>
    %c0_177 = arith.constant 0 : index
    %c0_178 = arith.constant 0 : index
    %677 = vector.load %arg4[%c0_177, %c0_178] : memref<256x512xbf16, #tpu.memory_space<vmem>>, vector<256x512xbf16>
    %cst_179 = arith.constant dense<0.000000e+00> : vector<8x512xf32>
    %678 = tpu.matmul %676, %677, %cst_179 {dimension_numbers = #tpu.dot_dimension_numbers<[1], [0], [0], [1], [0, 0, 1, 1], [], []>} : vector<8x256xbf16>, vector<256x512xbf16>, vector<8x512xf32> -> vector<8x512xf32>
    %c0_180 = arith.constant 0 : index
    %c0_181 = arith.constant 0 : index
    %679 = vector.load %arg5[%c0_180, %c0_181] : memref<1x512xf32, #tpu.memory_space<vmem>>, vector<1x512xf32>
    %680 = vector.broadcast %679 : vector<1x512xf32> to vector<8x512xf32>
    %681 = arith.addf %678, %680 : vector<8x512xf32>
    %682 = vector.extract_strided_slice %681 {offsets = [0, 0], sizes = [8, 128], strides = [1, 1]} : vector<8x512xf32> to vector<8x128xf32>
    %683 = arith.negf %682 : vector<8x128xf32>
    %684 = math.exp %683 : vector<8x128xf32>
    %cst_182 = arith.constant 1.000000e+00 : f32
    %685 = vector.broadcast %cst_182 : f32 to vector<8x128xf32>
    %686 = arith.addf %685, %684 : vector<8x128xf32>
    %687 = arith.divf %685, %686 : vector<8x128xf32>
    %688 = vector.extract_strided_slice %681 {offsets = [0, 128], sizes = [8, 128], strides = [1, 1]} : vector<8x512xf32> to vector<8x128xf32>
    %689 = arith.negf %688 : vector<8x128xf32>
    %690 = math.exp %689 : vector<8x128xf32>
    %cst_183 = arith.constant 1.000000e+00 : f32
    %691 = vector.broadcast %cst_183 : f32 to vector<8x128xf32>
    %692 = arith.addf %691, %690 : vector<8x128xf32>
    %693 = arith.divf %691, %692 : vector<8x128xf32>
    %694 = vector.extract_strided_slice %681 {offsets = [0, 256], sizes = [8, 128], strides = [1, 1]} : vector<8x512xf32> to vector<8x128xf32>
    %695 = math.tanh %694 : vector<8x128xf32>
    %696 = vector.extract_strided_slice %681 {offsets = [0, 384], sizes = [8, 128], strides = [1, 1]} : vector<8x512xf32> to vector<8x128xf32>
    %697 = arith.negf %696 : vector<8x128xf32>
    %698 = math.exp %697 : vector<8x128xf32>
    %cst_184 = arith.constant 1.000000e+00 : f32
    %699 = vector.broadcast %cst_184 : f32 to vector<8x128xf32>
    %700 = arith.addf %699, %698 : vector<8x128xf32>
    %701 = arith.divf %699, %700 : vector<8x128xf32>
    %702 = arith.mulf %693, %640 : vector<8x128xf32>
    %703 = arith.mulf %687, %695 : vector<8x128xf32>
    %704 = arith.addf %702, %703 : vector<8x128xf32>
    %705 = math.tanh %704 : vector<8x128xf32>
    %706 = arith.mulf %701, %705 : vector<8x128xf32>
    %707 = tpu.concatenate %642, %674 in 1 : vector<8x128xf32>, vector<8x128xf32> -> vector<8x256xf32>
    %708 = arith.truncf %707 : vector<8x256xf32> to vector<8x256xbf16>
    %c0_185 = arith.constant 0 : index
    %c0_186 = arith.constant 0 : index
    %709 = vector.load %arg6[%c0_185, %c0_186] : memref<256x512xbf16, #tpu.memory_space<vmem>>, vector<256x512xbf16>
    %cst_187 = arith.constant dense<0.000000e+00> : vector<8x512xf32>
    %710 = tpu.matmul %708, %709, %cst_187 {dimension_numbers = #tpu.dot_dimension_numbers<[1], [0], [0], [1], [0, 0, 1, 1], [], []>} : vector<8x256xbf16>, vector<256x512xbf16>, vector<8x512xf32> -> vector<8x512xf32>
    %c0_188 = arith.constant 0 : index
    %c0_189 = arith.constant 0 : index
    %711 = vector.load %arg7[%c0_188, %c0_189] : memref<1x512xf32, #tpu.memory_space<vmem>>, vector<1x512xf32>
    %712 = vector.broadcast %711 : vector<1x512xf32> to vector<8x512xf32>
    %713 = arith.addf %710, %712 : vector<8x512xf32>
    %714 = vector.extract_strided_slice %713 {offsets = [0, 0], sizes = [8, 128], strides = [1, 1]} : vector<8x512xf32> to vector<8x128xf32>
    %715 = arith.negf %714 : vector<8x128xf32>
    %716 = math.exp %715 : vector<8x128xf32>
    %cst_190 = arith.constant 1.000000e+00 : f32
    %717 = vector.broadcast %cst_190 : f32 to vector<8x128xf32>
    %718 = arith.addf %717, %716 : vector<8x128xf32>
    %719 = arith.divf %717, %718 : vector<8x128xf32>
    %720 = vector.extract_strided_slice %713 {offsets = [0, 128], sizes = [8, 128], strides = [1, 1]} : vector<8x512xf32> to vector<8x128xf32>
    %721 = arith.negf %720 : vector<8x128xf32>
    %722 = math.exp %721 : vector<8x128xf32>
    %cst_191 = arith.constant 1.000000e+00 : f32
    %723 = vector.broadcast %cst_191 : f32 to vector<8x128xf32>
    %724 = arith.addf %723, %722 : vector<8x128xf32>
    %725 = arith.divf %723, %724 : vector<8x128xf32>
    %726 = vector.extract_strided_slice %713 {offsets = [0, 256], sizes = [8, 128], strides = [1, 1]} : vector<8x512xf32> to vector<8x128xf32>
    %727 = math.tanh %726 : vector<8x128xf32>
    %728 = vector.extract_strided_slice %713 {offsets = [0, 384], sizes = [8, 128], strides = [1, 1]} : vector<8x512xf32> to vector<8x128xf32>
    %729 = arith.negf %728 : vector<8x128xf32>
    %730 = math.exp %729 : vector<8x128xf32>
    %cst_192 = arith.constant 1.000000e+00 : f32
    %731 = vector.broadcast %cst_192 : f32 to vector<8x128xf32>
    %732 = arith.addf %731, %730 : vector<8x128xf32>
    %733 = arith.divf %731, %732 : vector<8x128xf32>
    %734 = arith.mulf %725, %672 : vector<8x128xf32>
    %735 = arith.mulf %719, %727 : vector<8x128xf32>
    %736 = arith.addf %734, %735 : vector<8x128xf32>
    %737 = math.tanh %736 : vector<8x128xf32>
    %738 = arith.mulf %733, %737 : vector<8x128xf32>
    %739 = tpu.concatenate %706, %738 in 1 : vector<8x128xf32>, vector<8x128xf32> -> vector<8x256xf32>
    %740 = arith.truncf %739 : vector<8x256xf32> to vector<8x256xbf16>
    %c0_193 = arith.constant 0 : index
    %c0_194 = arith.constant 0 : index
    %741 = vector.load %arg6[%c0_193, %c0_194] : memref<256x512xbf16, #tpu.memory_space<vmem>>, vector<256x512xbf16>
    %cst_195 = arith.constant dense<0.000000e+00> : vector<8x512xf32>
    %742 = tpu.matmul %740, %741, %cst_195 {dimension_numbers = #tpu.dot_dimension_numbers<[1], [0], [0], [1], [0, 0, 1, 1], [], []>} : vector<8x256xbf16>, vector<256x512xbf16>, vector<8x512xf32> -> vector<8x512xf32>
    %c0_196 = arith.constant 0 : index
    %c0_197 = arith.constant 0 : index
    %743 = vector.load %arg7[%c0_196, %c0_197] : memref<1x512xf32, #tpu.memory_space<vmem>>, vector<1x512xf32>
    %744 = vector.broadcast %743 : vector<1x512xf32> to vector<8x512xf32>
    %745 = arith.addf %742, %744 : vector<8x512xf32>
    %746 = vector.extract_strided_slice %745 {offsets = [0, 0], sizes = [8, 128], strides = [1, 1]} : vector<8x512xf32> to vector<8x128xf32>
    %747 = arith.negf %746 : vector<8x128xf32>
    %748 = math.exp %747 : vector<8x128xf32>
    %cst_198 = arith.constant 1.000000e+00 : f32
    %749 = vector.broadcast %cst_198 : f32 to vector<8x128xf32>
    %750 = arith.addf %749, %748 : vector<8x128xf32>
    %751 = arith.divf %749, %750 : vector<8x128xf32>
    %752 = vector.extract_strided_slice %745 {offsets = [0, 128], sizes = [8, 128], strides = [1, 1]} : vector<8x512xf32> to vector<8x128xf32>
    %753 = arith.negf %752 : vector<8x128xf32>
    %754 = math.exp %753 : vector<8x128xf32>
    %cst_199 = arith.constant 1.000000e+00 : f32
    %755 = vector.broadcast %cst_199 : f32 to vector<8x128xf32>
    %756 = arith.addf %755, %754 : vector<8x128xf32>
    %757 = arith.divf %755, %756 : vector<8x128xf32>
    %758 = vector.extract_strided_slice %745 {offsets = [0, 256], sizes = [8, 128], strides = [1, 1]} : vector<8x512xf32> to vector<8x128xf32>
    %759 = math.tanh %758 : vector<8x128xf32>
    %760 = vector.extract_strided_slice %745 {offsets = [0, 384], sizes = [8, 128], strides = [1, 1]} : vector<8x512xf32> to vector<8x128xf32>
    %761 = arith.negf %760 : vector<8x128xf32>
    %762 = math.exp %761 : vector<8x128xf32>
    %cst_200 = arith.constant 1.000000e+00 : f32
    %763 = vector.broadcast %cst_200 : f32 to vector<8x128xf32>
    %764 = arith.addf %763, %762 : vector<8x128xf32>
    %765 = arith.divf %763, %764 : vector<8x128xf32>
    %766 = arith.mulf %757, %736 : vector<8x128xf32>
    %767 = arith.mulf %751, %759 : vector<8x128xf32>
    %768 = arith.addf %766, %767 : vector<8x128xf32>
    %769 = math.tanh %768 : vector<8x128xf32>
    %770 = arith.mulf %765, %769 : vector<8x128xf32>
    %c0_201 = arith.constant 0 : index
    %c0_202 = arith.constant 0 : index
    %771 = vector.load %arg8[%c0_201, %c0_202] : memref<1x128xf32, #tpu.memory_space<vmem>>, vector<1x128xf32>
    %772 = vector.broadcast %771 : vector<1x128xf32> to vector<8x128xf32>
    %773 = arith.mulf %770, %772 : vector<8x128xf32>
    %cst_203 = arith.constant dense<0.000000e+00> : vector<8xf32>
    %774 = vector.multi_reduction <add>, %773, %cst_203 [1] : vector<8x128xf32> to vector<8xf32>
    %775 = vector.shape_cast %774 : vector<8xf32> to vector<8x1xf32>
    %c0_204 = arith.constant 0 : index
    %c0_205 = arith.constant 0 : index
    %776 = memref.load %arg9[%c0_204, %c0_205] : memref<1x1xf32, #tpu.memory_space<smem>>
    %777 = vector.broadcast %776 : f32 to vector<8x1xf32>
    %778 = arith.addf %775, %777 : vector<8x1xf32>
    %c0_206 = arith.constant 0 : index
    %c0_207 = arith.constant 0 : index
    %779 = vector.load %arg10[%c0_206, %c0_207] : memref<8x1xf32, #tpu.memory_space<vmem>>, vector<8x1xf32>
    tpu.vector_store %arg10[%c0_206, %c0_207], %778 {strides = array<i32>} : memref<8x1xf32, #tpu.memory_space<vmem>>, vector<8x1xf32>,
    return
  }
}

</mosaic_0001>

<llo_original>
// kernel: lstm_model_forward.1
$region0: #{lstm_model_forward.1}
  #allocation0 [shape = 'u32[]', space=smem, size = 0x4, offset = 0x4, fixed_abs, tag = 'smem constant byte address 0x4 - core index']
  #allocation1 [shape = 'u32[72,128]{1,0:T(1,128)}', space=vmem, size = 0x9000, scoped, tag = 'internal scratch']
  #allocation2 [shape = 'f32[8,8,512]{2,1,0:T(8,128)}', space=vmem, size = 0x20000, scoped, tag = 'scratch operand']
  #allocation3 [shape = 'f32[1,1]{1,0:T(1,128)S(6)}', space=smem, size = 0x200, scoped, tag = 'scoped memory for lstm_model_forward.1']
  %s0 = inlined_call_operand.vmem [shape: f32[64,1], index: 0, kind: input, shape index: {}]
  %s1 = inlined_call_operand.vmem [shape: f32[1,512], index: 1, kind: input, shape index: {}]
  %s2 = inlined_call_operand.hbm [shape: bf16[128,512], index: 2, kind: input, shape index: {}]
  %s3 = inlined_call_operand.vmem [shape: f32[1,512], index: 3, kind: input, shape index: {}]
  %s4 = inlined_call_operand.hbm [shape: bf16[256,512], index: 4, kind: input, shape index: {}]
  %s5 = inlined_call_operand.vmem [shape: f32[1,512], index: 5, kind: input, shape index: {}]
  %s6 = inlined_call_operand.hbm [shape: bf16[256,512], index: 6, kind: input, shape index: {}]
  %s7 = inlined_call_operand.vmem [shape: f32[1,512], index: 7, kind: input, shape index: {}]
  %s8 = inlined_call_operand.vmem [shape: f32[1,128], index: 8, kind: input, shape index: {}]
  %s9 = inlined_call_operand.<no memory space> [shape: f32[1,1], index: 9, kind: input, shape index: {}]
  %s10 = inlined_call_operand.vmem [shape: f32[8,1], index: 10, kind: output, shape index: {}]
  %s11 = sld [smem:[#allocation0]]
  $region62: #{lstm_model_forward.1} parent=0
    _
  %s13 = ssub.s32 1, %s11
  %s14 = scalar_select 0, %s13, %s11
  %15 = sst [smem:[#allocation3]] %s9
  $region1: #{lstm_model_forward.1} parent=0
    #allocation4 [shape = 'u8[131072]{0}', space=vmem, size = 0x20000, scoped, tag = 'input window, operand 2, single buffered']
    #allocation5 [shape = 's32[1]{0}', space=sflag, size = 0x4, scoped, tag = 'scoped memory for lstm_model_forward.1']
    #allocation6 [shape = 'u8[262144]{0}', space=vmem, size = 0x40000, scoped, tag = 'input window, operand 4, single buffered']
    #allocation7 [shape = 's32[1]{0}', space=sflag, size = 0x4, scoped, tag = 'scoped memory for lstm_model_forward.1']
    #allocation8 [shape = 'u8[262144]{0}', space=vmem, size = 0x40000, scoped, tag = 'input window, operand 6, single buffered']
    %16 = vsyncpa [#allocation5], 0
    %17 = vsyncpa [#allocation7], 0
    // Predicated region
    $region2: #{lstm_model_forward.1} parent=1 // pred_check
      _
    $region3: #{lstm_model_forward.1} parent=1 // pred_check_branch
      %19 = sbr.rel (0) target = $region5
    $region4: #{lstm_model_forward.1} parent=1 // pred_region
      _
    $region5: #{lstm_model_forward.1} parent=1 // pred_fallthru
      _
    // Predicated region
    $region6: #{lstm_model_forward.1} parent=1 // pred_check
      _
    $region7: #{lstm_model_forward.1} parent=1 // pred_check_branch
      %21 = sbr.rel (0) target = $region9
    $region8: #{lstm_model_forward.1} parent=1 // pred_region
      _
    $region9: #{lstm_model_forward.1} parent=1 // pred_fallthru
      _
    // Predicated region
    $region10: #{lstm_model_forward.1} parent=1 // pred_check
      _
    $region11: #{lstm_model_forward.1} parent=1 // pred_check_branch
      %23 = sbr.rel (0) target = $region13
    $region12: #{lstm_model_forward.1} parent=1 // pred_region
      %25 = vsyncadd [#allocation5], 0
      %s26 = sshll.u32 %s2, 4
      %s27 = int_to_ptr.hbm [resolvable:$true] %s26
      %s28 = sshll.u32 [#allocation4], 4
      %s29 = int_to_ptr.vmem [resolvable:$true] %s28
      %34 = dma.hbm_to_vmem [thread:$0]  %s27, 4096, %s29, [#allocation5], 256, 256, 16
    $region13: #{lstm_model_forward.1} parent=1 // pred_fallthru
      _
    // Predicated region
    $region14: #{lstm_model_forward.1} parent=1 // pred_check
      _
    $region15: #{lstm_model_forward.1} parent=1 // pred_check_branch
      %36 = sbr.rel (0) target = $region17
    $region16: #{lstm_model_forward.1} parent=1 // pred_region
      _
    $region17: #{lstm_model_forward.1} parent=1 // pred_fallthru
      _
    // Predicated region
    $region18: #{lstm_model_forward.1} parent=1 // pred_check
      _
    $region19: #{lstm_model_forward.1} parent=1 // pred_check_branch
      %38 = sbr.rel (0) target = $region21
    $region20: #{lstm_model_forward.1} parent=1 // pred_region
      %40 = vsyncadd [#allocation7], 0
      %s41 = sshll.u32 %s4, 4
      %s42 = int_to_ptr.hbm [resolvable:$true] %s41
      %s43 = sshll.u32 [#allocation6], 4
      %s44 = int_to_ptr.vmem [resolvable:$true] %s43
      %49 = dma.hbm_to_vmem [thread:$0]  %s42, 8192, %s44, [#allocation7], 256, 256, 16
    $region21: #{lstm_model_forward.1} parent=1 // pred_fallthru
      _
    // Predicated region
    $region22: #{lstm_model_forward.1} parent=1 // pred_check
      _
    $region23: #{lstm_model_forward.1} parent=1 // pred_check_branch
      %51 = sbr.rel (0) target = $region25
    $region24: #{lstm_model_forward.1} parent=1 // pred_region
      _
    $region25: #{lstm_model_forward.1} parent=1 // pred_fallthru
      _
    // Predicated region
    $region26: #{lstm_model_forward.1} parent=1 // pred_check
      _
    $region27: #{lstm_model_forward.1} parent=1 // pred_check_branch
      %53 = sbr.rel (0) target = $region29
    $region28: #{lstm_model_forward.1} parent=1 // pred_region
      %55 = vsyncadd [#allocation7], 0
      %s56 = sshll.u32 %s6, 4
      %s57 = int_to_ptr.hbm [resolvable:$true] %s56
      %s58 = sshll.u32 [#allocation8], 4
      %s59 = int_to_ptr.vmem [resolvable:$true] %s58
      %64 = dma.hbm_to_vmem [thread:$0]  %s57, 8192, %s59, [#allocation7], 256, 256, 16
    $region29: #{lstm_model_forward.1} parent=1 // pred_fallthru
      _
    // Predicated region
    $region30: #{lstm_model_forward.1} parent=1 // pred_check
      _
    $region31: #{lstm_model_forward.1} parent=1 // pred_check_branch
      %66 = sbr.rel (0) target = $region33
    $region32: #{lstm_model_forward.1} parent=1 // pred_region
      _
    $region33: #{lstm_model_forward.1} parent=1 // pred_fallthru
      _
    // Predicated region
    $region34: #{lstm_model_forward.1} parent=1 // pred_check
      _
    $region35: #{lstm_model_forward.1} parent=1 // pred_check_branch
      %68 = sbr.rel (0) target = $region37
    $region36: #{lstm_model_forward.1} parent=1 // pred_region
      _
    $region37: #{lstm_model_forward.1} parent=1 // pred_fallthru
      _
    // Predicated region
    $region38: #{lstm_model_forward.1} parent=1 // pred_check
      _
    $region39: #{lstm_model_forward.1} parent=1 // pred_check_branch
      %70 = sbr.rel (0) target = $region41
    $region40: #{lstm_model_forward.1} parent=1 // pred_region
      _
    $region41: #{lstm_model_forward.1} parent=1 // pred_fallthru
      _
    // Predicated region
    $region42: #{lstm_model_forward.1} parent=1 // pred_check
      _
    $region43: #{lstm_model_forward.1} parent=1 // pred_check_branch
      %72 = sbr.rel (0) target = $region45
    $region44: #{lstm_model_forward.1} parent=1 // pred_region
      %74 = dma.done [#allocation5], 4096
    $region45: #{lstm_model_forward.1} parent=1 // pred_fallthru
      _
    // Predicated region
    $region46: #{lstm_model_forward.1} parent=1 // pred_check
      _
    $region47: #{lstm_model_forward.1} parent=1 // pred_check_branch
      %76 = sbr.rel (0) target = $region49
    $region48: #{lstm_model_forward.1} parent=1 // pred_region
      %78 = dma.done [#allocation7], 8192
    $region49: #{lstm_model_forward.1} parent=1 // pred_fallthru
      _
    // Predicated region
    $region50: #{lstm_model_forward.1} parent=1 // pred_check
      _
    $region51: #{lstm_model_forward.1} parent=1 // pred_check_branch
      %80 = sbr.rel (0) target = $region53
    $region52: #{lstm_model_forward.1} parent=1 // pred_region
      %82 = dma.done [#allocation7], 8192
    $region53: #{lstm_model_forward.1} parent=1 // pred_fallthru
      _
    %v84 = vld [vmem:[%s0] sm:$0xff]
    %v85 = vld [vmem:[%s0 + $0x8] sm:$0xff]
    %v86 = vld [vmem:[%s0 + $0x10] sm:$0xff]
    %v87 = vld [vmem:[%s0 + $0x18] sm:$0xff]
    %v88 = vld [vmem:[%s0 + $0x20] sm:$0xff]
    %v89 = vld [vmem:[%s0 + $0x28] sm:$0xff]
    %v90 = vld [vmem:[%s0 + $0x30] sm:$0xff]
    %v91 = vld [vmem:[%s0 + $0x38] sm:$0xff]
    %v92 = vld [vmem:[%s1] sm:$0xf]
    %94 = vset.pattern.permute.xlu0 0
    %95 = vperm.xlu0 %94, %v84
    %v96 = vpop.permute.xlu0 %95
    %99 = vset.pattern.permute.xlu0 0
    %100 = vperm.xlu0 %99, %v85
    %v101 = vpop.permute.xlu0 %100
    %104 = vset.pattern.permute.xlu0 0
    %105 = vperm.xlu0 %104, %v86
    %v106 = vpop.permute.xlu0 %105
    %109 = vset.pattern.permute.xlu0 0
    %110 = vperm.xlu0 %109, %v87
    %v111 = vpop.permute.xlu0 %110
    %114 = vset.pattern.permute.xlu0 0
    %115 = vperm.xlu0 %114, %v88
    %v116 = vpop.permute.xlu0 %115
    %119 = vset.pattern.permute.xlu0 0
    %120 = vperm.xlu0 %119, %v89
    %v121 = vpop.permute.xlu0 %120
    %124 = vset.pattern.permute.xlu0 0
    %125 = vperm.xlu0 %124, %v90
    %v126 = vpop.permute.xlu0 %125
    %129 = vset.pattern.permute.xlu0 0
    %130 = vperm.xlu0 %129, %v91
    %v131 = vpop.permute.xlu0 %130
    %v134 = vperm.slane %v92, 0
    %v135 = vperm.slane %v92, 1
    %v136 = vperm.slane %v92, 2
    %v137 = vperm.slane %v92, 3
    %v142 = vmul.f32 %v96, %v134
    %v143 = vmul.f32 %v96, %v135
    %v144 = vmul.f32 %v96, %v136
    %v145 = vmul.f32 %v96, %v137
    %v146 = vmul.f32 %v101, %v134
    %v147 = vmul.f32 %v101, %v135
    %v148 = vmul.f32 %v101, %v136
    %v149 = vmul.f32 %v101, %v137
    %v150 = vmul.f32 %v106, %v134
    %v151 = vmul.f32 %v106, %v135
    %v152 = vmul.f32 %v106, %v136
    %v153 = vmul.f32 %v106, %v137
    %v154 = vmul.f32 %v111, %v134
    %v155 = vmul.f32 %v111, %v135
    %v156 = vmul.f32 %v111, %v136
    %v157 = vmul.f32 %v111, %v137
    %v158 = vmul.f32 %v116, %v134
    %v159 = vmul.f32 %v116, %v135
    %v160 = vmul.f32 %v116, %v136
    %v161 = vmul.f32 %v116, %v137
    %v162 = vmul.f32 %v121, %v134
    %v163 = vmul.f32 %v121, %v135
    %v164 = vmul.f32 %v121, %v136
    %v165 = vmul.f32 %v121, %v137
    %v166 = vmul.f32 %v126, %v134
    %v167 = vmul.f32 %v126, %v135
    %v168 = vmul.f32 %v126, %v136
    %v169 = vmul.f32 %v126, %v137
    %v170 = vmul.f32 %v131, %v134
    %v171 = vmul.f32 %v131, %v135
    %v172 = vmul.f32 %v131, %v136
    %v173 = vmul.f32 %v131, %v137
    %v174 = vld [vmem:[%s3] sm:$0xf]
    %v176 = vperm.slane %v174, 0
    %v177 = vperm.slane %v174, 1
    %v178 = vperm.slane %v174, 2
    %v179 = vperm.slane %v174, 3
    %v184 = vadd.f32 %v142, %v176
    %v185 = vadd.f32 %v143, %v177
    %v186 = vadd.f32 %v144, %v178
    %v187 = vadd.f32 %v145, %v179
    %v188 = vadd.f32 %v146, %v176
    %v189 = vadd.f32 %v147, %v177
    %v190 = vadd.f32 %v148, %v178
    %v191 = vadd.f32 %v149, %v179
    %v192 = vadd.f32 %v150, %v176
    %v193 = vadd.f32 %v151, %v177
    %v194 = vadd.f32 %v152, %v178
    %v195 = vadd.f32 %v153, %v179
    %v196 = vadd.f32 %v154, %v176
    %v197 = vadd.f32 %v155, %v177
    %v198 = vadd.f32 %v156, %v178
    %v199 = vadd.f32 %v157, %v179
    %v200 = vadd.f32 %v158, %v176
    %v201 = vadd.f32 %v159, %v177
    %v202 = vadd.f32 %v160, %v178
    %v203 = vadd.f32 %v161, %v179
    %v204 = vadd.f32 %v162, %v176
    %v205 = vadd.f32 %v163, %v177
    %v206 = vadd.f32 %v164, %v178
    %v207 = vadd.f32 %v165, %v179
    %v208 = vadd.f32 %v166, %v176
    %v209 = vadd.f32 %v167, %v177
    %v210 = vadd.f32 %v168, %v178
    %v211 = vadd.f32 %v169, %v179
    %v212 = vadd.f32 %v170, %v176
    %v213 = vadd.f32 %v171, %v177
    %v214 = vadd.f32 %v172, %v178
    %v215 = vadd.f32 %v173, %v179
    %216 = vst [vmem:[#allocation2] sm:$0xff] %v184
    %217 = vst [vmem:[#allocation2 + $0x8] sm:$0xff] %v185
    %218 = vst [vmem:[#allocation2 + $0x10] sm:$0xff] %v186
    %219 = vst [vmem:[#allocation2 + $0x18] sm:$0xff] %v187
    %220 = vst [vmem:[#allocation2 + $0x20] sm:$0xff] %v188
    %221 = vst [vmem:[#allocation2 + $0x28] sm:$0xff] %v189
    %222 = vst [vmem:[#allocation2 + $0x30] sm:$0xff] %v190
    %223 = vst [vmem:[#allocation2 + $0x38] sm:$0xff] %v191
    %224 = vst [vmem:[#allocation2 + $0x40] sm:$0xff] %v192
    %225 = vst [vmem:[#allocation2 + $0x48] sm:$0xff] %v193
    %226 = vst [vmem:[#allocation2 + $0x50] sm:$0xff] %v194
    %227 = vst [vmem:[#allocation2 + $0x58] sm:$0xff] %v195
    %228 = vst [vmem:[#allocation2 + $0x60] sm:$0xff] %v196
    %229 = vst [vmem:[#allocation2 + $0x68] sm:$0xff] %v197
    %230 = vst [vmem:[#allocation2 + $0x70] sm:$0xff] %v198
    %231 = vst [vmem:[#allocation2 + $0x78] sm:$0xff] %v199
    %232 = vst [vmem:[#allocation2 + $0x80] sm:$0xff] %v200
    %233 = vst [vmem:[#allocation2 + $0x88] sm:$0xff] %v201
    %234 = vst [vmem:[#allocation2 + $0x90] sm:$0xff] %v202
    %235 = vst [vmem:[#allocation2 + $0x98] sm:$0xff] %v203
    %236 = vst [vmem:[#allocation2 + $0xa0] sm:$0xff] %v204
    %237 = vst [vmem:[#allocation2 + $0xa8] sm:$0xff] %v205
    %238 = vst [vmem:[#allocation2 + $0xb0] sm:$0xff] %v206
    %239 = vst [vmem:[#allocation2 + $0xb8] sm:$0xff] %v207
    %240 = vst [vmem:[#allocation2 + $0xc0] sm:$0xff] %v208
    %241 = vst [vmem:[#allocation2 + $0xc8] sm:$0xff] %v209
    %242 = vst [vmem:[#allocation2 + $0xd0] sm:$0xff] %v210
    %243 = vst [vmem:[#allocation2 + $0xd8] sm:$0xff] %v211
    %244 = vst [vmem:[#allocation2 + $0xe0] sm:$0xff] %v212
    %245 = vst [vmem:[#allocation2 + $0xe8] sm:$0xff] %v213
    %246 = vst [vmem:[#allocation2 + $0xf0] sm:$0xff] %v214
    %247 = vst [vmem:[#allocation2 + $0xf8] sm:$0xff] %v215
    %v248 = vld [vmem:[#allocation2] sm:$0xff]
    %v249 = vld [vmem:[#allocation2 + $0x8] sm:$0xff]
    %v250 = vld [vmem:[#allocation2 + $0x10] sm:$0xff]
    %v251 = vld [vmem:[#allocation2 + $0x18] sm:$0xff]
    %v252 = vld [vmem:[#allocation4] sm:$0xff]
    %v253 = vld [vmem:[#allocation4 + $0x8] sm:$0xff]
    %v254 = vld [vmem:[#allocation4 + $0x10] sm:$0xff]
    %v255 = vld [vmem:[#allocation4 + $0x18] sm:$0xff]
    %v256 = vld [vmem:[#allocation4 + $0x20] sm:$0xff]
    %v257 = vld [vmem:[#allocation4 + $0x28] sm:$0xff]
    %v258 = vld [vmem:[#allocation4 + $0x30] sm:$0xff]
    %v259 = vld [vmem:[#allocation4 + $0x38] sm:$0xff]
    %v260 = vld [vmem:[#allocation4 + $0x40] sm:$0xff]
    %v261 = vld [vmem:[#allocation4 + $0x48] sm:$0xff]
    %v262 = vld [vmem:[#allocation4 + $0x50] sm:$0xff]
    %v263 = vld [vmem:[#allocation4 + $0x58] sm:$0xff]
    %v264 = vld [vmem:[#allocation4 + $0x60] sm:$0xff]
    %v265 = vld [vmem:[#allocation4 + $0x68] sm:$0xff]
    %v266 = vld [vmem:[#allocation4 + $0x70] sm:$0xff]
    %v267 = vld [vmem:[#allocation4 + $0x78] sm:$0xff]
    %v268 = vld [vmem:[#allocation4 + $0x80] sm:$0xff]
    %v269 = vld [vmem:[#allocation4 + $0x88] sm:$0xff]
    %v270 = vld [vmem:[#allocation4 + $0x90] sm:$0xff]
    %v271 = vld [vmem:[#allocation4 + $0x98] sm:$0xff]
    %v272 = vld [vmem:[#allocation4 + $0xa0] sm:$0xff]
    %v273 = vld [vmem:[#allocation4 + $0xa8] sm:$0xff]
    %v274 = vld [vmem:[#allocation4 + $0xb0] sm:$0xff]
    %v275 = vld [vmem:[#allocation4 + $0xb8] sm:$0xff]
    %v276 = vld [vmem:[#allocation4 + $0xc0] sm:$0xff]
    %v277 = vld [vmem:[#allocation4 + $0xc8] sm:$0xff]
    %v278 = vld [vmem:[#allocation4 + $0xd0] sm:$0xff]
    %v279 = vld [vmem:[#allocation4 + $0xd8] sm:$0xff]
    %v280 = vld [vmem:[#allocation4 + $0xe0] sm:$0xff]
    %v281 = vld [vmem:[#allocation4 + $0xe8] sm:$0xff]
    %v282 = vld [vmem:[#allocation4 + $0xf0] sm:$0xff]
    %v283 = vld [vmem:[#allocation4 + $0xf8] sm:$0xff]
    %v316 = vunpack.c.l.b16 %v252
    %v317 = vunpack.c.h.b16 %v252
    %v318 = vunpack.c.l.b16 %v253
    %v319 = vunpack.c.h.b16 %v253
    %v320 = vunpack.c.l.b16 %v254
    %v321 = vunpack.c.h.b16 %v254
    %v322 = vunpack.c.l.b16 %v255
    %v323 = vunpack.c.h.b16 %v255
    %v324 = vunpack.c.l.b16 %v256
    %v325 = vunpack.c.h.b16 %v256
    %v326 = vunpack.c.l.b16 %v257
    %v327 = vunpack.c.h.b16 %v257
    %v328 = vunpack.c.l.b16 %v258
    %v329 = vunpack.c.h.b16 %v258
    %v330 = vunpack.c.l.b16 %v259
    %v331 = vunpack.c.h.b16 %v259
    %v332 = vunpack.c.l.b16 %v260
    %v333 = vunpack.c.h.b16 %v260
    %v334 = vunpack.c.l.b16 %v261
    %v335 = vunpack.c.h.b16 %v261
    %v336 = vunpack.c.l.b16 %v262
    %v337 = vunpack.c.h.b16 %v262
    %v338 = vunpack.c.l.b16 %v263
    %v339 = vunpack.c.h.b16 %v263
    %v340 = vunpack.c.l.b16 %v264
    %v341 = vunpack.c.h.b16 %v264
    %v342 = vunpack.c.l.b16 %v265
    %v343 = vunpack.c.h.b16 %v265
    %v344 = vunpack.c.l.b16 %v266
    %v345 = vunpack.c.h.b16 %v266
    %v346 = vunpack.c.l.b16 %v267
    %v347 = vunpack.c.h.b16 %v267
    %v348 = vunpack.c.l.b16 %v268
    %v349 = vunpack.c.h.b16 %v268
    %v350 = vunpack.c.l.b16 %v269
    %v351 = vunpack.c.h.b16 %v269
    %v352 = vunpack.c.l.b16 %v270
    %v353 = vunpack.c.h.b16 %v270
    %v354 = vunpack.c.l.b16 %v271
    %v355 = vunpack.c.h.b16 %v271
    %v356 = vunpack.c.l.b16 %v272
    %v357 = vunpack.c.h.b16 %v272
    %v358 = vunpack.c.l.b16 %v273
    %v359 = vunpack.c.h.b16 %v273
    %v360 = vunpack.c.l.b16 %v274
    %v361 = vunpack.c.h.b16 %v274
    %v362 = vunpack.c.l.b16 %v275
    %v363 = vunpack.c.h.b16 %v275
    %v364 = vunpack.c.l.b16 %v276
    %v365 = vunpack.c.h.b16 %v276
    %v366 = vunpack.c.l.b16 %v277
    %v367 = vunpack.c.h.b16 %v277
    %v368 = vunpack.c.l.b16 %v278
    %v369 = vunpack.c.h.b16 %v278
    %v370 = vunpack.c.l.b16 %v279
    %v371 = vunpack.c.h.b16 %v279
    %v372 = vunpack.c.l.b16 %v280
    %v373 = vunpack.c.h.b16 %v280
    %v374 = vunpack.c.l.b16 %v281
    %v375 = vunpack.c.h.b16 %v281
    %v376 = vunpack.c.l.b16 %v282
    %v377 = vunpack.c.h.b16 %v282
    %v378 = vunpack.c.l.b16 %v283
    %v379 = vunpack.c.h.b16 %v283
    %v380 = vpack.c.b16 %v320, %v316
    %v381 = vpack.c.b16 %v321, %v317
    %v382 = vpack.c.b16 %v322, %v318
    %v383 = vpack.c.b16 %v323, %v319
    %v384 = vpack.c.b16 %v328, %v324
    %v385 = vpack.c.b16 %v329, %v325
    %v386 = vpack.c.b16 %v330, %v326
    %v387 = vpack.c.b16 %v331, %v327
    %v388 = vpack.c.b16 %v336, %v332
    %v389 = vpack.c.b16 %v337, %v333
    %v390 = vpack.c.b16 %v338, %v334
    %v391 = vpack.c.b16 %v339, %v335
    %v392 = vpack.c.b16 %v344, %v340
    %v393 = vpack.c.b16 %v345, %v341
    %v394 = vpack.c.b16 %v346, %v342
    %v395 = vpack.c.b16 %v347, %v343
    %v396 = vpack.c.b16 %v352, %v348
    %v397 = vpack.c.b16 %v353, %v349
    %v398 = vpack.c.b16 %v354, %v350
    %v399 = vpack.c.b16 %v355, %v351
    %v400 = vpack.c.b16 %v360, %v356
    %v401 = vpack.c.b16 %v361, %v357
    %v402 = vpack.c.b16 %v362, %v358
    %v403 = vpack.c.b16 %v363, %v359
    %v404 = vpack.c.b16 %v368, %v364
    %v405 = vpack.c.b16 %v369, %v365
    %v406 = vpack.c.b16 %v370, %v366
    %v407 = vpack.c.b16 %v371, %v367
    %v408 = vpack.c.b16 %v376, %v372
    %v409 = vpack.c.b16 %v377, %v373
    %v410 = vpack.c.b16 %v378, %v374
    %v411 = vpack.c.b16 %v379, %v375
    %444 = vmatpush.bf16.msra.mxu0 %v408
    %445 = vmatpush.bf16.msra.mxu0 %v404
    %446 = vmatpush.bf16.msra.mxu0 %v400
    %447 = vmatpush.bf16.msra.mxu0 %v396
    %448 = vmatpush.bf16.msra.mxu0 %v392
    %449 = vmatpush.bf16.msra.mxu0 %v388
    %450 = vmatpush.bf16.msra.mxu0 %v384
    %451 = vmatpush.bf16.msra.mxu0 %v380
    %452 = vmatmul.bf16.gmra.mxu0 0
    %v453 = vpop.f32.mrf.mxu0
    %v454 = vadd.f32 0.0, %v453
    %v455 = vpop.f32.mrf.mxu0
    %456 = vdwg.mxu0
    %457 = vmatpush.bf16.msra.mxu0 %v409
    %458 = vmatpush.bf16.msra.mxu0 %v405
    %459 = vmatpush.bf16.msra.mxu0 %v401
    %460 = vmatpush.bf16.msra.mxu0 %v397
    %461 = vmatpush.bf16.msra.mxu0 %v393
    %462 = vmatpush.bf16.msra.mxu0 %v389
    %463 = vmatpush.bf16.msra.mxu0 %v385
    %464 = vmatpush.bf16.msra.mxu0 %v381
    %465 = vmatmul.bf16.gmra.mxu0 0
    %v466 = vpop.f32.mrf.mxu0
    %v467 = vadd.f32 0.0, %v466
    %v468 = vpop.f32.mrf.mxu0
    %469 = vdwg.mxu0
    %470 = vmatpush.bf16.msra.mxu0 %v410
    %471 = vmatpush.bf16.msra.mxu0 %v406
    %472 = vmatpush.bf16.msra.mxu0 %v402
    %473 = vmatpush.bf16.msra.mxu0 %v398
    %474 = vmatpush.bf16.msra.mxu0 %v394
    %475 = vmatpush.bf16.msra.mxu0 %v390
    %476 = vmatpush.bf16.msra.mxu0 %v386
    %477 = vmatpush.bf16.msra.mxu0 %v382
    %478 = vmatmul.bf16.gmra.mxu0 0
    %v479 = vpop.f32.mrf.mxu0
    %v480 = vadd.f32 0.0, %v479
    %v481 = vpop.f32.mrf.mxu0
    %482 = vdwg.mxu0
    %483 = vmatpush.bf16.msra.mxu0 %v411
    %484 = vmatpush.bf16.msra.mxu0 %v407
    %485 = vmatpush.bf16.msra.mxu0 %v403
    %486 = vmatpush.bf16.msra.mxu0 %v399
    %487 = vmatpush.bf16.msra.mxu0 %v395
    %488 = vmatpush.bf16.msra.mxu0 %v391
    %489 = vmatpush.bf16.msra.mxu0 %v387
    %490 = vmatpush.bf16.msra.mxu0 %v383
    %491 = vmatmul.bf16.gmra.mxu0 0
    %v492 = vpop.f32.mrf.mxu0
    %v493 = vadd.f32 0.0, %v492
    %v494 = vpop.f32.mrf.mxu0
    %495 = vdwg.mxu0
    %v496 = vadd.f32 %v248, %v454
    %v497 = vadd.f32 %v249, %v467
    %v498 = vadd.f32 %v250, %v480
    %v499 = vadd.f32 %v251, %v493
    %v500 = vxor.u32 %v496, 2147483648
    %v501 = vmul.f32 %v500, 1.442695
    %v502 = vpow.pop %v501
    %v503 = vadd.f32 %v502, 1.0
    %v504 = vrcp.pop %v503
    %v505 = vmul.f32 %v503, %v504
    %v506 = vsub.f32 1.0, %v505
    %v507 = vmul.f32 %v504, %v506
    %v508 = vadd.f32 %v504, %v507
    %vm509 = vweird.f32 %v503
    %vm510 = vweird.f32 %v504
    %vm511 = vmor %vm509, %vm510
    %v512 = vsel %vm511, %v504, %v508
    %v513 = vand.u32 2147483647, %v503
    %vm514 = vcmp.eq.f32.partialorder %v513, 8.507059e+37
    %v515 = vand.u32 %v503, 2147483648
    %v516 = vor.u32 1.1754944e-38, %v515
    %v517 = vsel %vm514, %v516, %v512
    %v518 = vmul.f32 1.0, %v517
    %v519 = vxor.u32 %v497, 2147483648
    %v520 = vmul.f32 %v519, 1.442695
    %v521 = vpow.pop %v520
    %v522 = vadd.f32 %v521, 1.0
    %v523 = vrcp.pop %v522
    %v524 = vmul.f32 %v522, %v523
    %v525 = vsub.f32 1.0, %v524
    %v526 = vmul.f32 %v523, %v525
    %v527 = vadd.f32 %v523, %v526
    %vm528 = vweird.f32 %v522
    %vm529 = vweird.f32 %v523
    %vm530 = vmor %vm528, %vm529
    %v531 = vsel %vm530, %v523, %v527
    %v532 = vand.u32 2147483647, %v522
    %vm533 = vcmp.eq.f32.partialorder %v532, 8.507059e+37
    %v534 = vand.u32 %v522, 2147483648
    %v535 = vor.u32 1.1754944e-38, %v534
    %v536 = vsel %vm533, %v535, %v531
    %v537 = vmul.f32 1.0, %v536
    %v538 = vtanh.pop %v498
    %v539 = vxor.u32 %v499, 2147483648
    %v540 = vmul.f32 %v539, 1.442695
    %v541 = vpow.pop %v540
    %v542 = vadd.f32 %v541, 1.0
    %v543 = vrcp.pop %v542
    %v544 = vmul.f32 %v542, %v543
    %v545 = vsub.f32 1.0, %v544
    %v546 = vmul.f32 %v543, %v545
    %v547 = vadd.f32 %v543, %v546
    %vm548 = vweird.f32 %v542
    %vm549 = vweird.f32 %v543
    %vm550 = vmor %vm548, %vm549
    %v551 = vsel %vm550, %v543, %v547
    %v552 = vand.u32 2147483647, %v542
    %vm553 = vcmp.eq.f32.partialorder %v552, 8.507059e+37
    %v554 = vand.u32 %v542, 2147483648
    %v555 = vor.u32 1.1754944e-38, %v554
    %v556 = vsel %vm553, %v555, %v551
    %v557 = vmul.f32 1.0, %v556
    %v558 = vmul.f32 %v537, 0.0
    %v559 = vmul.f32 %v518, %v538
    %v560 = vadd.f32 %v558, %v559
    %v561 = vtanh.pop %v560
    %v562 = vmul.f32 %v557, %v561
    %s563 = scalar_lea.vmem [#allocation2], 32
    %v564 = vld [vmem:[%s563] sm:$0xff]
    %v565 = vld [vmem:[%s563 + $0x8] sm:$0xff]
    %v566 = vld [vmem:[%s563 + $0x10] sm:$0xff]
    %v567 = vld [vmem:[%s563 + $0x18] sm:$0xff]
    %v568 = vpack.c.bf16 %v562, %v562
    %569 = vmatpush.bf16.msra.mxu0 %v408
    %570 = vmatpush.bf16.msra.mxu0 %v404
    %571 = vmatpush.bf16.msra.mxu0 %v400
    %572 = vmatpush.bf16.msra.mxu0 %v396
    %573 = vmatpush.bf16.msra.mxu0 %v392
    %574 = vmatpush.bf16.msra.mxu0 %v388
    %575 = vmatpush.bf16.msra.mxu0 %v384
    %576 = vmatpush.bf16.msra.mxu0 %v380
    %577 = vmatmul.bf16.gmra.mxu0 %v568
    %v578 = vpop.f32.mrf.mxu0
    %v579 = vadd.f32 0.0, %v578
    %v580 = vpop.f32.mrf.mxu0
    %581 = vdwg.mxu0
    %582 = vmatpush.bf16.msra.mxu0 %v409
    %583 = vmatpush.bf16.msra.mxu0 %v405
    %584 = vmatpush.bf16.msra.mxu0 %v401
    %585 = vmatpush.bf16.msra.mxu0 %v397
    %586 = vmatpush.bf16.msra.mxu0 %v393
    %587 = vmatpush.bf16.msra.mxu0 %v389
    %588 = vmatpush.bf16.msra.mxu0 %v385
    %589 = vmatpush.bf16.msra.mxu0 %v381
    %590 = vmatmul.bf16.gmra.mxu0 %v568
    %v591 = vpop.f32.mrf.mxu0
    %v592 = vadd.f32 0.0, %v591
    %v593 = vpop.f32.mrf.mxu0
    %594 = vdwg.mxu0
    %595 = vmatpush.bf16.msra.mxu0 %v410
    %596 = vmatpush.bf16.msra.mxu0 %v406
    %597 = vmatpush.bf16.msra.mxu0 %v402
    %598 = vmatpush.bf16.msra.mxu0 %v398
    %599 = vmatpush.bf16.msra.mxu0 %v394
    %600 = vmatpush.bf16.msra.mxu0 %v390
    %601 = vmatpush.bf16.msra.mxu0 %v386
    %602 = vmatpush.bf16.msra.mxu0 %v382
    %603 = vmatmul.bf16.gmra.mxu0 %v568
    %v604 = vpop.f32.mrf.mxu0
    %v605 = vadd.f32 0.0, %v604
    %v606 = vpop.f32.mrf.mxu0
    %607 = vdwg.mxu0
    %608 = vmatpush.bf16.msra.mxu0 %v411
    %609 = vmatpush.bf16.msra.mxu0 %v407
    %610 = vmatpush.bf16.msra.mxu0 %v403
    %611 = vmatpush.bf16.msra.mxu0 %v399
    %612 = vmatpush.bf16.msra.mxu0 %v395
    %613 = vmatpush.bf16.msra.mxu0 %v391
    %614 = vmatpush.bf16.msra.mxu0 %v387
    %615 = vmatpush.bf16.msra.mxu0 %v383
    %616 = vmatmul.bf16.gmra.mxu0 %v568
    %v617 = vpop.f32.mrf.mxu0
    %v618 = vadd.f32 0.0, %v617
    %v619 = vpop.f32.mrf.mxu0
    %620 = vdwg.mxu0
    %v621 = vadd.f32 %v564, %v579
    %v622 = vadd.f32 %v565, %v592
    %v623 = vadd.f32 %v566, %v605
    %v624 = vadd.f32 %v567, %v618
    %v625 = vxor.u32 %v621, 2147483648
    %v626 = vmul.f32 %v625, 1.442695
    %v627 = vpow.pop %v626
    %v628 = vadd.f32 %v627, 1.0
    %v629 = vrcp.pop %v628
    %v630 = vmul.f32 %v628, %v629
    %v631 = vsub.f32 1.0, %v630
    %v632 = vmul.f32 %v629, %v631
    %v633 = vadd.f32 %v629, %v632
    %vm634 = vweird.f32 %v628
    %vm635 = vweird.f32 %v629
    %vm636 = vmor %vm634, %vm635
    %v637 = vsel %vm636, %v629, %v633
    %v638 = vand.u32 2147483647, %v628
    %vm639 = vcmp.eq.f32.partialorder %v638, 8.507059e+37
    %v640 = vand.u32 %v628, 2147483648
    %v641 = vor.u32 1.1754944e-38, %v640
    %v642 = vsel %vm639, %v641, %v637
    %v643 = vmul.f32 1.0, %v642
    %v644 = vxor.u32 %v622, 2147483648
    %v645 = vmul.f32 %v644, 1.442695
    %v646 = vpow.pop %v645
    %v647 = vadd.f32 %v646, 1.0
    %v648 = vrcp.pop %v647
    %v649 = vmul.f32 %v647, %v648
    %v650 = vsub.f32 1.0, %v649
    %v651 = vmul.f32 %v648, %v650
    %v652 = vadd.f32 %v648, %v651
    %vm653 = vweird.f32 %v647
    %vm654 = vweird.f32 %v648
    %vm655 = vmor %vm653, %vm654
    %v656 = vsel %vm655, %v648, %v652
    %v657 = vand.u32 2147483647, %v647
    %vm658 = vcmp.eq.f32.partialorder %v657, 8.507059e+37
    %v659 = vand.u32 %v647, 2147483648
    %v660 = vor.u32 1.1754944e-38, %v659
    %v661 = vsel %vm658, %v660, %v656
    %v662 = vmul.f32 1.0, %v661
    %v663 = vtanh.pop %v623
    %v664 = vxor.u32 %v624, 2147483648
    %v665 = vmul.f32 %v664, 1.442695
    %v666 = vpow.pop %v665
    %v667 = vadd.f32 %v666, 1.0
    %v668 = vrcp.pop %v667
    %v669 = vmul.f32 %v667, %v668
    %v670 = vsub.f32 1.0, %v669
    %v671 = vmul.f32 %v668, %v670
    %v672 = vadd.f32 %v668, %v671
    %vm673 = vweird.f32 %v667
    %vm674 = vweird.f32 %v668
    %vm675 = vmor %vm673, %vm674
    %v676 = vsel %vm675, %v668, %v672
    %v677 = vand.u32 2147483647, %v667
    %vm678 = vcmp.eq.f32.partialorder %v677, 8.507059e+37
    %v679 = vand.u32 %v667, 2147483648
    %v680 = vor.u32 1.1754944e-38, %v679
    %v681 = vsel %vm678, %v680, %v676
    %v682 = vmul.f32 1.0, %v681
    %v683 = vmul.f32 %v662, %v560
    %v684 = vmul.f32 %v643, %v663
    %v685 = vadd.f32 %v683, %v684
    %v686 = vtanh.pop %v685
    %v687 = vmul.f32 %v682, %v686
    %v688 = vpack.c.bf16 0.0, 0.0
    %v689 = vld [vmem:[#allocation6] sm:$0xff]
    %v690 = vld [vmem:[#allocation6 + $0x8] sm:$0xff]
    %v691 = vld [vmem:[#allocation6 + $0x10] sm:$0xff]
    %v692 = vld [vmem:[#allocation6 + $0x18] sm:$0xff]
    %v693 = vld [vmem:[#allocation6 + $0x20] sm:$0xff]
    %v694 = vld [vmem:[#allocation6 + $0x28] sm:$0xff]
    %v695 = vld [vmem:[#allocation6 + $0x30] sm:$0xff]
    %v696 = vld [vmem:[#allocation6 + $0x38] sm:$0xff]
    %v697 = vld [vmem:[#allocation6 + $0x40] sm:$0xff]
    %v698 = vld [vmem:[#allocation6 + $0x48] sm:$0xff]
    %v699 = vld [vmem:[#allocation6 + $0x50] sm:$0xff]
    %v700 = vld [vmem:[#allocation6 + $0x58] sm:$0xff]
    %v701 = vld [vmem:[#allocation6 + $0x60] sm:$0xff]
    %v702 = vld [vmem:[#allocation6 + $0x68] sm:$0xff]
    %v703 = vld [vmem:[#allocation6 + $0x70] sm:$0xff]
    %v704 = vld [vmem:[#allocation6 + $0x78] sm:$0xff]
    %v705 = vld [vmem:[#allocation6 + $0x80] sm:$0xff]
    %v706 = vld [vmem:[#allocation6 + $0x88] sm:$0xff]
    %v707 = vld [vmem:[#allocation6 + $0x90] sm:$0xff]
    %v708 = vld [vmem:[#allocation6 + $0x98] sm:$0xff]
    %v709 = vld [vmem:[#allocation6 + $0xa0] sm:$0xff]
    %v710 = vld [vmem:[#allocation6 + $0xa8] sm:$0xff]
    %v711 = vld [vmem:[#allocation6 + $0xb0] sm:$0xff]
    %v712 = vld [vmem:[#allocation6 + $0xb8] sm:$0xff]
    %v713 = vld [vmem:[#allocation6 + $0xc0] sm:$0xff]
    %v714 = vld [vmem:[#allocation6 + $0xc8] sm:$0xff]
    %v715 = vld [vmem:[#allocation6 + $0xd0] sm:$0xff]
    %v716 = vld [vmem:[#allocation6 + $0xd8] sm:$0xff]
    %v717 = vld [vmem:[#allocation6 + $0xe0] sm:$0xff]
    %v718 = vld [vmem:[#allocation6 + $0xe8] sm:$0xff]
    %v719 = vld [vmem:[#allocation6 + $0xf0] sm:$0xff]
    %v720 = vld [vmem:[#allocation6 + $0xf8] sm:$0xff]
    %v721 = vld [vmem:[#allocation6 + $0x100] sm:$0xff]
    %v722 = vld [vmem:[#allocation6 + $0x108] sm:$0xff]
    %v723 = vld [vmem:[#allocation6 + $0x110] sm:$0xff]
    %v724 = vld [vmem:[#allocation6 + $0x118] sm:$0xff]
    %v725 = vld [vmem:[#allocation6 + $0x120] sm:$0xff]
    %v726 = vld [vmem:[#allocation6 + $0x128] sm:$0xff]
    %v727 = vld [vmem:[#allocation6 + $0x130] sm:$0xff]
    %v728 = vld [vmem:[#allocation6 + $0x138] sm:$0xff]
    %v729 = vld [vmem:[#allocation6 + $0x140] sm:$0xff]
    %v730 = vld [vmem:[#allocation6 + $0x148] sm:$0xff]
    %v731 = vld [vmem:[#allocation6 + $0x150] sm:$0xff]
    %v732 = vld [vmem:[#allocation6 + $0x158] sm:$0xff]
    %v733 = vld [vmem:[#allocation6 + $0x160] sm:$0xff]
    %v734 = vld [vmem:[#allocation6 + $0x168] sm:$0xff]
    %v735 = vld [vmem:[#allocation6 + $0x170] sm:$0xff]
    %v736 = vld [vmem:[#allocation6 + $0x178] sm:$0xff]
    %v737 = vld [vmem:[#allocation6 + $0x180] sm:$0xff]
    %v738 = vld [vmem:[#allocation6 + $0x188] sm:$0xff]
    %v739 = vld [vmem:[#allocation6 + $0x190] sm:$0xff]
    %v740 = vld [vmem:[#allocation6 + $0x198] sm:$0xff]
    %v741 = vld [vmem:[#allocation6 + $0x1a0] sm:$0xff]
    %v742 = vld [vmem:[#allocation6 + $0x1a8] sm:$0xff]
    %v743 = vld [vmem:[#allocation6 + $0x1b0] sm:$0xff]
    %v744 = vld [vmem:[#allocation6 + $0x1b8] sm:$0xff]
    %v745 = vld [vmem:[#allocation6 + $0x1c0] sm:$0xff]
    %v746 = vld [vmem:[#allocation6 + $0x1c8] sm:$0xff]
    %v747 = vld [vmem:[#allocation6 + $0x1d0] sm:$0xff]
    %v748 = vld [vmem:[#allocation6 + $0x1d8] sm:$0xff]
    %v749 = vld [vmem:[#allocation6 + $0x1e0] sm:$0xff]
    %v750 = vld [vmem:[#allocation6 + $0x1e8] sm:$0xff]
    %v751 = vld [vmem:[#allocation6 + $0x1f0] sm:$0xff]
    %v752 = vld [vmem:[#allocation6 + $0x1f8] sm:$0xff]
    %v753 = vld [vmem:[%s5] sm:$0xf]
    %v755 = vperm.slane %v753, 0
    %v756 = vperm.slane %v753, 1
    %v757 = vperm.slane %v753, 2
    %v758 = vperm.slane %v753, 3
    %v827 = vunpack.c.l.b16 %v689
    %v828 = vunpack.c.h.b16 %v689
    %v829 = vunpack.c.l.b16 %v690
    %v830 = vunpack.c.h.b16 %v690
    %v831 = vunpack.c.l.b16 %v691
    %v832 = vunpack.c.h.b16 %v691
    %v833 = vunpack.c.l.b16 %v692
    %v834 = vunpack.c.h.b16 %v692
    %v835 = vunpack.c.l.b16 %v693
    %v836 = vunpack.c.h.b16 %v693
    %v837 = vunpack.c.l.b16 %v694
    %v838 = vunpack.c.h.b16 %v694
    %v839 = vunpack.c.l.b16 %v695
    %v840 = vunpack.c.h.b16 %v695
    %v841 = vunpack.c.l.b16 %v696
    %v842 = vunpack.c.h.b16 %v696
    %v843 = vunpack.c.l.b16 %v697
    %v844 = vunpack.c.h.b16 %v697
    %v845 = vunpack.c.l.b16 %v698
    %v846 = vunpack.c.h.b16 %v698
    %v847 = vunpack.c.l.b16 %v699
    %v848 = vunpack.c.h.b16 %v699
    %v849 = vunpack.c.l.b16 %v700
    %v850 = vunpack.c.h.b16 %v700
    %v851 = vunpack.c.l.b16 %v701
    %v852 = vunpack.c.h.b16 %v701
    %v853 = vunpack.c.l.b16 %v702
    %v854 = vunpack.c.h.b16 %v702
    %v855 = vunpack.c.l.b16 %v703
    %v856 = vunpack.c.h.b16 %v703
    %v857 = vunpack.c.l.b16 %v704
    %v858 = vunpack.c.h.b16 %v704
    %v859 = vunpack.c.l.b16 %v705
    %v860 = vunpack.c.h.b16 %v705
    %v861 = vunpack.c.l.b16 %v706
    %v862 = vunpack.c.h.b16 %v706
    %v863 = vunpack.c.l.b16 %v707
    %v864 = vunpack.c.h.b16 %v707
    %v865 = vunpack.c.l.b16 %v708
    %v866 = vunpack.c.h.b16 %v708
    %v867 = vunpack.c.l.b16 %v709
    %v868 = vunpack.c.h.b16 %v709
    %v869 = vunpack.c.l.b16 %v710
    %v870 = vunpack.c.h.b16 %v710
    %v871 = vunpack.c.l.b16 %v711
    %v872 = vunpack.c.h.b16 %v711
    %v873 = vunpack.c.l.b16 %v712
    %v874 = vunpack.c.h.b16 %v712
    %v875 = vunpack.c.l.b16 %v713
    %v876 = vunpack.c.h.b16 %v713
    %v877 = vunpack.c.l.b16 %v714
    %v878 = vunpack.c.h.b16 %v714
    %v879 = vunpack.c.l.b16 %v715
    %v880 = vunpack.c.h.b16 %v715
    %v881 = vunpack.c.l.b16 %v716
    %v882 = vunpack.c.h.b16 %v716
    %v883 = vunpack.c.l.b16 %v717
    %v884 = vunpack.c.h.b16 %v717
    %v885 = vunpack.c.l.b16 %v718
    %v886 = vunpack.c.h.b16 %v718
    %v887 = vunpack.c.l.b16 %v719
    %v888 = vunpack.c.h.b16 %v719
    %v889 = vunpack.c.l.b16 %v720
    %v890 = vunpack.c.h.b16 %v720
    %v891 = vunpack.c.l.b16 %v721
    %v892 = vunpack.c.h.b16 %v721
    %v893 = vunpack.c.l.b16 %v722
    %v894 = vunpack.c.h.b16 %v722
    %v895 = vunpack.c.l.b16 %v723
    %v896 = vunpack.c.h.b16 %v723
    %v897 = vunpack.c.l.b16 %v724
    %v898 = vunpack.c.h.b16 %v724
    %v899 = vunpack.c.l.b16 %v725
    %v900 = vunpack.c.h.b16 %v725
    %v901 = vunpack.c.l.b16 %v726
    %v902 = vunpack.c.h.b16 %v726
    %v903 = vunpack.c.l.b16 %v727
    %v904 = vunpack.c.h.b16 %v727
    %v905 = vunpack.c.l.b16 %v728
    %v906 = vunpack.c.h.b16 %v728
    %v907 = vunpack.c.l.b16 %v729
    %v908 = vunpack.c.h.b16 %v729
    %v909 = vunpack.c.l.b16 %v730
    %v910 = vunpack.c.h.b16 %v730
    %v911 = vunpack.c.l.b16 %v731
    %v912 = vunpack.c.h.b16 %v731
    %v913 = vunpack.c.l.b16 %v732
    %v914 = vunpack.c.h.b16 %v732
    %v915 = vunpack.c.l.b16 %v733
    %v916 = vunpack.c.h.b16 %v733
    %v917 = vunpack.c.l.b16 %v734
    %v918 = vunpack.c.h.b16 %v734
    %v919 = vunpack.c.l.b16 %v735
    %v920 = vunpack.c.h.b16 %v735
    %v921 = vunpack.c.l.b16 %v736
    %v922 = vunpack.c.h.b16 %v736
    %v923 = vunpack.c.l.b16 %v737
    %v924 = vunpack.c.h.b16 %v737
    %v925 = vunpack.c.l.b16 %v738
    %v926 = vunpack.c.h.b16 %v738
    %v927 = vunpack.c.l.b16 %v739
    %v928 = vunpack.c.h.b16 %v739
    %v929 = vunpack.c.l.b16 %v740
    %v930 = vunpack.c.h.b16 %v740
    %v931 = vunpack.c.l.b16 %v741
    %v932 = vunpack.c.h.b16 %v741
    %v933 = vunpack.c.l.b16 %v742
    %v934 = vunpack.c.h.b16 %v742
    %v935 = vunpack.c.l.b16 %v743
    %v936 = vunpack.c.h.b16 %v743
    %v937 = vunpack.c.l.b16 %v744
    %v938 = vunpack.c.h.b16 %v744
    %v939 = vunpack.c.l.b16 %v745
    %v940 = vunpack.c.h.b16 %v745
    %v941 = vunpack.c.l.b16 %v746
    %v942 = vunpack.c.h.b16 %v746
    %v943 = vunpack.c.l.b16 %v747
    %v944 = vunpack.c.h.b16 %v747
    %v945 = vunpack.c.l.b16 %v748
    %v946 = vunpack.c.h.b16 %v748
    %v947 = vunpack.c.l.b16 %v749
    %v948 = vunpack.c.h.b16 %v749
    %v949 = vunpack.c.l.b16 %v750
    %v950 = vunpack.c.h.b16 %v750
    %v951 = vunpack.c.l.b16 %v751
    %v952 = vunpack.c.h.b16 %v751
    %v953 = vunpack.c.l.b16 %v752
    %v954 = vunpack.c.h.b16 %v752
    %v955 = vpack.c.b16 %v831, %v827
    %v956 = vpack.c.b16 %v832, %v828
    %v957 = vpack.c.b16 %v833, %v829
    %v958 = vpack.c.b16 %v834, %v830
    %v959 = vpack.c.b16 %v839, %v835
    %v960 = vpack.c.b16 %v840, %v836
    %v961 = vpack.c.b16 %v841, %v837
    %v962 = vpack.c.b16 %v842, %v838
    %v963 = vpack.c.b16 %v847, %v843
    %v964 = vpack.c.b16 %v848, %v844
    %v965 = vpack.c.b16 %v849, %v845
    %v966 = vpack.c.b16 %v850, %v846
    %v967 = vpack.c.b16 %v855, %v851
    %v968 = vpack.c.b16 %v856, %v852
    %v969 = vpack.c.b16 %v857, %v853
    %v970 = vpack.c.b16 %v858, %v854
    %v971 = vpack.c.b16 %v863, %v859
    %v972 = vpack.c.b16 %v864, %v860
    %v973 = vpack.c.b16 %v865, %v861
    %v974 = vpack.c.b16 %v866, %v862
    %v975 = vpack.c.b16 %v871, %v867
    %v976 = vpack.c.b16 %v872, %v868
    %v977 = vpack.c.b16 %v873, %v869
    %v978 = vpack.c.b16 %v874, %v870
    %v979 = vpack.c.b16 %v879, %v875
    %v980 = vpack.c.b16 %v880, %v876
    %v981 = vpack.c.b16 %v881, %v877
    %v982 = vpack.c.b16 %v882, %v878
    %v983 = vpack.c.b16 %v887, %v883
    %v984 = vpack.c.b16 %v888, %v884
    %v985 = vpack.c.b16 %v889, %v885
    %v986 = vpack.c.b16 %v890, %v886
    %v987 = vpack.c.b16 %v895, %v891
    %v988 = vpack.c.b16 %v896, %v892
    %v989 = vpack.c.b16 %v897, %v893
    %v990 = vpack.c.b16 %v898, %v894
    %v991 = vpack.c.b16 %v903, %v899
    %v992 = vpack.c.b16 %v904, %v900
    %v993 = vpack.c.b16 %v905, %v901
    %v994 = vpack.c.b16 %v906, %v902
    %v995 = vpack.c.b16 %v911, %v907
    %v996 = vpack.c.b16 %v912, %v908
    %v997 = vpack.c.b16 %v913, %v909
    %v998 = vpack.c.b16 %v914, %v910
    %v999 = vpack.c.b16 %v919, %v915
    %v1000 = vpack.c.b16 %v920, %v916
    %v1001 = vpack.c.b16 %v921, %v917
    %v1002 = vpack.c.b16 %v922, %v918
    %v1003 = vpack.c.b16 %v927, %v923
    %v1004 = vpack.c.b16 %v928, %v924
    %v1005 = vpack.c.b16 %v929, %v925
    %v1006 = vpack.c.b16 %v930, %v926
    %v1007 = vpack.c.b16 %v935, %v931
    %v1008 = vpack.c.b16 %v936, %v932
    %v1009 = vpack.c.b16 %v937, %v933
    %v1010 = vpack.c.b16 %v938, %v934
    %v1011 = vpack.c.b16 %v943, %v939
    %v1012 = vpack.c.b16 %v944, %v940
    %v1013 = vpack.c.b16 %v945, %v941
    %v1014 = vpack.c.b16 %v946, %v942
    %v1015 = vpack.c.b16 %v951, %v947
    %v1016 = vpack.c.b16 %v952, %v948
    %v1017 = vpack.c.b16 %v953, %v949
    %v1018 = vpack.c.b16 %v954, %v950
    %1083 = vmatpush.bf16.msra.mxu0 %v983
    %1084 = vmatpush.bf16.msra.mxu0 %v979
    %1085 = vmatpush.bf16.msra.mxu0 %v975
    %1086 = vmatpush.bf16.msra.mxu0 %v971
    %1087 = vmatpush.bf16.msra.mxu0 %v967
    %1088 = vmatpush.bf16.msra.mxu0 %v963
    %1089 = vmatpush.bf16.msra.mxu0 %v959
    %1090 = vmatpush.bf16.msra.mxu0 %v955
    %1091 = vmatmul.bf16.gmra.mxu0 %v568
    %v1092 = vpop.f32.mrf.mxu0
    %v1093 = vadd.f32 %v755, %v1092
    %v1094 = vpop.f32.mrf.mxu0
    %1095 = vdwg.mxu0
    %1096 = vmatpush.bf16.msra.mxu0 %v1015
    %1097 = vmatpush.bf16.msra.mxu0 %v1011
    %1098 = vmatpush.bf16.msra.mxu0 %v1007
    %1099 = vmatpush.bf16.msra.mxu0 %v1003
    %1100 = vmatpush.bf16.msra.mxu0 %v999
    %1101 = vmatpush.bf16.msra.mxu0 %v995
    %1102 = vmatpush.bf16.msra.mxu0 %v991
    %1103 = vmatpush.bf16.msra.mxu0 %v987
    %1104 = vmatmul.bf16.gmra.mxu0 %v688
    %v1105 = vpop.f32.mrf.mxu0
    %v1106 = vadd.f32 %v1093, %v1105
    %v1107 = vpop.f32.mrf.mxu0
    %1108 = vdwg.mxu0
    %1109 = vmatpush.bf16.msra.mxu0 %v984
    %1110 = vmatpush.bf16.msra.mxu0 %v980
    %1111 = vmatpush.bf16.msra.mxu0 %v976
    %1112 = vmatpush.bf16.msra.mxu0 %v972
    %1113 = vmatpush.bf16.msra.mxu0 %v968
    %1114 = vmatpush.bf16.msra.mxu0 %v964
    %1115 = vmatpush.bf16.msra.mxu0 %v960
    %1116 = vmatpush.bf16.msra.mxu0 %v956
    %1117 = vmatmul.bf16.gmra.mxu0 %v568
    %v1118 = vpop.f32.mrf.mxu0
    %v1119 = vadd.f32 %v756, %v1118
    %v1120 = vpop.f32.mrf.mxu0
    %1121 = vdwg.mxu0
    %1122 = vmatpush.bf16.msra.mxu0 %v1016
    %1123 = vmatpush.bf16.msra.mxu0 %v1012
    %1124 = vmatpush.bf16.msra.mxu0 %v1008
    %1125 = vmatpush.bf16.msra.mxu0 %v1004
    %1126 = vmatpush.bf16.msra.mxu0 %v1000
    %1127 = vmatpush.bf16.msra.mxu0 %v996
    %1128 = vmatpush.bf16.msra.mxu0 %v992
    %1129 = vmatpush.bf16.msra.mxu0 %v988
    %1130 = vmatmul.bf16.gmra.mxu0 %v688
    %v1131 = vpop.f32.mrf.mxu0
    %v1132 = vadd.f32 %v1119, %v1131
    %v1133 = vpop.f32.mrf.mxu0
    %1134 = vdwg.mxu0
    %1135 = vmatpush.bf16.msra.mxu0 %v985
    %1136 = vmatpush.bf16.msra.mxu0 %v981
    %1137 = vmatpush.bf16.msra.mxu0 %v977
    %1138 = vmatpush.bf16.msra.mxu0 %v973
    %1139 = vmatpush.bf16.msra.mxu0 %v969
    %1140 = vmatpush.bf16.msra.mxu0 %v965
    %1141 = vmatpush.bf16.msra.mxu0 %v961
    %1142 = vmatpush.bf16.msra.mxu0 %v957
    %1143 = vmatmul.bf16.gmra.mxu0 %v568
    %v1144 = vpop.f32.mrf.mxu0
    %v1145 = vadd.f32 %v757, %v1144
    %v1146 = vpop.f32.mrf.mxu0
    %1147 = vdwg.mxu0
    %1148 = vmatpush.bf16.msra.mxu0 %v1017
    %1149 = vmatpush.bf16.msra.mxu0 %v1013
    %1150 = vmatpush.bf16.msra.mxu0 %v1009
    %1151 = vmatpush.bf16.msra.mxu0 %v1005
    %1152 = vmatpush.bf16.msra.mxu0 %v1001
    %1153 = vmatpush.bf16.msra.mxu0 %v997
    %1154 = vmatpush.bf16.msra.mxu0 %v993
    %1155 = vmatpush.bf16.msra.mxu0 %v989
    %1156 = vmatmul.bf16.gmra.mxu0 %v688
    %v1157 = vpop.f32.mrf.mxu0
    %v1158 = vadd.f32 %v1145, %v1157
    %v1159 = vpop.f32.mrf.mxu0
    %1160 = vdwg.mxu0
    %1161 = vmatpush.bf16.msra.mxu0 %v986
    %1162 = vmatpush.bf16.msra.mxu0 %v982
    %1163 = vmatpush.bf16.msra.mxu0 %v978
    %1164 = vmatpush.bf16.msra.mxu0 %v974
    %1165 = vmatpush.bf16.msra.mxu0 %v970
    %1166 = vmatpush.bf16.msra.mxu0 %v966
    %1167 = vmatpush.bf16.msra.mxu0 %v962
    %1168 = vmatpush.bf16.msra.mxu0 %v958
    %1169 = vmatmul.bf16.gmra.mxu0 %v568
    %v1170 = vpop.f32.mrf.mxu0
    %v1171 = vadd.f32 %v758, %v1170
    %v1172 = vpop.f32.mrf.mxu0
    %1173 = vdwg.mxu0
    %1174 = vmatpush.bf16.msra.mxu0 %v1018
    %1175 = vmatpush.bf16.msra.mxu0 %v1014
    %1176 = vmatpush.bf16.msra.mxu0 %v1010
    %1177 = vmatpush.bf16.msra.mxu0 %v1006
    %1178 = vmatpush.bf16.msra.mxu0 %v1002
    %1179 = vmatpush.bf16.msra.mxu0 %v998
    %1180 = vmatpush.bf16.msra.mxu0 %v994
    %1181 = vmatpush.bf16.msra.mxu0 %v990
    %1182 = vmatmul.bf16.gmra.mxu0 %v688
    %v1183 = vpop.f32.mrf.mxu0
    %v1184 = vadd.f32 %v1171, %v1183
    %v1185 = vpop.f32.mrf.mxu0
    %1186 = vdwg.mxu0
    %v1187 = vxor.u32 %v1106, 2147483648
    %v1188 = vmul.f32 %v1187, 1.442695
    %v1189 = vpow.pop %v1188
    %v1190 = vadd.f32 %v1189, 1.0
    %v1191 = vrcp.pop %v1190
    %v1192 = vmul.f32 %v1190, %v1191
    %v1193 = vsub.f32 1.0, %v1192
    %v1194 = vmul.f32 %v1191, %v1193
    %v1195 = vadd.f32 %v1191, %v1194
    %vm1196 = vweird.f32 %v1190
    %vm1197 = vweird.f32 %v1191
    %vm1198 = vmor %vm1196, %vm1197
    %v1199 = vsel %vm1198, %v1191, %v1195
    %v1200 = vand.u32 2147483647, %v1190
    %vm1201 = vcmp.eq.f32.partialorder %v1200, 8.507059e+37
    %v1202 = vand.u32 %v1190, 2147483648
    %v1203 = vor.u32 1.1754944e-38, %v1202
    %v1204 = vsel %vm1201, %v1203, %v1199
    %v1205 = vmul.f32 1.0, %v1204
    %v1206 = vxor.u32 %v1132, 2147483648
    %v1207 = vmul.f32 %v1206, 1.442695
    %v1208 = vpow.pop %v1207
    %v1209 = vadd.f32 %v1208, 1.0
    %v1210 = vrcp.pop %v1209
    %v1211 = vmul.f32 %v1209, %v1210
    %v1212 = vsub.f32 1.0, %v1211
    %v1213 = vmul.f32 %v1210, %v1212
    %v1214 = vadd.f32 %v1210, %v1213
    %vm1215 = vweird.f32 %v1209
    %vm1216 = vweird.f32 %v1210
    %vm1217 = vmor %vm1215, %vm1216
    %v1218 = vsel %vm1217, %v1210, %v1214
    %v1219 = vand.u32 2147483647, %v1209
    %vm1220 = vcmp.eq.f32.partialorder %v1219, 8.507059e+37
    %v1221 = vand.u32 %v1209, 2147483648
    %v1222 = vor.u32 1.1754944e-38, %v1221
    %v1223 = vsel %vm1220, %v1222, %v1218
    %v1224 = vmul.f32 1.0, %v1223
    %v1225 = vtanh.pop %v1158
    %v1226 = vxor.u32 %v1184, 2147483648
    %v1227 = vmul.f32 %v1226, 1.442695
    %v1228 = vpow.pop %v1227
    %v1229 = vadd.f32 %v1228, 1.0
    %v1230 = vrcp.pop %v1229
    %v1231 = vmul.f32 %v1229, %v1230
    %v1232 = vsub.f32 1.0, %v1231
    %v1233 = vmul.f32 %v1230, %v1232
    %v1234 = vadd.f32 %v1230, %v1233
    %vm1235 = vweird.f32 %v1229
    %vm1236 = vweird.f32 %v1230
    %vm1237 = vmor %vm1235, %vm1236
    %v1238 = vsel %vm1237, %v1230, %v1234
    %v1239 = vand.u32 2147483647, %v1229
    %vm1240 = vcmp.eq.f32.partialorder %v1239, 8.507059e+37
    %v1241 = vand.u32 %v1229, 2147483648
    %v1242 = vor.u32 1.1754944e-38, %v1241
    %v1243 = vsel %vm1240, %v1242, %v1238
    %v1244 = vmul.f32 1.0, %v1243
    %v1245 = vmul.f32 %v1224, 0.0
    %v1246 = vmul.f32 %v1205, %v1225
    %v1247 = vadd.f32 %v1245, %v1246
    %v1248 = vtanh.pop %v1247
    %v1249 = vmul.f32 %v1244, %v1248
    %s1250 = scalar_lea.vmem [#allocation2], 64
    %v1251 = vld [vmem:[%s1250] sm:$0xff]
    %v1252 = vld [vmem:[%s1250 + $0x8] sm:$0xff]
    %v1253 = vld [vmem:[%s1250 + $0x10] sm:$0xff]
    %v1254 = vld [vmem:[%s1250 + $0x18] sm:$0xff]
    %v1255 = vpack.c.bf16 %v687, %v687
    %1256 = vmatpush.bf16.msra.mxu0 %v408
    %1257 = vmatpush.bf16.msra.mxu0 %v404
    %1258 = vmatpush.bf16.msra.mxu0 %v400
    %1259 = vmatpush.bf16.msra.mxu0 %v396
    %1260 = vmatpush.bf16.msra.mxu0 %v392
    %1261 = vmatpush.bf16.msra.mxu0 %v388
    %1262 = vmatpush.bf16.msra.mxu0 %v384
    %1263 = vmatpush.bf16.msra.mxu0 %v380
    %1264 = vmatmul.bf16.gmra.mxu0 %v1255
    %v1265 = vpop.f32.mrf.mxu0
    %v1266 = vadd.f32 0.0, %v1265
    %v1267 = vpop.f32.mrf.mxu0
    %1268 = vdwg.mxu0
    %1269 = vmatpush.bf16.msra.mxu0 %v409
    %1270 = vmatpush.bf16.msra.mxu0 %v405
    %1271 = vmatpush.bf16.msra.mxu0 %v401
    %1272 = vmatpush.bf16.msra.mxu0 %v397
    %1273 = vmatpush.bf16.msra.mxu0 %v393
    %1274 = vmatpush.bf16.msra.mxu0 %v389
    %1275 = vmatpush.bf16.msra.mxu0 %v385
    %1276 = vmatpush.bf16.msra.mxu0 %v381
    %1277 = vmatmul.bf16.gmra.mxu0 %v1255
    %v1278 = vpop.f32.mrf.mxu0
    %v1279 = vadd.f32 0.0, %v1278
    %v1280 = vpop.f32.mrf.mxu0
    %1281 = vdwg.mxu0
    %1282 = vmatpush.bf16.msra.mxu0 %v410
    %1283 = vmatpush.bf16.msra.mxu0 %v406
    %1284 = vmatpush.bf16.msra.mxu0 %v402
    %1285 = vmatpush.bf16.msra.mxu0 %v398
    %1286 = vmatpush.bf16.msra.mxu0 %v394
    %1287 = vmatpush.bf16.msra.mxu0 %v390
    %1288 = vmatpush.bf16.msra.mxu0 %v386
    %1289 = vmatpush.bf16.msra.mxu0 %v382
    %1290 = vmatmul.bf16.gmra.mxu0 %v1255
    %v1291 = vpop.f32.mrf.mxu0
    %v1292 = vadd.f32 0.0, %v1291
    %v1293 = vpop.f32.mrf.mxu0
    %1294 = vdwg.mxu0
    %1295 = vmatpush.bf16.msra.mxu0 %v411
    %1296 = vmatpush.bf16.msra.mxu0 %v407
    %1297 = vmatpush.bf16.msra.mxu0 %v403
    %1298 = vmatpush.bf16.msra.mxu0 %v399
    %1299 = vmatpush.bf16.msra.mxu0 %v395
    %1300 = vmatpush.bf16.msra.mxu0 %v391
    %1301 = vmatpush.bf16.msra.mxu0 %v387
    %1302 = vmatpush.bf16.msra.mxu0 %v383
    %1303 = vmatmul.bf16.gmra.mxu0 %v1255
    %v1304 = vpop.f32.mrf.mxu0
    %v1305 = vadd.f32 0.0, %v1304
    %v1306 = vpop.f32.mrf.mxu0
    %1307 = vdwg.mxu0
    %v1308 = vadd.f32 %v1251, %v1266
    %v1309 = vadd.f32 %v1252, %v1279
    %v1310 = vadd.f32 %v1253, %v1292
    %v1311 = vadd.f32 %v1254, %v1305
    %v1312 = vxor.u32 %v1308, 2147483648
    %v1313 = vmul.f32 %v1312, 1.442695
    %v1314 = vpow.pop %v1313
    %v1315 = vadd.f32 %v1314, 1.0
    %v1316 = vrcp.pop %v1315
    %v1317 = vmul.f32 %v1315, %v1316
    %v1318 = vsub.f32 1.0, %v1317
    %v1319 = vmul.f32 %v1316, %v1318
    %v1320 = vadd.f32 %v1316, %v1319
    %vm1321 = vweird.f32 %v1315
    %vm1322 = vweird.f32 %v1316
    %vm1323 = vmor %vm1321, %vm1322
    %v1324 = vsel %vm1323, %v1316, %v1320
    %v1325 = vand.u32 2147483647, %v1315
    %vm1326 = vcmp.eq.f32.partialorder %v1325, 8.507059e+37
    %v1327 = vand.u32 %v1315, 2147483648
    %v1328 = vor.u32 1.1754944e-38, %v1327
    %v1329 = vsel %vm1326, %v1328, %v1324
    %v1330 = vmul.f32 1.0, %v1329
    %v1331 = vxor.u32 %v1309, 2147483648
    %v1332 = vmul.f32 %v1331, 1.442695
    %v1333 = vpow.pop %v1332
    %v1334 = vadd.f32 %v1333, 1.0
    %v1335 = vrcp.pop %v1334
    %v1336 = vmul.f32 %v1334, %v1335
    %v1337 = vsub.f32 1.0, %v1336
    %v1338 = vmul.f32 %v1335, %v1337
    %v1339 = vadd.f32 %v1335, %v1338
    %vm1340 = vweird.f32 %v1334
    %vm1341 = vweird.f32 %v1335
    %vm1342 = vmor %vm1340, %vm1341
    %v1343 = vsel %vm1342, %v1335, %v1339
    %v1344 = vand.u32 2147483647, %v1334
    %vm1345 = vcmp.eq.f32.partialorder %v1344, 8.507059e+37
    %v1346 = vand.u32 %v1334, 2147483648
    %v1347 = vor.u32 1.1754944e-38, %v1346
    %v1348 = vsel %vm1345, %v1347, %v1343
    %v1349 = vmul.f32 1.0, %v1348
    %v1350 = vtanh.pop %v1310
    %v1351 = vxor.u32 %v1311, 2147483648
    %v1352 = vmul.f32 %v1351, 1.442695
    %v1353 = vpow.pop %v1352
    %v1354 = vadd.f32 %v1353, 1.0
    %v1355 = vrcp.pop %v1354
    %v1356 = vmul.f32 %v1354, %v1355
    %v1357 = vsub.f32 1.0, %v1356
    %v1358 = vmul.f32 %v1355, %v1357
    %v1359 = vadd.f32 %v1355, %v1358
    %vm1360 = vweird.f32 %v1354
    %vm1361 = vweird.f32 %v1355
    %vm1362 = vmor %vm1360, %vm1361
    %v1363 = vsel %vm1362, %v1355, %v1359
    %v1364 = vand.u32 2147483647, %v1354
    %vm1365 = vcmp.eq.f32.partialorder %v1364, 8.507059e+37
    %v1366 = vand.u32 %v1354, 2147483648
    %v1367 = vor.u32 1.1754944e-38, %v1366
    %v1368 = vsel %vm1365, %v1367, %v1363
    %v1369 = vmul.f32 1.0, %v1368
    %v1370 = vmul.f32 %v1349, %v685
    %v1371 = vmul.f32 %v1330, %v1350
    %v1372 = vadd.f32 %v1370, %v1371
    %v1373 = vtanh.pop %v1372
    %v1374 = vmul.f32 %v1369, %v1373
    %v1375 = vpack.c.bf16 %v1249, %v1249
    %1376 = vmatpush.bf16.msra.mxu0 %v983
    %1377 = vmatpush.bf16.msra.mxu0 %v979
    %1378 = vmatpush.bf16.msra.mxu0 %v975
    %1379 = vmatpush.bf16.msra.mxu0 %v971
    %1380 = vmatpush.bf16.msra.mxu0 %v967
    %1381 = vmatpush.bf16.msra.mxu0 %v963
    %1382 = vmatpush.bf16.msra.mxu0 %v959
    %1383 = vmatpush.bf16.msra.mxu0 %v955
    %1384 = vmatmul.bf16.gmra.mxu0 %v1255
    %v1385 = vpop.f32.mrf.mxu0
    %v1386 = vadd.f32 %v755, %v1385
    %v1387 = vpop.f32.mrf.mxu0
    %1388 = vdwg.mxu0
    %1389 = vmatpush.bf16.msra.mxu0 %v1015
    %1390 = vmatpush.bf16.msra.mxu0 %v1011
    %1391 = vmatpush.bf16.msra.mxu0 %v1007
    %1392 = vmatpush.bf16.msra.mxu0 %v1003
    %1393 = vmatpush.bf16.msra.mxu0 %v999
    %1394 = vmatpush.bf16.msra.mxu0 %v995
    %1395 = vmatpush.bf16.msra.mxu0 %v991
    %1396 = vmatpush.bf16.msra.mxu0 %v987
    %1397 = vmatmul.bf16.gmra.mxu0 %v1375
    %v1398 = vpop.f32.mrf.mxu0
    %v1399 = vadd.f32 %v1386, %v1398
    %v1400 = vpop.f32.mrf.mxu0
    %1401 = vdwg.mxu0
    %1402 = vmatpush.bf16.msra.mxu0 %v984
    %1403 = vmatpush.bf16.msra.mxu0 %v980
    %1404 = vmatpush.bf16.msra.mxu0 %v976
    %1405 = vmatpush.bf16.msra.mxu0 %v972
    %1406 = vmatpush.bf16.msra.mxu0 %v968
    %1407 = vmatpush.bf16.msra.mxu0 %v964
    %1408 = vmatpush.bf16.msra.mxu0 %v960
    %1409 = vmatpush.bf16.msra.mxu0 %v956
    %1410 = vmatmul.bf16.gmra.mxu0 %v1255
    %v1411 = vpop.f32.mrf.mxu0
    %v1412 = vadd.f32 %v756, %v1411
    %v1413 = vpop.f32.mrf.mxu0
    %1414 = vdwg.mxu0
    %1415 = vmatpush.bf16.msra.mxu0 %v1016
    %1416 = vmatpush.bf16.msra.mxu0 %v1012
    %1417 = vmatpush.bf16.msra.mxu0 %v1008
    %1418 = vmatpush.bf16.msra.mxu0 %v1004
    %1419 = vmatpush.bf16.msra.mxu0 %v1000
    %1420 = vmatpush.bf16.msra.mxu0 %v996
    %1421 = vmatpush.bf16.msra.mxu0 %v992
    %1422 = vmatpush.bf16.msra.mxu0 %v988
    %1423 = vmatmul.bf16.gmra.mxu0 %v1375
    %v1424 = vpop.f32.mrf.mxu0
    %v1425 = vadd.f32 %v1412, %v1424
    %v1426 = vpop.f32.mrf.mxu0
    %1427 = vdwg.mxu0
    %1428 = vmatpush.bf16.msra.mxu0 %v985
    %1429 = vmatpush.bf16.msra.mxu0 %v981
    %1430 = vmatpush.bf16.msra.mxu0 %v977
    %1431 = vmatpush.bf16.msra.mxu0 %v973
    %1432 = vmatpush.bf16.msra.mxu0 %v969
    %1433 = vmatpush.bf16.msra.mxu0 %v965
    %1434 = vmatpush.bf16.msra.mxu0 %v961
    %1435 = vmatpush.bf16.msra.mxu0 %v957
    %1436 = vmatmul.bf16.gmra.mxu0 %v1255
    %v1437 = vpop.f32.mrf.mxu0
    %v1438 = vadd.f32 %v757, %v1437
    %v1439 = vpop.f32.mrf.mxu0
    %1440 = vdwg.mxu0
    %1441 = vmatpush.bf16.msra.mxu0 %v1017
    %1442 = vmatpush.bf16.msra.mxu0 %v1013
    %1443 = vmatpush.bf16.msra.mxu0 %v1009
    %1444 = vmatpush.bf16.msra.mxu0 %v1005
    %1445 = vmatpush.bf16.msra.mxu0 %v1001
    %1446 = vmatpush.bf16.msra.mxu0 %v997
    %1447 = vmatpush.bf16.msra.mxu0 %v993
    %1448 = vmatpush.bf16.msra.mxu0 %v989
    %1449 = vmatmul.bf16.gmra.mxu0 %v1375
    %v1450 = vpop.f32.mrf.mxu0
    %v1451 = vadd.f32 %v1438, %v1450
    %v1452 = vpop.f32.mrf.mxu0
    %1453 = vdwg.mxu0
    %1454 = vmatpush.bf16.msra.mxu0 %v986
    %1455 = vmatpush.bf16.msra.mxu0 %v982
    %1456 = vmatpush.bf16.msra.mxu0 %v978
    %1457 = vmatpush.bf16.msra.mxu0 %v974
    %1458 = vmatpush.bf16.msra.mxu0 %v970
    %1459 = vmatpush.bf16.msra.mxu0 %v966
    %1460 = vmatpush.bf16.msra.mxu0 %v962
    %1461 = vmatpush.bf16.msra.mxu0 %v958
    %1462 = vmatmul.bf16.gmra.mxu0 %v1255
    %v1463 = vpop.f32.mrf.mxu0
    %v1464 = vadd.f32 %v758, %v1463
    %v1465 = vpop.f32.mrf.mxu0
    %1466 = vdwg.mxu0
    %1467 = vmatpush.bf16.msra.mxu0 %v1018
    %1468 = vmatpush.bf16.msra.mxu0 %v1014
    %1469 = vmatpush.bf16.msra.mxu0 %v1010
    %1470 = vmatpush.bf16.msra.mxu0 %v1006
    %1471 = vmatpush.bf16.msra.mxu0 %v1002
    %1472 = vmatpush.bf16.msra.mxu0 %v998
    %1473 = vmatpush.bf16.msra.mxu0 %v994
    %1474 = vmatpush.bf16.msra.mxu0 %v990
    %1475 = vmatmul.bf16.gmra.mxu0 %v1375
    %v1476 = vpop.f32.mrf.mxu0
    %v1477 = vadd.f32 %v1464, %v1476
    %v1478 = vpop.f32.mrf.mxu0
    %1479 = vdwg.mxu0
    %v1480 = vxor.u32 %v1399, 2147483648
    %v1481 = vmul.f32 %v1480, 1.442695
    %v1482 = vpow.pop %v1481
    %v1483 = vadd.f32 %v1482, 1.0
    %v1484 = vrcp.pop %v1483
    %v1485 = vmul.f32 %v1483, %v1484
    %v1486 = vsub.f32 1.0, %v1485
    %v1487 = vmul.f32 %v1484, %v1486
    %v1488 = vadd.f32 %v1484, %v1487
    %vm1489 = vweird.f32 %v1483
    %vm1490 = vweird.f32 %v1484
    %vm1491 = vmor %vm1489, %vm1490
    %v1492 = vsel %vm1491, %v1484, %v1488
    %v1493 = vand.u32 2147483647, %v1483
    %vm1494 = vcmp.eq.f32.partialorder %v1493, 8.507059e+37
    %v1495 = vand.u32 %v1483, 2147483648
    %v1496 = vor.u32 1.1754944e-38, %v1495
    %v1497 = vsel %vm1494, %v1496, %v1492
    %v1498 = vmul.f32 1.0, %v1497
    %v1499 = vxor.u32 %v1425, 2147483648
    %v1500 = vmul.f32 %v1499, 1.442695
    %v1501 = vpow.pop %v1500
    %v1502 = vadd.f32 %v1501, 1.0
    %v1503 = vrcp.pop %v1502
    %v1504 = vmul.f32 %v1502, %v1503
    %v1505 = vsub.f32 1.0, %v1504
    %v1506 = vmul.f32 %v1503, %v1505
    %v1507 = vadd.f32 %v1503, %v1506
    %vm1508 = vweird.f32 %v1502
    %vm1509 = vweird.f32 %v1503
    %vm1510 = vmor %vm1508, %vm1509
    %v1511 = vsel %vm1510, %v1503, %v1507
    %v1512 = vand.u32 2147483647, %v1502
    %vm1513 = vcmp.eq.f32.partialorder %v1512, 8.507059e+37
    %v1514 = vand.u32 %v1502, 2147483648
    %v1515 = vor.u32 1.1754944e-38, %v1514
    %v1516 = vsel %vm1513, %v1515, %v1511
    %v1517 = vmul.f32 1.0, %v1516
    %v1518 = vtanh.pop %v1451
    %v1519 = vxor.u32 %v1477, 2147483648
    %v1520 = vmul.f32 %v1519, 1.442695
    %v1521 = vpow.pop %v1520
    %v1522 = vadd.f32 %v1521, 1.0
    %v1523 = vrcp.pop %v1522
    %v1524 = vmul.f32 %v1522, %v1523
    %v1525 = vsub.f32 1.0, %v1524
    %v1526 = vmul.f32 %v1523, %v1525
    %v1527 = vadd.f32 %v1523, %v1526
    %vm1528 = vweird.f32 %v1522
    %vm1529 = vweird.f32 %v1523
    %vm1530 = vmor %vm1528, %vm1529
    %v1531 = vsel %vm1530, %v1523, %v1527
    %v1532 = vand.u32 2147483647, %v1522
    %vm1533 = vcmp.eq.f32.partialorder %v1532, 8.507059e+37
    %v1534 = vand.u32 %v1522, 2147483648
    %v1535 = vor.u32 1.1754944e-38, %v1534
    %v1536 = vsel %vm1533, %v1535, %v1531
    %v1537 = vmul.f32 1.0, %v1536
    %v1538 = vmul.f32 %v1517, %v1247
    %v1539 = vmul.f32 %v1498, %v1518
    %v1540 = vadd.f32 %v1538, %v1539
    %v1541 = vtanh.pop %v1540
    %v1542 = vmul.f32 %v1537, %v1541
    %v1543 = vld [vmem:[#allocation8] sm:$0xff]
    %v1544 = vld [vmem:[#allocation8 + $0x8] sm:$0xff]
    %v1545 = vld [vmem:[#allocation8 + $0x10] sm:$0xff]
    %v1546 = vld [vmem:[#allocation8 + $0x18] sm:$0xff]
    %v1547 = vld [vmem:[#allocation8 + $0x20] sm:$0xff]
    %v1548 = vld [vmem:[#allocation8 + $0x28] sm:$0xff]
    %v1549 = vld [vmem:[#allocation8 + $0x30] sm:$0xff]
    %v1550 = vld [vmem:[#allocation8 + $0x38] sm:$0xff]
    %v1551 = vld [vmem:[#allocation8 + $0x40] sm:$0xff]
    %v1552 = vld [vmem:[#allocation8 + $0x48] sm:$0xff]
    %v1553 = vld [vmem:[#allocation8 + $0x50] sm:$0xff]
    %v1554 = vld [vmem:[#allocation8 + $0x58] sm:$0xff]
    %v1555 = vld [vmem:[#allocation8 + $0x60] sm:$0xff]
    %v1556 = vld [vmem:[#allocation8 + $0x68] sm:$0xff]
    %v1557 = vld [vmem:[#allocation8 + $0x70] sm:$0xff]
    %v1558 = vld [vmem:[#allocation8 + $0x78] sm:$0xff]
    %v1559 = vld [vmem:[#allocation8 + $0x80] sm:$0xff]
    %v1560 = vld [vmem:[#allocation8 + $0x88] sm:$0xff]
    %v1561 = vld [vmem:[#allocation8 + $0x90] sm:$0xff]
    %v1562 = vld [vmem:[#allocation8 + $0x98] sm:$0xff]
    %v1563 = vld [vmem:[#allocation8 + $0xa0] sm:$0xff]
    %v1564 = vld [vmem:[#allocation8 + $0xa8] sm:$0xff]
    %v1565 = vld [vmem:[#allocation8 + $0xb0] sm:$0xff]
    %v1566 = vld [vmem:[#allocation8 + $0xb8] sm:$0xff]
    %v1567 = vld [vmem:[#allocation8 + $0xc0] sm:$0xff]
    %v1568 = vld [vmem:[#allocation8 + $0xc8] sm:$0xff]
    %v1569 = vld [vmem:[#allocation8 + $0xd0] sm:$0xff]
    %v1570 = vld [vmem:[#allocation8 + $0xd8] sm:$0xff]
    %v1571 = vld [vmem:[#allocation8 + $0xe0] sm:$0xff]
    %v1572 = vld [vmem:[#allocation8 + $0xe8] sm:$0xff]
    %v1573 = vld [vmem:[#allocation8 + $0xf0] sm:$0xff]
    %v1574 = vld [vmem:[#allocation8 + $0xf8] sm:$0xff]
    %v1575 = vld [vmem:[#allocation8 + $0x100] sm:$0xff]
    %v1576 = vld [vmem:[#allocation8 + $0x108] sm:$0xff]
    %v1577 = vld [vmem:[#allocation8 + $0x110] sm:$0xff]
    %v1578 = vld [vmem:[#allocation8 + $0x118] sm:$0xff]
    %v1579 = vld [vmem:[#allocation8 + $0x120] sm:$0xff]
    %v1580 = vld [vmem:[#allocation8 + $0x128] sm:$0xff]
    %v1581 = vld [vmem:[#allocation8 + $0x130] sm:$0xff]
    %v1582 = vld [vmem:[#allocation8 + $0x138] sm:$0xff]
    %v1583 = vld [vmem:[#allocation8 + $0x140] sm:$0xff]
    %v1584 = vld [vmem:[#allocation8 + $0x148] sm:$0xff]
    %v1585 = vld [vmem:[#allocation8 + $0x150] sm:$0xff]
    %v1586 = vld [vmem:[#allocation8 + $0x158] sm:$0xff]
    %v1587 = vld [vmem:[#allocation8 + $0x160] sm:$0xff]
    %v1588 = vld [vmem:[#allocation8 + $0x168] sm:$0xff]
    %v1589 = vld [vmem:[#allocation8 + $0x170] sm:$0xff]
    %v1590 = vld [vmem:[#allocation8 + $0x178] sm:$0xff]
    %v1591 = vld [vmem:[#allocation8 + $0x180] sm:$0xff]
    %v1592 = vld [vmem:[#allocation8 + $0x188] sm:$0xff]
    %v1593 = vld [vmem:[#allocation8 + $0x190] sm:$0xff]
    %v1594 = vld [vmem:[#allocation8 + $0x198] sm:$0xff]
    %v1595 = vld [vmem:[#allocation8 + $0x1a0] sm:$0xff]
    %v1596 = vld [vmem:[#allocation8 + $0x1a8] sm:$0xff]
    %v1597 = vld [vmem:[#allocation8 + $0x1b0] sm:$0xff]
    %v1598 = vld [vmem:[#allocation8 + $0x1b8] sm:$0xff]
    %v1599 = vld [vmem:[#allocation8 + $0x1c0] sm:$0xff]
    %v1600 = vld [vmem:[#allocation8 + $0x1c8] sm:$0xff]
    %v1601 = vld [vmem:[#allocation8 + $0x1d0] sm:$0xff]
    %v1602 = vld [vmem:[#allocation8 + $0x1d8] sm:$0xff]
    %v1603 = vld [vmem:[#allocation8 + $0x1e0] sm:$0xff]
    %v1604 = vld [vmem:[#allocation8 + $0x1e8] sm:$0xff]
    %v1605 = vld [vmem:[#allocation8 + $0x1f0] sm:$0xff]
    %v1606 = vld [vmem:[#allocation8 + $0x1f8] sm:$0xff]
    %v1607 = vld [vmem:[%s7] sm:$0xf]
    %v1609 = vperm.slane %v1607, 0
    %v1610 = vperm.slane %v1607, 1
    %v1611 = vperm.slane %v1607, 2
    %v1612 = vperm.slane %v1607, 3
    %v1681 = vunpack.c.l.b16 %v1543
    %v1682 = vunpack.c.h.b16 %v1543
    %v1683 = vunpack.c.l.b16 %v1544
    %v1684 = vunpack.c.h.b16 %v1544
    %v1685 = vunpack.c.l.b16 %v1545
    %v1686 = vunpack.c.h.b16 %v1545
    %v1687 = vunpack.c.l.b16 %v1546
    %v1688 = vunpack.c.h.b16 %v1546
    %v1689 = vunpack.c.l.b16 %v1547
    %v1690 = vunpack.c.h.b16 %v1547
    %v1691 = vunpack.c.l.b16 %v1548
    %v1692 = vunpack.c.h.b16 %v1548
    %v1693 = vunpack.c.l.b16 %v1549
    %v1694 = vunpack.c.h.b16 %v1549
    %v1695 = vunpack.c.l.b16 %v1550
    %v1696 = vunpack.c.h.b16 %v1550
    %v1697 = vunpack.c.l.b16 %v1551
    %v1698 = vunpack.c.h.b16 %v1551
    %v1699 = vunpack.c.l.b16 %v1552
    %v1700 = vunpack.c.h.b16 %v1552
    %v1701 = vunpack.c.l.b16 %v1553
    %v1702 = vunpack.c.h.b16 %v1553
    %v1703 = vunpack.c.l.b16 %v1554
    %v1704 = vunpack.c.h.b16 %v1554
    %v1705 = vunpack.c.l.b16 %v1555
    %v1706 = vunpack.c.h.b16 %v1555
    %v1707 = vunpack.c.l.b16 %v1556
    %v1708 = vunpack.c.h.b16 %v1556
    %v1709 = vunpack.c.l.b16 %v1557
    %v1710 = vunpack.c.h.b16 %v1557
    %v1711 = vunpack.c.l.b16 %v1558
    %v1712 = vunpack.c.h.b16 %v1558
    %v1713 = vunpack.c.l.b16 %v1559
    %v1714 = vunpack.c.h.b16 %v1559
    %v1715 = vunpack.c.l.b16 %v1560
    %v1716 = vunpack.c.h.b16 %v1560
    %v1717 = vunpack.c.l.b16 %v1561
    %v1718 = vunpack.c.h.b16 %v1561
    %v1719 = vunpack.c.l.b16 %v1562
    %v1720 = vunpack.c.h.b16 %v1562
    %v1721 = vunpack.c.l.b16 %v1563
    %v1722 = vunpack.c.h.b16 %v1563
    %v1723 = vunpack.c.l.b16 %v1564
    %v1724 = vunpack.c.h.b16 %v1564
    %v1725 = vunpack.c.l.b16 %v1565
    %v1726 = vunpack.c.h.b16 %v1565
    %v1727 = vunpack.c.l.b16 %v1566
    %v1728 = vunpack.c.h.b16 %v1566
    %v1729 = vunpack.c.l.b16 %v1567
    %v1730 = vunpack.c.h.b16 %v1567
    %v1731 = vunpack.c.l.b16 %v1568
    %v1732 = vunpack.c.h.b16 %v1568
    %v1733 = vunpack.c.l.b16 %v1569
    %v1734 = vunpack.c.h.b16 %v1569
    %v1735 = vunpack.c.l.b16 %v1570
    %v1736 = vunpack.c.h.b16 %v1570
    %v1737 = vunpack.c.l.b16 %v1571
    %v1738 = vunpack.c.h.b16 %v1571
    %v1739 = vunpack.c.l.b16 %v1572
    %v1740 = vunpack.c.h.b16 %v1572
    %v1741 = vunpack.c.l.b16 %v1573
    %v1742 = vunpack.c.h.b16 %v1573
    %v1743 = vunpack.c.l.b16 %v1574
    %v1744 = vunpack.c.h.b16 %v1574
    %v1745 = vunpack.c.l.b16 %v1575
    %v1746 = vunpack.c.h.b16 %v1575
    %v1747 = vunpack.c.l.b16 %v1576
    %v1748 = vunpack.c.h.b16 %v1576
    %v1749 = vunpack.c.l.b16 %v1577
    %v1750 = vunpack.c.h.b16 %v1577
    %v1751 = vunpack.c.l.b16 %v1578
    %v1752 = vunpack.c.h.b16 %v1578
    %v1753 = vunpack.c.l.b16 %v1579
    %v1754 = vunpack.c.h.b16 %v1579
    %v1755 = vunpack.c.l.b16 %v1580
    %v1756 = vunpack.c.h.b16 %v1580
    %v1757 = vunpack.c.l.b16 %v1581
    %v1758 = vunpack.c.h.b16 %v1581
    %v1759 = vunpack.c.l.b16 %v1582
    %v1760 = vunpack.c.h.b16 %v1582
    %v1761 = vunpack.c.l.b16 %v1583
    %v1762 = vunpack.c.h.b16 %v1583
    %v1763 = vunpack.c.l.b16 %v1584
    %v1764 = vunpack.c.h.b16 %v1584
    %v1765 = vunpack.c.l.b16 %v1585
    %v1766 = vunpack.c.h.b16 %v1585
    %v1767 = vunpack.c.l.b16 %v1586
    %v1768 = vunpack.c.h.b16 %v1586
    %v1769 = vunpack.c.l.b16 %v1587
    %v1770 = vunpack.c.h.b16 %v1587
    %v1771 = vunpack.c.l.b16 %v1588
    %v1772 = vunpack.c.h.b16 %v1588
    %v1773 = vunpack.c.l.b16 %v1589
    %v1774 = vunpack.c.h.b16 %v1589
    %v1775 = vunpack.c.l.b16 %v1590
    %v1776 = vunpack.c.h.b16 %v1590
    %v1777 = vunpack.c.l.b16 %v1591
    %v1778 = vunpack.c.h.b16 %v1591
    %v1779 = vunpack.c.l.b16 %v1592
    %v1780 = vunpack.c.h.b16 %v1592
    %v1781 = vunpack.c.l.b16 %v1593
    %v1782 = vunpack.c.h.b16 %v1593
    %v1783 = vunpack.c.l.b16 %v1594
    %v1784 = vunpack.c.h.b16 %v1594
    %v1785 = vunpack.c.l.b16 %v1595
    %v1786 = vunpack.c.h.b16 %v1595
    %v1787 = vunpack.c.l.b16 %v1596
    %v1788 = vunpack.c.h.b16 %v1596
    %v1789 = vunpack.c.l.b16 %v1597
    %v1790 = vunpack.c.h.b16 %v1597
    %v1791 = vunpack.c.l.b16 %v1598
    %v1792 = vunpack.c.h.b16 %v1598
    %v1793 = vunpack.c.l.b16 %v1599
    %v1794 = vunpack.c.h.b16 %v1599
    %v1795 = vunpack.c.l.b16 %v1600
    %v1796 = vunpack.c.h.b16 %v1600
    %v1797 = vunpack.c.l.b16 %v1601
    %v1798 = vunpack.c.h.b16 %v1601
    %v1799 = vunpack.c.l.b16 %v1602
    %v1800 = vunpack.c.h.b16 %v1602
    %v1801 = vunpack.c.l.b16 %v1603
    %v1802 = vunpack.c.h.b16 %v1603
    %v1803 = vunpack.c.l.b16 %v1604
    %v1804 = vunpack.c.h.b16 %v1604
    %v1805 = vunpack.c.l.b16 %v1605
    %v1806 = vunpack.c.h.b16 %v1605
    %v1807 = vunpack.c.l.b16 %v1606
    %v1808 = vunpack.c.h.b16 %v1606
    %v1809 = vpack.c.b16 %v1685, %v1681
    %v1810 = vpack.c.b16 %v1686, %v1682
    %v1811 = vpack.c.b16 %v1687, %v1683
    %v1812 = vpack.c.b16 %v1688, %v1684
    %v1813 = vpack.c.b16 %v1693, %v1689
    %v1814 = vpack.c.b16 %v1694, %v1690
    %v1815 = vpack.c.b16 %v1695, %v1691
    %v1816 = vpack.c.b16 %v1696, %v1692
    %v1817 = vpack.c.b16 %v1701, %v1697
    %v1818 = vpack.c.b16 %v1702, %v1698
    %v1819 = vpack.c.b16 %v1703, %v1699
    %v1820 = vpack.c.b16 %v1704, %v1700
    %v1821 = vpack.c.b16 %v1709, %v1705
    %v1822 = vpack.c.b16 %v1710, %v1706
    %v1823 = vpack.c.b16 %v1711, %v1707
    %v1824 = vpack.c.b16 %v1712, %v1708
    %v1825 = vpack.c.b16 %v1717, %v1713
    %v1826 = vpack.c.b16 %v1718, %v1714
    %v1827 = vpack.c.b16 %v1719, %v1715
    %v1828 = vpack.c.b16 %v1720, %v1716
    %v1829 = vpack.c.b16 %v1725, %v1721
    %v1830 = vpack.c.b16 %v1726, %v1722
    %v1831 = vpack.c.b16 %v1727, %v1723
    %v1832 = vpack.c.b16 %v1728, %v1724
    %v1833 = vpack.c.b16 %v1733, %v1729
    %v1834 = vpack.c.b16 %v1734, %v1730
    %v1835 = vpack.c.b16 %v1735, %v1731
    %v1836 = vpack.c.b16 %v1736, %v1732
    %v1837 = vpack.c.b16 %v1741, %v1737
    %v1838 = vpack.c.b16 %v1742, %v1738
    %v1839 = vpack.c.b16 %v1743, %v1739
    %v1840 = vpack.c.b16 %v1744, %v1740
    %v1841 = vpack.c.b16 %v1749, %v1745
    %v1842 = vpack.c.b16 %v1750, %v1746
    %v1843 = vpack.c.b16 %v1751, %v1747
    %v1844 = vpack.c.b16 %v1752, %v1748
    %v1845 = vpack.c.b16 %v1757, %v1753
    %v1846 = vpack.c.b16 %v1758, %v1754
    %v1847 = vpack.c.b16 %v1759, %v1755
    %v1848 = vpack.c.b16 %v1760, %v1756
    %v1849 = vpack.c.b16 %v1765, %v1761
    %v1850 = vpack.c.b16 %v1766, %v1762
    %v1851 = vpack.c.b16 %v1767, %v1763
    %v1852 = vpack.c.b16 %v1768, %v1764
    %v1853 = vpack.c.b16 %v1773, %v1769
    %v1854 = vpack.c.b16 %v1774, %v1770
    %v1855 = vpack.c.b16 %v1775, %v1771
    %v1856 = vpack.c.b16 %v1776, %v1772
    %v1857 = vpack.c.b16 %v1781, %v1777
    %v1858 = vpack.c.b16 %v1782, %v1778
    %v1859 = vpack.c.b16 %v1783, %v1779
    %v1860 = vpack.c.b16 %v1784, %v1780
    %v1861 = vpack.c.b16 %v1789, %v1785
    %v1862 = vpack.c.b16 %v1790, %v1786
    %v1863 = vpack.c.b16 %v1791, %v1787
    %v1864 = vpack.c.b16 %v1792, %v1788
    %v1865 = vpack.c.b16 %v1797, %v1793
    %v1866 = vpack.c.b16 %v1798, %v1794
    %v1867 = vpack.c.b16 %v1799, %v1795
    %v1868 = vpack.c.b16 %v1800, %v1796
    %v1869 = vpack.c.b16 %v1805, %v1801
    %v1870 = vpack.c.b16 %v1806, %v1802
    %v1871 = vpack.c.b16 %v1807, %v1803
    %v1872 = vpack.c.b16 %v1808, %v1804
    %1937 = vmatpush.bf16.msra.mxu0 %v1837
    %1938 = vmatpush.bf16.msra.mxu0 %v1833
    %1939 = vmatpush.bf16.msra.mxu0 %v1829
    %1940 = vmatpush.bf16.msra.mxu0 %v1825
    %1941 = vmatpush.bf16.msra.mxu0 %v1821
    %1942 = vmatpush.bf16.msra.mxu0 %v1817
    %1943 = vmatpush.bf16.msra.mxu0 %v1813
    %1944 = vmatpush.bf16.msra.mxu0 %v1809
    %1945 = vmatmul.bf16.gmra.mxu0 %v1375
    %v1946 = vpop.f32.mrf.mxu0
    %v1947 = vadd.f32 %v1609, %v1946
    %v1948 = vpop.f32.mrf.mxu0
    %1949 = vdwg.mxu0
    %1950 = vmatpush.bf16.msra.mxu0 %v1869
    %1951 = vmatpush.bf16.msra.mxu0 %v1865
    %1952 = vmatpush.bf16.msra.mxu0 %v1861
    %1953 = vmatpush.bf16.msra.mxu0 %v1857
    %1954 = vmatpush.bf16.msra.mxu0 %v1853
    %1955 = vmatpush.bf16.msra.mxu0 %v1849
    %1956 = vmatpush.bf16.msra.mxu0 %v1845
    %1957 = vmatpush.bf16.msra.mxu0 %v1841
    %1958 = vmatmul.bf16.gmra.mxu0 %v688
    %v1959 = vpop.f32.mrf.mxu0
    %v1960 = vadd.f32 %v1947, %v1959
    %v1961 = vpop.f32.mrf.mxu0
    %1962 = vdwg.mxu0
    %1963 = vmatpush.bf16.msra.mxu0 %v1838
    %1964 = vmatpush.bf16.msra.mxu0 %v1834
    %1965 = vmatpush.bf16.msra.mxu0 %v1830
    %1966 = vmatpush.bf16.msra.mxu0 %v1826
    %1967 = vmatpush.bf16.msra.mxu0 %v1822
    %1968 = vmatpush.bf16.msra.mxu0 %v1818
    %1969 = vmatpush.bf16.msra.mxu0 %v1814
    %1970 = vmatpush.bf16.msra.mxu0 %v1810
    %1971 = vmatmul.bf16.gmra.mxu0 %v1375
    %v1972 = vpop.f32.mrf.mxu0
    %v1973 = vadd.f32 %v1610, %v1972
    %v1974 = vpop.f32.mrf.mxu0
    %1975 = vdwg.mxu0
    %1976 = vmatpush.bf16.msra.mxu0 %v1870
    %1977 = vmatpush.bf16.msra.mxu0 %v1866
    %1978 = vmatpush.bf16.msra.mxu0 %v1862
    %1979 = vmatpush.bf16.msra.mxu0 %v1858
    %1980 = vmatpush.bf16.msra.mxu0 %v1854
    %1981 = vmatpush.bf16.msra.mxu0 %v1850
    %1982 = vmatpush.bf16.msra.mxu0 %v1846
    %1983 = vmatpush.bf16.msra.mxu0 %v1842
    %1984 = vmatmul.bf16.gmra.mxu0 %v688
    %v1985 = vpop.f32.mrf.mxu0
    %v1986 = vadd.f32 %v1973, %v1985
    %v1987 = vpop.f32.mrf.mxu0
    %1988 = vdwg.mxu0
    %1989 = vmatpush.bf16.msra.mxu0 %v1839
    %1990 = vmatpush.bf16.msra.mxu0 %v1835
    %1991 = vmatpush.bf16.msra.mxu0 %v1831
    %1992 = vmatpush.bf16.msra.mxu0 %v1827
    %1993 = vmatpush.bf16.msra.mxu0 %v1823
    %1994 = vmatpush.bf16.msra.mxu0 %v1819
    %1995 = vmatpush.bf16.msra.mxu0 %v1815
    %1996 = vmatpush.bf16.msra.mxu0 %v1811
    %1997 = vmatmul.bf16.gmra.mxu0 %v1375
    %v1998 = vpop.f32.mrf.mxu0
    %v1999 = vadd.f32 %v1611, %v1998
    %v2000 = vpop.f32.mrf.mxu0
    %2001 = vdwg.mxu0
    %2002 = vmatpush.bf16.msra.mxu0 %v1871
    %2003 = vmatpush.bf16.msra.mxu0 %v1867
    %2004 = vmatpush.bf16.msra.mxu0 %v1863
    %2005 = vmatpush.bf16.msra.mxu0 %v1859
    %2006 = vmatpush.bf16.msra.mxu0 %v1855
    %2007 = vmatpush.bf16.msra.mxu0 %v1851
    %2008 = vmatpush.bf16.msra.mxu0 %v1847
    %2009 = vmatpush.bf16.msra.mxu0 %v1843
    %2010 = vmatmul.bf16.gmra.mxu0 %v688
    %v2011 = vpop.f32.mrf.mxu0
    %v2012 = vadd.f32 %v1999, %v2011
    %v2013 = vpop.f32.mrf.mxu0
    %2014 = vdwg.mxu0
    %2015 = vmatpush.bf16.msra.mxu0 %v1840
    %2016 = vmatpush.bf16.msra.mxu0 %v1836
    %2017 = vmatpush.bf16.msra.mxu0 %v1832
    %2018 = vmatpush.bf16.msra.mxu0 %v1828
    %2019 = vmatpush.bf16.msra.mxu0 %v1824
    %2020 = vmatpush.bf16.msra.mxu0 %v1820
    %2021 = vmatpush.bf16.msra.mxu0 %v1816
    %2022 = vmatpush.bf16.msra.mxu0 %v1812
    %2023 = vmatmul.bf16.gmra.mxu0 %v1375
    %v2024 = vpop.f32.mrf.mxu0
    %v2025 = vadd.f32 %v1612, %v2024
    %v2026 = vpop.f32.mrf.mxu0
    %2027 = vdwg.mxu0
    %2028 = vmatpush.bf16.msra.mxu0 %v1872
    %2029 = vmatpush.bf16.msra.mxu0 %v1868
    %2030 = vmatpush.bf16.msra.mxu0 %v1864
    %2031 = vmatpush.bf16.msra.mxu0 %v1860
    %2032 = vmatpush.bf16.msra.mxu0 %v1856
    %2033 = vmatpush.bf16.msra.mxu0 %v1852
    %2034 = vmatpush.bf16.msra.mxu0 %v1848
    %2035 = vmatpush.bf16.msra.mxu0 %v1844
    %2036 = vmatmul.bf16.gmra.mxu0 %v688
    %v2037 = vpop.f32.mrf.mxu0
    %v2038 = vadd.f32 %v2025, %v2037
    %v2039 = vpop.f32.mrf.mxu0
    %2040 = vdwg.mxu0
    %v2041 = vxor.u32 %v1960, 2147483648
    %v2042 = vmul.f32 %v2041, 1.442695
    %v2043 = vpow.pop %v2042
    %v2044 = vadd.f32 %v2043, 1.0
    %v2045 = vrcp.pop %v2044
    %v2046 = vmul.f32 %v2044, %v2045
    %v2047 = vsub.f32 1.0, %v2046
    %v2048 = vmul.f32 %v2045, %v2047
    %v2049 = vadd.f32 %v2045, %v2048
    %vm2050 = vweird.f32 %v2044
    %vm2051 = vweird.f32 %v2045
    %vm2052 = vmor %vm2050, %vm2051
    %v2053 = vsel %vm2052, %v2045, %v2049
    %v2054 = vand.u32 2147483647, %v2044
    %vm2055 = vcmp.eq.f32.partialorder %v2054, 8.507059e+37
    %v2056 = vand.u32 %v2044, 2147483648
    %v2057 = vor.u32 1.1754944e-38, %v2056
    %v2058 = vsel %vm2055, %v2057, %v2053
    %v2059 = vmul.f32 1.0, %v2058
    %v2060 = vxor.u32 %v1986, 2147483648
    %v2061 = vmul.f32 %v2060, 1.442695
    %v2062 = vpow.pop %v2061
    %v2063 = vadd.f32 %v2062, 1.0
    %v2064 = vrcp.pop %v2063
    %v2065 = vmul.f32 %v2063, %v2064
    %v2066 = vsub.f32 1.0, %v2065
    %v2067 = vmul.f32 %v2064, %v2066
    %v2068 = vadd.f32 %v2064, %v2067
    %vm2069 = vweird.f32 %v2063
    %vm2070 = vweird.f32 %v2064
    %vm2071 = vmor %vm2069, %vm2070
    %v2072 = vsel %vm2071, %v2064, %v2068
    %v2073 = vand.u32 2147483647, %v2063
    %vm2074 = vcmp.eq.f32.partialorder %v2073, 8.507059e+37
    %v2075 = vand.u32 %v2063, 2147483648
    %v2076 = vor.u32 1.1754944e-38, %v2075
    %v2077 = vsel %vm2074, %v2076, %v2072
    %v2078 = vmul.f32 1.0, %v2077
    %v2079 = vtanh.pop %v2012
    %v2080 = vxor.u32 %v2038, 2147483648
    %v2081 = vmul.f32 %v2080, 1.442695
    %v2082 = vpow.pop %v2081
    %v2083 = vadd.f32 %v2082, 1.0
    %v2084 = vrcp.pop %v2083
    %v2085 = vmul.f32 %v2083, %v2084
    %v2086 = vsub.f32 1.0, %v2085
    %v2087 = vmul.f32 %v2084, %v2086
    %v2088 = vadd.f32 %v2084, %v2087
    %vm2089 = vweird.f32 %v2083
    %vm2090 = vweird.f32 %v2084
    %vm2091 = vmor %vm2089, %vm2090
    %v2092 = vsel %vm2091, %v2084, %v2088
    %v2093 = vand.u32 2147483647, %v2083
    %vm2094 = vcmp.eq.f32.partialorder %v2093, 8.507059e+37
    %v2095 = vand.u32 %v2083, 2147483648
    %v2096 = vor.u32 1.1754944e-38, %v2095
    %v2097 = vsel %vm2094, %v2096, %v2092
    %v2098 = vmul.f32 1.0, %v2097
    %v2099 = vmul.f32 %v2078, 0.0
    %v2100 = vmul.f32 %v2059, %v2079
    %v2101 = vadd.f32 %v2099, %v2100
    %v2102 = vtanh.pop %v2101
    %v2103 = vmul.f32 %v2098, %v2102
    %s2104 = scalar_lea.vmem [#allocation2], 96
    %v2105 = vld [vmem:[%s2104] sm:$0xff]
    %v2106 = vld [vmem:[%s2104 + $0x8] sm:$0xff]
    %v2107 = vld [vmem:[%s2104 + $0x10] sm:$0xff]
    %v2108 = vld [vmem:[%s2104 + $0x18] sm:$0xff]
    %v2109 = vpack.c.bf16 %v1374, %v1374
    %2110 = vmatpush.bf16.msra.mxu0 %v408
    %2111 = vmatpush.bf16.msra.mxu0 %v404
    %2112 = vmatpush.bf16.msra.mxu0 %v400
    %2113 = vmatpush.bf16.msra.mxu0 %v396
    %2114 = vmatpush.bf16.msra.mxu0 %v392
    %2115 = vmatpush.bf16.msra.mxu0 %v388
    %2116 = vmatpush.bf16.msra.mxu0 %v384
    %2117 = vmatpush.bf16.msra.mxu0 %v380
    %2118 = vmatmul.bf16.gmra.mxu0 %v2109
    %v2119 = vpop.f32.mrf.mxu0
    %v2120 = vadd.f32 0.0, %v2119
    %v2121 = vpop.f32.mrf.mxu0
    %2122 = vdwg.mxu0
    %2123 = vmatpush.bf16.msra.mxu0 %v409
    %2124 = vmatpush.bf16.msra.mxu0 %v405
    %2125 = vmatpush.bf16.msra.mxu0 %v401
    %2126 = vmatpush.bf16.msra.mxu0 %v397
    %2127 = vmatpush.bf16.msra.mxu0 %v393
    %2128 = vmatpush.bf16.msra.mxu0 %v389
    %2129 = vmatpush.bf16.msra.mxu0 %v385
    %2130 = vmatpush.bf16.msra.mxu0 %v381
    %2131 = vmatmul.bf16.gmra.mxu0 %v2109
    %v2132 = vpop.f32.mrf.mxu0
    %v2133 = vadd.f32 0.0, %v2132
    %v2134 = vpop.f32.mrf.mxu0
    %2135 = vdwg.mxu0
    %2136 = vmatpush.bf16.msra.mxu0 %v410
    %2137 = vmatpush.bf16.msra.mxu0 %v406
    %2138 = vmatpush.bf16.msra.mxu0 %v402
    %2139 = vmatpush.bf16.msra.mxu0 %v398
    %2140 = vmatpush.bf16.msra.mxu0 %v394
    %2141 = vmatpush.bf16.msra.mxu0 %v390
    %2142 = vmatpush.bf16.msra.mxu0 %v386
    %2143 = vmatpush.bf16.msra.mxu0 %v382
    %2144 = vmatmul.bf16.gmra.mxu0 %v2109
    %v2145 = vpop.f32.mrf.mxu0
    %v2146 = vadd.f32 0.0, %v2145
    %v2147 = vpop.f32.mrf.mxu0
    %2148 = vdwg.mxu0
    %2149 = vmatpush.bf16.msra.mxu0 %v411
    %2150 = vmatpush.bf16.msra.mxu0 %v407
    %2151 = vmatpush.bf16.msra.mxu0 %v403
    %2152 = vmatpush.bf16.msra.mxu0 %v399
    %2153 = vmatpush.bf16.msra.mxu0 %v395
    %2154 = vmatpush.bf16.msra.mxu0 %v391
    %2155 = vmatpush.bf16.msra.mxu0 %v387
    %2156 = vmatpush.bf16.msra.mxu0 %v383
    %2157 = vmatmul.bf16.gmra.mxu0 %v2109
    %v2158 = vpop.f32.mrf.mxu0
    %v2159 = vadd.f32 0.0, %v2158
    %v2160 = vpop.f32.mrf.mxu0
    %2161 = vdwg.mxu0
    %v2162 = vadd.f32 %v2105, %v2120
    %v2163 = vadd.f32 %v2106, %v2133
    %v2164 = vadd.f32 %v2107, %v2146
    %v2165 = vadd.f32 %v2108, %v2159
    %v2166 = vxor.u32 %v2162, 2147483648
    %v2167 = vmul.f32 %v2166, 1.442695
    %v2168 = vpow.pop %v2167
    %v2169 = vadd.f32 %v2168, 1.0
    %v2170 = vrcp.pop %v2169
    %v2171 = vmul.f32 %v2169, %v2170
    %v2172 = vsub.f32 1.0, %v2171
    %v2173 = vmul.f32 %v2170, %v2172
    %v2174 = vadd.f32 %v2170, %v2173
    %vm2175 = vweird.f32 %v2169
    %vm2176 = vweird.f32 %v2170
    %vm2177 = vmor %vm2175, %vm2176
    %v2178 = vsel %vm2177, %v2170, %v2174
    %v2179 = vand.u32 2147483647, %v2169
    %vm2180 = vcmp.eq.f32.partialorder %v2179, 8.507059e+37
    %v2181 = vand.u32 %v2169, 2147483648
    %v2182 = vor.u32 1.1754944e-38, %v2181
    %v2183 = vsel %vm2180, %v2182, %v2178
    %v2184 = vmul.f32 1.0, %v2183
    %v2185 = vxor.u32 %v2163, 2147483648
    %v2186 = vmul.f32 %v2185, 1.442695
    %v2187 = vpow.pop %v2186
    %v2188 = vadd.f32 %v2187, 1.0
    %v2189 = vrcp.pop %v2188
    %v2190 = vmul.f32 %v2188, %v2189
    %v2191 = vsub.f32 1.0, %v2190
    %v2192 = vmul.f32 %v2189, %v2191
    %v2193 = vadd.f32 %v2189, %v2192
    %vm2194 = vweird.f32 %v2188
    %vm2195 = vweird.f32 %v2189
    %vm2196 = vmor %vm2194, %vm2195
    %v2197 = vsel %vm2196, %v2189, %v2193
    %v2198 = vand.u32 2147483647, %v2188
    %vm2199 = vcmp.eq.f32.partialorder %v2198, 8.507059e+37
    %v2200 = vand.u32 %v2188, 2147483648
    %v2201 = vor.u32 1.1754944e-38, %v2200
    %v2202 = vsel %vm2199, %v2201, %v2197
    %v2203 = vmul.f32 1.0, %v2202
    %v2204 = vtanh.pop %v2164
    %v2205 = vxor.u32 %v2165, 2147483648
    %v2206 = vmul.f32 %v2205, 1.442695
    %v2207 = vpow.pop %v2206
    %v2208 = vadd.f32 %v2207, 1.0
    %v2209 = vrcp.pop %v2208
    %v2210 = vmul.f32 %v2208, %v2209
    %v2211 = vsub.f32 1.0, %v2210
    %v2212 = vmul.f32 %v2209, %v2211
    %v2213 = vadd.f32 %v2209, %v2212
    %vm2214 = vweird.f32 %v2208
    %vm2215 = vweird.f32 %v2209
    %vm2216 = vmor %vm2214, %vm2215
    %v2217 = vsel %vm2216, %v2209, %v2213
    %v2218 = vand.u32 2147483647, %v2208
    %vm2219 = vcmp.eq.f32.partialorder %v2218, 8.507059e+37
    %v2220 = vand.u32 %v2208, 2147483648
    %v2221 = vor.u32 1.1754944e-38, %v2220
    %v2222 = vsel %vm2219, %v2221, %v2217
    %v2223 = vmul.f32 1.0, %v2222
    %v2224 = vmul.f32 %v2203, %v1372
    %v2225 = vmul.f32 %v2184, %v2204
    %v2226 = vadd.f32 %v2224, %v2225
    %v2227 = vtanh.pop %v2226
    %v2228 = vmul.f32 %v2223, %v2227
    %v2229 = vpack.c.bf16 %v1542, %v1542
    %2230 = vmatpush.bf16.msra.mxu0 %v983
    %2231 = vmatpush.bf16.msra.mxu0 %v979
    %2232 = vmatpush.bf16.msra.mxu0 %v975
    %2233 = vmatpush.bf16.msra.mxu0 %v971
    %2234 = vmatpush.bf16.msra.mxu0 %v967
    %2235 = vmatpush.bf16.msra.mxu0 %v963
    %2236 = vmatpush.bf16.msra.mxu0 %v959
    %2237 = vmatpush.bf16.msra.mxu0 %v955
    %2238 = vmatmul.bf16.gmra.mxu0 %v2109
    %v2239 = vpop.f32.mrf.mxu0
    %v2240 = vadd.f32 %v755, %v2239
    %v2241 = vpop.f32.mrf.mxu0
    %2242 = vdwg.mxu0
    %2243 = vmatpush.bf16.msra.mxu0 %v1015
    %2244 = vmatpush.bf16.msra.mxu0 %v1011
    %2245 = vmatpush.bf16.msra.mxu0 %v1007
    %2246 = vmatpush.bf16.msra.mxu0 %v1003
    %2247 = vmatpush.bf16.msra.mxu0 %v999
    %2248 = vmatpush.bf16.msra.mxu0 %v995
    %2249 = vmatpush.bf16.msra.mxu0 %v991
    %2250 = vmatpush.bf16.msra.mxu0 %v987
    %2251 = vmatmul.bf16.gmra.mxu0 %v2229
    %v2252 = vpop.f32.mrf.mxu0
    %v2253 = vadd.f32 %v2240, %v2252
    %v2254 = vpop.f32.mrf.mxu0
    %2255 = vdwg.mxu0
    %2256 = vmatpush.bf16.msra.mxu0 %v984
    %2257 = vmatpush.bf16.msra.mxu0 %v980
    %2258 = vmatpush.bf16.msra.mxu0 %v976
    %2259 = vmatpush.bf16.msra.mxu0 %v972
    %2260 = vmatpush.bf16.msra.mxu0 %v968
    %2261 = vmatpush.bf16.msra.mxu0 %v964
    %2262 = vmatpush.bf16.msra.mxu0 %v960
    %2263 = vmatpush.bf16.msra.mxu0 %v956
    %2264 = vmatmul.bf16.gmra.mxu0 %v2109
    %v2265 = vpop.f32.mrf.mxu0
    %v2266 = vadd.f32 %v756, %v2265
    %v2267 = vpop.f32.mrf.mxu0
    %2268 = vdwg.mxu0
    %2269 = vmatpush.bf16.msra.mxu0 %v1016
    %2270 = vmatpush.bf16.msra.mxu0 %v1012
    %2271 = vmatpush.bf16.msra.mxu0 %v1008
    %2272 = vmatpush.bf16.msra.mxu0 %v1004
    %2273 = vmatpush.bf16.msra.mxu0 %v1000
    %2274 = vmatpush.bf16.msra.mxu0 %v996
    %2275 = vmatpush.bf16.msra.mxu0 %v992
    %2276 = vmatpush.bf16.msra.mxu0 %v988
    %2277 = vmatmul.bf16.gmra.mxu0 %v2229
    %v2278 = vpop.f32.mrf.mxu0
    %v2279 = vadd.f32 %v2266, %v2278
    %v2280 = vpop.f32.mrf.mxu0
    %2281 = vdwg.mxu0
    %2282 = vmatpush.bf16.msra.mxu0 %v985
    %2283 = vmatpush.bf16.msra.mxu0 %v981
    %2284 = vmatpush.bf16.msra.mxu0 %v977
    %2285 = vmatpush.bf16.msra.mxu0 %v973
    %2286 = vmatpush.bf16.msra.mxu0 %v969
    %2287 = vmatpush.bf16.msra.mxu0 %v965
    %2288 = vmatpush.bf16.msra.mxu0 %v961
    %2289 = vmatpush.bf16.msra.mxu0 %v957
    %2290 = vmatmul.bf16.gmra.mxu0 %v2109
    %v2291 = vpop.f32.mrf.mxu0
    %v2292 = vadd.f32 %v757, %v2291
    %v2293 = vpop.f32.mrf.mxu0
    %2294 = vdwg.mxu0
    %2295 = vmatpush.bf16.msra.mxu0 %v1017
    %2296 = vmatpush.bf16.msra.mxu0 %v1013
    %2297 = vmatpush.bf16.msra.mxu0 %v1009
    %2298 = vmatpush.bf16.msra.mxu0 %v1005
    %2299 = vmatpush.bf16.msra.mxu0 %v1001
    %2300 = vmatpush.bf16.msra.mxu0 %v997
    %2301 = vmatpush.bf16.msra.mxu0 %v993
    %2302 = vmatpush.bf16.msra.mxu0 %v989
    %2303 = vmatmul.bf16.gmra.mxu0 %v2229
    %v2304 = vpop.f32.mrf.mxu0
    %v2305 = vadd.f32 %v2292, %v2304
    %v2306 = vpop.f32.mrf.mxu0
    %2307 = vdwg.mxu0
    %2308 = vmatpush.bf16.msra.mxu0 %v986
    %2309 = vmatpush.bf16.msra.mxu0 %v982
    %2310 = vmatpush.bf16.msra.mxu0 %v978
    %2311 = vmatpush.bf16.msra.mxu0 %v974
    %2312 = vmatpush.bf16.msra.mxu0 %v970
    %2313 = vmatpush.bf16.msra.mxu0 %v966
    %2314 = vmatpush.bf16.msra.mxu0 %v962
    %2315 = vmatpush.bf16.msra.mxu0 %v958
    %2316 = vmatmul.bf16.gmra.mxu0 %v2109
    %v2317 = vpop.f32.mrf.mxu0
    %v2318 = vadd.f32 %v758, %v2317
    %v2319 = vpop.f32.mrf.mxu0
    %2320 = vdwg.mxu0
    %2321 = vmatpush.bf16.msra.mxu0 %v1018
    %2322 = vmatpush.bf16.msra.mxu0 %v1014
    %2323 = vmatpush.bf16.msra.mxu0 %v1010
    %2324 = vmatpush.bf16.msra.mxu0 %v1006
    %2325 = vmatpush.bf16.msra.mxu0 %v1002
    %2326 = vmatpush.bf16.msra.mxu0 %v998
    %2327 = vmatpush.bf16.msra.mxu0 %v994
    %2328 = vmatpush.bf16.msra.mxu0 %v990
    %2329 = vmatmul.bf16.gmra.mxu0 %v2229
    %v2330 = vpop.f32.mrf.mxu0
    %v2331 = vadd.f32 %v2318, %v2330
    %v2332 = vpop.f32.mrf.mxu0
    %2333 = vdwg.mxu0
    %v2334 = vxor.u32 %v2253, 2147483648
    %v2335 = vmul.f32 %v2334, 1.442695
    %v2336 = vpow.pop %v2335
    %v2337 = vadd.f32 %v2336, 1.0
    %v2338 = vrcp.pop %v2337
    %v2339 = vmul.f32 %v2337, %v2338
    %v2340 = vsub.f32 1.0, %v2339
    %v2341 = vmul.f32 %v2338, %v2340
    %v2342 = vadd.f32 %v2338, %v2341
    %vm2343 = vweird.f32 %v2337
    %vm2344 = vweird.f32 %v2338
    %vm2345 = vmor %vm2343, %vm2344
    %v2346 = vsel %vm2345, %v2338, %v2342
    %v2347 = vand.u32 2147483647, %v2337
    %vm2348 = vcmp.eq.f32.partialorder %v2347, 8.507059e+37
    %v2349 = vand.u32 %v2337, 2147483648
    %v2350 = vor.u32 1.1754944e-38, %v2349
    %v2351 = vsel %vm2348, %v2350, %v2346
    %v2352 = vmul.f32 1.0, %v2351
    %v2353 = vxor.u32 %v2279, 2147483648
    %v2354 = vmul.f32 %v2353, 1.442695
    %v2355 = vpow.pop %v2354
    %v2356 = vadd.f32 %v2355, 1.0
    %v2357 = vrcp.pop %v2356
    %v2358 = vmul.f32 %v2356, %v2357
    %v2359 = vsub.f32 1.0, %v2358
    %v2360 = vmul.f32 %v2357, %v2359
    %v2361 = vadd.f32 %v2357, %v2360
    %vm2362 = vweird.f32 %v2356
    %vm2363 = vweird.f32 %v2357
    %vm2364 = vmor %vm2362, %vm2363
    %v2365 = vsel %vm2364, %v2357, %v2361
    %v2366 = vand.u32 2147483647, %v2356
    %vm2367 = vcmp.eq.f32.partialorder %v2366, 8.507059e+37
    %v2368 = vand.u32 %v2356, 2147483648
    %v2369 = vor.u32 1.1754944e-38, %v2368
    %v2370 = vsel %vm2367, %v2369, %v2365
    %v2371 = vmul.f32 1.0, %v2370
    %v2372 = vtanh.pop %v2305
    %v2373 = vxor.u32 %v2331, 2147483648
    %v2374 = vmul.f32 %v2373, 1.442695
    %v2375 = vpow.pop %v2374
    %v2376 = vadd.f32 %v2375, 1.0
    %v2377 = vrcp.pop %v2376
    %v2378 = vmul.f32 %v2376, %v2377
    %v2379 = vsub.f32 1.0, %v2378
    %v2380 = vmul.f32 %v2377, %v2379
    %v2381 = vadd.f32 %v2377, %v2380
    %vm2382 = vweird.f32 %v2376
    %vm2383 = vweird.f32 %v2377
    %vm2384 = vmor %vm2382, %vm2383
    %v2385 = vsel %vm2384, %v2377, %v2381
    %v2386 = vand.u32 2147483647, %v2376
    %vm2387 = vcmp.eq.f32.partialorder %v2386, 8.507059e+37
    %v2388 = vand.u32 %v2376, 2147483648
    %v2389 = vor.u32 1.1754944e-38, %v2388
    %v2390 = vsel %vm2387, %v2389, %v2385
    %v2391 = vmul.f32 1.0, %v2390
    %v2392 = vmul.f32 %v2371, %v1540
    %v2393 = vmul.f32 %v2352, %v2372
    %v2394 = vadd.f32 %v2392, %v2393
    %v2395 = vtanh.pop %v2394
    %v2396 = vmul.f32 %v2391, %v2395
    %v2397 = vpack.c.bf16 %v2103, %v2103
    %2398 = vmatpush.bf16.msra.mxu0 %v1837
    %2399 = vmatpush.bf16.msra.mxu0 %v1833
    %2400 = vmatpush.bf16.msra.mxu0 %v1829
    %2401 = vmatpush.bf16.msra.mxu0 %v1825
    %2402 = vmatpush.bf16.msra.mxu0 %v1821
    %2403 = vmatpush.bf16.msra.mxu0 %v1817
    %2404 = vmatpush.bf16.msra.mxu0 %v1813
    %2405 = vmatpush.bf16.msra.mxu0 %v1809
    %2406 = vmatmul.bf16.gmra.mxu0 %v2229
    %v2407 = vpop.f32.mrf.mxu0
    %v2408 = vadd.f32 %v1609, %v2407
    %v2409 = vpop.f32.mrf.mxu0
    %2410 = vdwg.mxu0
    %2411 = vmatpush.bf16.msra.mxu0 %v1869
    %2412 = vmatpush.bf16.msra.mxu0 %v1865
    %2413 = vmatpush.bf16.msra.mxu0 %v1861
    %2414 = vmatpush.bf16.msra.mxu0 %v1857
    %2415 = vmatpush.bf16.msra.mxu0 %v1853
    %2416 = vmatpush.bf16.msra.mxu0 %v1849
    %2417 = vmatpush.bf16.msra.mxu0 %v1845
    %2418 = vmatpush.bf16.msra.mxu0 %v1841
    %2419 = vmatmul.bf16.gmra.mxu0 %v2397
    %v2420 = vpop.f32.mrf.mxu0
    %v2421 = vadd.f32 %v2408, %v2420
    %v2422 = vpop.f32.mrf.mxu0
    %2423 = vdwg.mxu0
    %2424 = vmatpush.bf16.msra.mxu0 %v1838
    %2425 = vmatpush.bf16.msra.mxu0 %v1834
    %2426 = vmatpush.bf16.msra.mxu0 %v1830
    %2427 = vmatpush.bf16.msra.mxu0 %v1826
    %2428 = vmatpush.bf16.msra.mxu0 %v1822
    %2429 = vmatpush.bf16.msra.mxu0 %v1818
    %2430 = vmatpush.bf16.msra.mxu0 %v1814
    %2431 = vmatpush.bf16.msra.mxu0 %v1810
    %2432 = vmatmul.bf16.gmra.mxu0 %v2229
    %v2433 = vpop.f32.mrf.mxu0
    %v2434 = vadd.f32 %v1610, %v2433
    %v2435 = vpop.f32.mrf.mxu0
    %2436 = vdwg.mxu0
    %2437 = vmatpush.bf16.msra.mxu0 %v1870
    %2438 = vmatpush.bf16.msra.mxu0 %v1866
    %2439 = vmatpush.bf16.msra.mxu0 %v1862
    %2440 = vmatpush.bf16.msra.mxu0 %v1858
    %2441 = vmatpush.bf16.msra.mxu0 %v1854
    %2442 = vmatpush.bf16.msra.mxu0 %v1850
    %2443 = vmatpush.bf16.msra.mxu0 %v1846
    %2444 = vmatpush.bf16.msra.mxu0 %v1842
    %2445 = vmatmul.bf16.gmra.mxu0 %v2397
    %v2446 = vpop.f32.mrf.mxu0
    %v2447 = vadd.f32 %v2434, %v2446
    %v2448 = vpop.f32.mrf.mxu0
    %2449 = vdwg.mxu0
    %2450 = vmatpush.bf16.msra.mxu0 %v1839
    %2451 = vmatpush.bf16.msra.mxu0 %v1835
    %2452 = vmatpush.bf16.msra.mxu0 %v1831
    %2453 = vmatpush.bf16.msra.mxu0 %v1827
    %2454 = vmatpush.bf16.msra.mxu0 %v1823
    %2455 = vmatpush.bf16.msra.mxu0 %v1819
    %2456 = vmatpush.bf16.msra.mxu0 %v1815
    %2457 = vmatpush.bf16.msra.mxu0 %v1811
    %2458 = vmatmul.bf16.gmra.mxu0 %v2229
    %v2459 = vpop.f32.mrf.mxu0
    %v2460 = vadd.f32 %v1611, %v2459
    %v2461 = vpop.f32.mrf.mxu0
    %2462 = vdwg.mxu0
    %2463 = vmatpush.bf16.msra.mxu0 %v1871
    %2464 = vmatpush.bf16.msra.mxu0 %v1867
    %2465 = vmatpush.bf16.msra.mxu0 %v1863
    %2466 = vmatpush.bf16.msra.mxu0 %v1859
    %2467 = vmatpush.bf16.msra.mxu0 %v1855
    %2468 = vmatpush.bf16.msra.mxu0 %v1851
    %2469 = vmatpush.bf16.msra.mxu0 %v1847
    %2470 = vmatpush.bf16.msra.mxu0 %v1843
    %2471 = vmatmul.bf16.gmra.mxu0 %v2397
    %v2472 = vpop.f32.mrf.mxu0
    %v2473 = vadd.f32 %v2460, %v2472
    %v2474 = vpop.f32.mrf.mxu0
    %2475 = vdwg.mxu0
    %2476 = vmatpush.bf16.msra.mxu0 %v1840
    %2477 = vmatpush.bf16.msra.mxu0 %v1836
    %2478 = vmatpush.bf16.msra.mxu0 %v1832
    %2479 = vmatpush.bf16.msra.mxu0 %v1828
    %2480 = vmatpush.bf16.msra.mxu0 %v1824
    %2481 = vmatpush.bf16.msra.mxu0 %v1820
    %2482 = vmatpush.bf16.msra.mxu0 %v1816
    %2483 = vmatpush.bf16.msra.mxu0 %v1812
    %2484 = vmatmul.bf16.gmra.mxu0 %v2229
    %v2485 = vpop.f32.mrf.mxu0
    %v2486 = vadd.f32 %v1612, %v2485
    %v2487 = vpop.f32.mrf.mxu0
    %2488 = vdwg.mxu0
    %2489 = vmatpush.bf16.msra.mxu0 %v1872
    %2490 = vmatpush.bf16.msra.mxu0 %v1868
    %2491 = vmatpush.bf16.msra.mxu0 %v1864
    %2492 = vmatpush.bf16.msra.mxu0 %v1860
    %2493 = vmatpush.bf16.msra.mxu0 %v1856
    %2494 = vmatpush.bf16.msra.mxu0 %v1852
    %2495 = vmatpush.bf16.msra.mxu0 %v1848
    %2496 = vmatpush.bf16.msra.mxu0 %v1844
    %2497 = vmatmul.bf16.gmra.mxu0 %v2397
    %v2498 = vpop.f32.mrf.mxu0
    %v2499 = vadd.f32 %v2486, %v2498
    %v2500 = vpop.f32.mrf.mxu0
    %2501 = vdwg.mxu0
    %v2502 = vxor.u32 %v2421, 2147483648
    %v2503 = vmul.f32 %v2502, 1.442695
    %v2504 = vpow.pop %v2503
    %v2505 = vadd.f32 %v2504, 1.0
    %v2506 = vrcp.pop %v2505
    %v2507 = vmul.f32 %v2505, %v2506
    %v2508 = vsub.f32 1.0, %v2507
    %v2509 = vmul.f32 %v2506, %v2508
    %v2510 = vadd.f32 %v2506, %v2509
    %vm2511 = vweird.f32 %v2505
    %vm2512 = vweird.f32 %v2506
    %vm2513 = vmor %vm2511, %vm2512
    %v2514 = vsel %vm2513, %v2506, %v2510
    %v2515 = vand.u32 2147483647, %v2505
    %vm2516 = vcmp.eq.f32.partialorder %v2515, 8.507059e+37
    %v2517 = vand.u32 %v2505, 2147483648
    %v2518 = vor.u32 1.1754944e-38, %v2517
    %v2519 = vsel %vm2516, %v2518, %v2514
    %v2520 = vmul.f32 1.0, %v2519
    %v2521 = vxor.u32 %v2447, 2147483648
    %v2522 = vmul.f32 %v2521, 1.442695
    %v2523 = vpow.pop %v2522
    %v2524 = vadd.f32 %v2523, 1.0
    %v2525 = vrcp.pop %v2524
    %v2526 = vmul.f32 %v2524, %v2525
    %v2527 = vsub.f32 1.0, %v2526
    %v2528 = vmul.f32 %v2525, %v2527
    %v2529 = vadd.f32 %v2525, %v2528
    %vm2530 = vweird.f32 %v2524
    %vm2531 = vweird.f32 %v2525
    %vm2532 = vmor %vm2530, %vm2531
    %v2533 = vsel %vm2532, %v2525, %v2529
    %v2534 = vand.u32 2147483647, %v2524
    %vm2535 = vcmp.eq.f32.partialorder %v2534, 8.507059e+37
    %v2536 = vand.u32 %v2524, 2147483648
    %v2537 = vor.u32 1.1754944e-38, %v2536
    %v2538 = vsel %vm2535, %v2537, %v2533
    %v2539 = vmul.f32 1.0, %v2538
    %v2540 = vtanh.pop %v2473
    %v2541 = vxor.u32 %v2499, 2147483648
    %v2542 = vmul.f32 %v2541, 1.442695
    %v2543 = vpow.pop %v2542
    %v2544 = vadd.f32 %v2543, 1.0
    %v2545 = vrcp.pop %v2544
    %v2546 = vmul.f32 %v2544, %v2545
    %v2547 = vsub.f32 1.0, %v2546
    %v2548 = vmul.f32 %v2545, %v2547
    %v2549 = vadd.f32 %v2545, %v2548
    %vm2550 = vweird.f32 %v2544
    %vm2551 = vweird.f32 %v2545
    %vm2552 = vmor %vm2550, %vm2551
    %v2553 = vsel %vm2552, %v2545, %v2549
    %v2554 = vand.u32 2147483647, %v2544
    %vm2555 = vcmp.eq.f32.partialorder %v2554, 8.507059e+37
    %v2556 = vand.u32 %v2544, 2147483648
    %v2557 = vor.u32 1.1754944e-38, %v2556
    %v2558 = vsel %vm2555, %v2557, %v2553
    %v2559 = vmul.f32 1.0, %v2558
    %v2560 = vmul.f32 %v2539, %v2101
    %v2561 = vmul.f32 %v2520, %v2540
    %v2562 = vadd.f32 %v2560, %v2561
    %v2563 = vtanh.pop %v2562
    %v2564 = vmul.f32 %v2559, %v2563
    %s2565 = scalar_lea.vmem [#allocation2], 128
    %v2566 = vld [vmem:[%s2565] sm:$0xff]
    %v2567 = vld [vmem:[%s2565 + $0x8] sm:$0xff]
    %v2568 = vld [vmem:[%s2565 + $0x10] sm:$0xff]
    %v2569 = vld [vmem:[%s2565 + $0x18] sm:$0xff]
    %v2570 = vpack.c.bf16 %v2228, %v2228
    %2571 = vmatpush.bf16.msra.mxu0 %v408
    %2572 = vmatpush.bf16.msra.mxu0 %v404
    %2573 = vmatpush.bf16.msra.mxu0 %v400
    %2574 = vmatpush.bf16.msra.mxu0 %v396
    %2575 = vmatpush.bf16.msra.mxu0 %v392
    %2576 = vmatpush.bf16.msra.mxu0 %v388
    %2577 = vmatpush.bf16.msra.mxu0 %v384
    %2578 = vmatpush.bf16.msra.mxu0 %v380
    %2579 = vmatmul.bf16.gmra.mxu0 %v2570
    %v2580 = vpop.f32.mrf.mxu0
    %v2581 = vadd.f32 0.0, %v2580
    %v2582 = vpop.f32.mrf.mxu0
    %2583 = vdwg.mxu0
    %2584 = vmatpush.bf16.msra.mxu0 %v409
    %2585 = vmatpush.bf16.msra.mxu0 %v405
    %2586 = vmatpush.bf16.msra.mxu0 %v401
    %2587 = vmatpush.bf16.msra.mxu0 %v397
    %2588 = vmatpush.bf16.msra.mxu0 %v393
    %2589 = vmatpush.bf16.msra.mxu0 %v389
    %2590 = vmatpush.bf16.msra.mxu0 %v385
    %2591 = vmatpush.bf16.msra.mxu0 %v381
    %2592 = vmatmul.bf16.gmra.mxu0 %v2570
    %v2593 = vpop.f32.mrf.mxu0
    %v2594 = vadd.f32 0.0, %v2593
    %v2595 = vpop.f32.mrf.mxu0
    %2596 = vdwg.mxu0
    %2597 = vmatpush.bf16.msra.mxu0 %v410
    %2598 = vmatpush.bf16.msra.mxu0 %v406
    %2599 = vmatpush.bf16.msra.mxu0 %v402
    %2600 = vmatpush.bf16.msra.mxu0 %v398
    %2601 = vmatpush.bf16.msra.mxu0 %v394
    %2602 = vmatpush.bf16.msra.mxu0 %v390
    %2603 = vmatpush.bf16.msra.mxu0 %v386
    %2604 = vmatpush.bf16.msra.mxu0 %v382
    %2605 = vmatmul.bf16.gmra.mxu0 %v2570
    %v2606 = vpop.f32.mrf.mxu0
    %v2607 = vadd.f32 0.0, %v2606
    %v2608 = vpop.f32.mrf.mxu0
    %2609 = vdwg.mxu0
    %2610 = vmatpush.bf16.msra.mxu0 %v411
    %2611 = vmatpush.bf16.msra.mxu0 %v407
    %2612 = vmatpush.bf16.msra.mxu0 %v403
    %2613 = vmatpush.bf16.msra.mxu0 %v399
    %2614 = vmatpush.bf16.msra.mxu0 %v395
    %2615 = vmatpush.bf16.msra.mxu0 %v391
    %2616 = vmatpush.bf16.msra.mxu0 %v387
    %2617 = vmatpush.bf16.msra.mxu0 %v383
    %2618 = vmatmul.bf16.gmra.mxu0 %v2570
    %v2619 = vpop.f32.mrf.mxu0
    %v2620 = vadd.f32 0.0, %v2619
    %v2621 = vpop.f32.mrf.mxu0
    %2622 = vdwg.mxu0
    %v2623 = vadd.f32 %v2566, %v2581
    %v2624 = vadd.f32 %v2567, %v2594
    %v2625 = vadd.f32 %v2568, %v2607
    %v2626 = vadd.f32 %v2569, %v2620
    %v2627 = vxor.u32 %v2623, 2147483648
    %v2628 = vmul.f32 %v2627, 1.442695
    %v2629 = vpow.pop %v2628
    %v2630 = vadd.f32 %v2629, 1.0
    %v2631 = vrcp.pop %v2630
    %v2632 = vmul.f32 %v2630, %v2631
    %v2633 = vsub.f32 1.0, %v2632
    %v2634 = vmul.f32 %v2631, %v2633
    %v2635 = vadd.f32 %v2631, %v2634
    %vm2636 = vweird.f32 %v2630
    %vm2637 = vweird.f32 %v2631
    %vm2638 = vmor %vm2636, %vm2637
    %v2639 = vsel %vm2638, %v2631, %v2635
    %v2640 = vand.u32 2147483647, %v2630
    %vm2641 = vcmp.eq.f32.partialorder %v2640, 8.507059e+37
    %v2642 = vand.u32 %v2630, 2147483648
    %v2643 = vor.u32 1.1754944e-38, %v2642
    %v2644 = vsel %vm2641, %v2643, %v2639
    %v2645 = vmul.f32 1.0, %v2644
    %v2646 = vxor.u32 %v2624, 2147483648
    %v2647 = vmul.f32 %v2646, 1.442695
    %v2648 = vpow.pop %v2647
    %v2649 = vadd.f32 %v2648, 1.0
    %v2650 = vrcp.pop %v2649
    %v2651 = vmul.f32 %v2649, %v2650
    %v2652 = vsub.f32 1.0, %v2651
    %v2653 = vmul.f32 %v2650, %v2652
    %v2654 = vadd.f32 %v2650, %v2653
    %vm2655 = vweird.f32 %v2649
    %vm2656 = vweird.f32 %v2650
    %vm2657 = vmor %vm2655, %vm2656
    %v2658 = vsel %vm2657, %v2650, %v2654
    %v2659 = vand.u32 2147483647, %v2649
    %vm2660 = vcmp.eq.f32.partialorder %v2659, 8.507059e+37
    %v2661 = vand.u32 %v2649, 2147483648
    %v2662 = vor.u32 1.1754944e-38, %v2661
    %v2663 = vsel %vm2660, %v2662, %v2658
    %v2664 = vmul.f32 1.0, %v2663
    %v2665 = vtanh.pop %v2625
    %v2666 = vxor.u32 %v2626, 2147483648
    %v2667 = vmul.f32 %v2666, 1.442695
    %v2668 = vpow.pop %v2667
    %v2669 = vadd.f32 %v2668, 1.0
    %v2670 = vrcp.pop %v2669
    %v2671 = vmul.f32 %v2669, %v2670
    %v2672 = vsub.f32 1.0, %v2671
    %v2673 = vmul.f32 %v2670, %v2672
    %v2674 = vadd.f32 %v2670, %v2673
    %vm2675 = vweird.f32 %v2669
    %vm2676 = vweird.f32 %v2670
    %vm2677 = vmor %vm2675, %vm2676
    %v2678 = vsel %vm2677, %v2670, %v2674
    %v2679 = vand.u32 2147483647, %v2669
    %vm2680 = vcmp.eq.f32.partialorder %v2679, 8.507059e+37
    %v2681 = vand.u32 %v2669, 2147483648
    %v2682 = vor.u32 1.1754944e-38, %v2681
    %v2683 = vsel %vm2680, %v2682, %v2678
    %v2684 = vmul.f32 1.0, %v2683
    %v2685 = vmul.f32 %v2664, %v2226
    %v2686 = vmul.f32 %v2645, %v2665
    %v2687 = vadd.f32 %v2685, %v2686
    %v2688 = vtanh.pop %v2687
    %v2689 = vmul.f32 %v2684, %v2688
    %v2690 = vpack.c.bf16 %v2396, %v2396
    %2691 = vmatpush.bf16.msra.mxu0 %v983
    %2692 = vmatpush.bf16.msra.mxu0 %v979
    %2693 = vmatpush.bf16.msra.mxu0 %v975
    %2694 = vmatpush.bf16.msra.mxu0 %v971
    %2695 = vmatpush.bf16.msra.mxu0 %v967
    %2696 = vmatpush.bf16.msra.mxu0 %v963
    %2697 = vmatpush.bf16.msra.mxu0 %v959
    %2698 = vmatpush.bf16.msra.mxu0 %v955
    %2699 = vmatmul.bf16.gmra.mxu0 %v2570
    %v2700 = vpop.f32.mrf.mxu0
    %v2701 = vadd.f32 %v755, %v2700
    %v2702 = vpop.f32.mrf.mxu0
    %2703 = vdwg.mxu0
    %2704 = vmatpush.bf16.msra.mxu0 %v1015
    %2705 = vmatpush.bf16.msra.mxu0 %v1011
    %2706 = vmatpush.bf16.msra.mxu0 %v1007
    %2707 = vmatpush.bf16.msra.mxu0 %v1003
    %2708 = vmatpush.bf16.msra.mxu0 %v999
    %2709 = vmatpush.bf16.msra.mxu0 %v995
    %2710 = vmatpush.bf16.msra.mxu0 %v991
    %2711 = vmatpush.bf16.msra.mxu0 %v987
    %2712 = vmatmul.bf16.gmra.mxu0 %v2690
    %v2713 = vpop.f32.mrf.mxu0
    %v2714 = vadd.f32 %v2701, %v2713
    %v2715 = vpop.f32.mrf.mxu0
    %2716 = vdwg.mxu0
    %2717 = vmatpush.bf16.msra.mxu0 %v984
    %2718 = vmatpush.bf16.msra.mxu0 %v980
    %2719 = vmatpush.bf16.msra.mxu0 %v976
    %2720 = vmatpush.bf16.msra.mxu0 %v972
    %2721 = vmatpush.bf16.msra.mxu0 %v968
    %2722 = vmatpush.bf16.msra.mxu0 %v964
    %2723 = vmatpush.bf16.msra.mxu0 %v960
    %2724 = vmatpush.bf16.msra.mxu0 %v956
    %2725 = vmatmul.bf16.gmra.mxu0 %v2570
    %v2726 = vpop.f32.mrf.mxu0
    %v2727 = vadd.f32 %v756, %v2726
    %v2728 = vpop.f32.mrf.mxu0
    %2729 = vdwg.mxu0
    %2730 = vmatpush.bf16.msra.mxu0 %v1016
    %2731 = vmatpush.bf16.msra.mxu0 %v1012
    %2732 = vmatpush.bf16.msra.mxu0 %v1008
    %2733 = vmatpush.bf16.msra.mxu0 %v1004
    %2734 = vmatpush.bf16.msra.mxu0 %v1000
    %2735 = vmatpush.bf16.msra.mxu0 %v996
    %2736 = vmatpush.bf16.msra.mxu0 %v992
    %2737 = vmatpush.bf16.msra.mxu0 %v988
    %2738 = vmatmul.bf16.gmra.mxu0 %v2690
    %v2739 = vpop.f32.mrf.mxu0
    %v2740 = vadd.f32 %v2727, %v2739
    %v2741 = vpop.f32.mrf.mxu0
    %2742 = vdwg.mxu0
    %2743 = vmatpush.bf16.msra.mxu0 %v985
    %2744 = vmatpush.bf16.msra.mxu0 %v981
    %2745 = vmatpush.bf16.msra.mxu0 %v977
    %2746 = vmatpush.bf16.msra.mxu0 %v973
    %2747 = vmatpush.bf16.msra.mxu0 %v969
    %2748 = vmatpush.bf16.msra.mxu0 %v965
    %2749 = vmatpush.bf16.msra.mxu0 %v961
    %2750 = vmatpush.bf16.msra.mxu0 %v957
    %2751 = vmatmul.bf16.gmra.mxu0 %v2570
    %v2752 = vpop.f32.mrf.mxu0
    %v2753 = vadd.f32 %v757, %v2752
    %v2754 = vpop.f32.mrf.mxu0
    %2755 = vdwg.mxu0
    %2756 = vmatpush.bf16.msra.mxu0 %v1017
    %2757 = vmatpush.bf16.msra.mxu0 %v1013
    %2758 = vmatpush.bf16.msra.mxu0 %v1009
    %2759 = vmatpush.bf16.msra.mxu0 %v1005
    %2760 = vmatpush.bf16.msra.mxu0 %v1001
    %2761 = vmatpush.bf16.msra.mxu0 %v997
    %2762 = vmatpush.bf16.msra.mxu0 %v993
    %2763 = vmatpush.bf16.msra.mxu0 %v989
    %2764 = vmatmul.bf16.gmra.mxu0 %v2690
    %v2765 = vpop.f32.mrf.mxu0
    %v2766 = vadd.f32 %v2753, %v2765
    %v2767 = vpop.f32.mrf.mxu0
    %2768 = vdwg.mxu0
    %2769 = vmatpush.bf16.msra.mxu0 %v986
    %2770 = vmatpush.bf16.msra.mxu0 %v982
    %2771 = vmatpush.bf16.msra.mxu0 %v978
    %2772 = vmatpush.bf16.msra.mxu0 %v974
    %2773 = vmatpush.bf16.msra.mxu0 %v970
    %2774 = vmatpush.bf16.msra.mxu0 %v966
    %2775 = vmatpush.bf16.msra.mxu0 %v962
    %2776 = vmatpush.bf16.msra.mxu0 %v958
    %2777 = vmatmul.bf16.gmra.mxu0 %v2570
    %v2778 = vpop.f32.mrf.mxu0
    %v2779 = vadd.f32 %v758, %v2778
    %v2780 = vpop.f32.mrf.mxu0
    %2781 = vdwg.mxu0
    %2782 = vmatpush.bf16.msra.mxu0 %v1018
    %2783 = vmatpush.bf16.msra.mxu0 %v1014
    %2784 = vmatpush.bf16.msra.mxu0 %v1010
    %2785 = vmatpush.bf16.msra.mxu0 %v1006
    %2786 = vmatpush.bf16.msra.mxu0 %v1002
    %2787 = vmatpush.bf16.msra.mxu0 %v998
    %2788 = vmatpush.bf16.msra.mxu0 %v994
    %2789 = vmatpush.bf16.msra.mxu0 %v990
    %2790 = vmatmul.bf16.gmra.mxu0 %v2690
    %v2791 = vpop.f32.mrf.mxu0
    %v2792 = vadd.f32 %v2779, %v2791
    %v2793 = vpop.f32.mrf.mxu0
    %2794 = vdwg.mxu0
    %v2795 = vxor.u32 %v2714, 2147483648
    %v2796 = vmul.f32 %v2795, 1.442695
    %v2797 = vpow.pop %v2796
    %v2798 = vadd.f32 %v2797, 1.0
    %v2799 = vrcp.pop %v2798
    %v2800 = vmul.f32 %v2798, %v2799
    %v2801 = vsub.f32 1.0, %v2800
    %v2802 = vmul.f32 %v2799, %v2801
    %v2803 = vadd.f32 %v2799, %v2802
    %vm2804 = vweird.f32 %v2798
    %vm2805 = vweird.f32 %v2799
    %vm2806 = vmor %vm2804, %vm2805
    %v2807 = vsel %vm2806, %v2799, %v2803
    %v2808 = vand.u32 2147483647, %v2798
    %vm2809 = vcmp.eq.f32.partialorder %v2808, 8.507059e+37
    %v2810 = vand.u32 %v2798, 2147483648
    %v2811 = vor.u32 1.1754944e-38, %v2810
    %v2812 = vsel %vm2809, %v2811, %v2807
    %v2813 = vmul.f32 1.0, %v2812
    %v2814 = vxor.u32 %v2740, 2147483648
    %v2815 = vmul.f32 %v2814, 1.442695
    %v2816 = vpow.pop %v2815
    %v2817 = vadd.f32 %v2816, 1.0
    %v2818 = vrcp.pop %v2817
    %v2819 = vmul.f32 %v2817, %v2818
    %v2820 = vsub.f32 1.0, %v2819
    %v2821 = vmul.f32 %v2818, %v2820
    %v2822 = vadd.f32 %v2818, %v2821
    %vm2823 = vweird.f32 %v2817
    %vm2824 = vweird.f32 %v2818
    %vm2825 = vmor %vm2823, %vm2824
    %v2826 = vsel %vm2825, %v2818, %v2822
    %v2827 = vand.u32 2147483647, %v2817
    %vm2828 = vcmp.eq.f32.partialorder %v2827, 8.507059e+37
    %v2829 = vand.u32 %v2817, 2147483648
    %v2830 = vor.u32 1.1754944e-38, %v2829
    %v2831 = vsel %vm2828, %v2830, %v2826
    %v2832 = vmul.f32 1.0, %v2831
    %v2833 = vtanh.pop %v2766
    %v2834 = vxor.u32 %v2792, 2147483648
    %v2835 = vmul.f32 %v2834, 1.442695
    %v2836 = vpow.pop %v2835
    %v2837 = vadd.f32 %v2836, 1.0
    %v2838 = vrcp.pop %v2837
    %v2839 = vmul.f32 %v2837, %v2838
    %v2840 = vsub.f32 1.0, %v2839
    %v2841 = vmul.f32 %v2838, %v2840
    %v2842 = vadd.f32 %v2838, %v2841
    %vm2843 = vweird.f32 %v2837
    %vm2844 = vweird.f32 %v2838
    %vm2845 = vmor %vm2843, %vm2844
    %v2846 = vsel %vm2845, %v2838, %v2842
    %v2847 = vand.u32 2147483647, %v2837
    %vm2848 = vcmp.eq.f32.partialorder %v2847, 8.507059e+37
    %v2849 = vand.u32 %v2837, 2147483648
    %v2850 = vor.u32 1.1754944e-38, %v2849
    %v2851 = vsel %vm2848, %v2850, %v2846
    %v2852 = vmul.f32 1.0, %v2851
    %v2853 = vmul.f32 %v2832, %v2394
    %v2854 = vmul.f32 %v2813, %v2833
    %v2855 = vadd.f32 %v2853, %v2854
    %v2856 = vtanh.pop %v2855
    %v2857 = vmul.f32 %v2852, %v2856
    %v2858 = vpack.c.bf16 %v2564, %v2564
    %2859 = vmatpush.bf16.msra.mxu0 %v1837
    %2860 = vmatpush.bf16.msra.mxu0 %v1833
    %2861 = vmatpush.bf16.msra.mxu0 %v1829
    %2862 = vmatpush.bf16.msra.mxu0 %v1825
    %2863 = vmatpush.bf16.msra.mxu0 %v1821
    %2864 = vmatpush.bf16.msra.mxu0 %v1817
    %2865 = vmatpush.bf16.msra.mxu0 %v1813
    %2866 = vmatpush.bf16.msra.mxu0 %v1809
    %2867 = vmatmul.bf16.gmra.mxu0 %v2690
    %v2868 = vpop.f32.mrf.mxu0
    %v2869 = vadd.f32 %v1609, %v2868
    %v2870 = vpop.f32.mrf.mxu0
    %2871 = vdwg.mxu0
    %2872 = vmatpush.bf16.msra.mxu0 %v1869
    %2873 = vmatpush.bf16.msra.mxu0 %v1865
    %2874 = vmatpush.bf16.msra.mxu0 %v1861
    %2875 = vmatpush.bf16.msra.mxu0 %v1857
    %2876 = vmatpush.bf16.msra.mxu0 %v1853
    %2877 = vmatpush.bf16.msra.mxu0 %v1849
    %2878 = vmatpush.bf16.msra.mxu0 %v1845
    %2879 = vmatpush.bf16.msra.mxu0 %v1841
    %2880 = vmatmul.bf16.gmra.mxu0 %v2858
    %v2881 = vpop.f32.mrf.mxu0
    %v2882 = vadd.f32 %v2869, %v2881
    %v2883 = vpop.f32.mrf.mxu0
    %2884 = vdwg.mxu0
    %2885 = vmatpush.bf16.msra.mxu0 %v1838
    %2886 = vmatpush.bf16.msra.mxu0 %v1834
    %2887 = vmatpush.bf16.msra.mxu0 %v1830
    %2888 = vmatpush.bf16.msra.mxu0 %v1826
    %2889 = vmatpush.bf16.msra.mxu0 %v1822
    %2890 = vmatpush.bf16.msra.mxu0 %v1818
    %2891 = vmatpush.bf16.msra.mxu0 %v1814
    %2892 = vmatpush.bf16.msra.mxu0 %v1810
    %2893 = vmatmul.bf16.gmra.mxu0 %v2690
    %v2894 = vpop.f32.mrf.mxu0
    %v2895 = vadd.f32 %v1610, %v2894
    %v2896 = vpop.f32.mrf.mxu0
    %2897 = vdwg.mxu0
    %2898 = vmatpush.bf16.msra.mxu0 %v1870
    %2899 = vmatpush.bf16.msra.mxu0 %v1866
    %2900 = vmatpush.bf16.msra.mxu0 %v1862
    %2901 = vmatpush.bf16.msra.mxu0 %v1858
    %2902 = vmatpush.bf16.msra.mxu0 %v1854
    %2903 = vmatpush.bf16.msra.mxu0 %v1850
    %2904 = vmatpush.bf16.msra.mxu0 %v1846
    %2905 = vmatpush.bf16.msra.mxu0 %v1842
    %2906 = vmatmul.bf16.gmra.mxu0 %v2858
    %v2907 = vpop.f32.mrf.mxu0
    %v2908 = vadd.f32 %v2895, %v2907
    %v2909 = vpop.f32.mrf.mxu0
    %2910 = vdwg.mxu0
    %2911 = vmatpush.bf16.msra.mxu0 %v1839
    %2912 = vmatpush.bf16.msra.mxu0 %v1835
    %2913 = vmatpush.bf16.msra.mxu0 %v1831
    %2914 = vmatpush.bf16.msra.mxu0 %v1827
    %2915 = vmatpush.bf16.msra.mxu0 %v1823
    %2916 = vmatpush.bf16.msra.mxu0 %v1819
    %2917 = vmatpush.bf16.msra.mxu0 %v1815
    %2918 = vmatpush.bf16.msra.mxu0 %v1811
    %2919 = vmatmul.bf16.gmra.mxu0 %v2690
    %v2920 = vpop.f32.mrf.mxu0
    %v2921 = vadd.f32 %v1611, %v2920
    %v2922 = vpop.f32.mrf.mxu0
    %2923 = vdwg.mxu0
    %2924 = vmatpush.bf16.msra.mxu0 %v1871
    %2925 = vmatpush.bf16.msra.mxu0 %v1867
    %2926 = vmatpush.bf16.msra.mxu0 %v1863
    %2927 = vmatpush.bf16.msra.mxu0 %v1859
    %2928 = vmatpush.bf16.msra.mxu0 %v1855
    %2929 = vmatpush.bf16.msra.mxu0 %v1851
    %2930 = vmatpush.bf16.msra.mxu0 %v1847
    %2931 = vmatpush.bf16.msra.mxu0 %v1843
    %2932 = vmatmul.bf16.gmra.mxu0 %v2858
    %v2933 = vpop.f32.mrf.mxu0
    %v2934 = vadd.f32 %v2921, %v2933
    %v2935 = vpop.f32.mrf.mxu0
    %2936 = vdwg.mxu0
    %2937 = vmatpush.bf16.msra.mxu0 %v1840
    %2938 = vmatpush.bf16.msra.mxu0 %v1836
    %2939 = vmatpush.bf16.msra.mxu0 %v1832
    %2940 = vmatpush.bf16.msra.mxu0 %v1828
    %2941 = vmatpush.bf16.msra.mxu0 %v1824
    %2942 = vmatpush.bf16.msra.mxu0 %v1820
    %2943 = vmatpush.bf16.msra.mxu0 %v1816
    %2944 = vmatpush.bf16.msra.mxu0 %v1812
    %2945 = vmatmul.bf16.gmra.mxu0 %v2690
    %v2946 = vpop.f32.mrf.mxu0
    %v2947 = vadd.f32 %v1612, %v2946
    %v2948 = vpop.f32.mrf.mxu0
    %2949 = vdwg.mxu0
    %2950 = vmatpush.bf16.msra.mxu0 %v1872
    %2951 = vmatpush.bf16.msra.mxu0 %v1868
    %2952 = vmatpush.bf16.msra.mxu0 %v1864
    %2953 = vmatpush.bf16.msra.mxu0 %v1860
    %2954 = vmatpush.bf16.msra.mxu0 %v1856
    %2955 = vmatpush.bf16.msra.mxu0 %v1852
    %2956 = vmatpush.bf16.msra.mxu0 %v1848
    %2957 = vmatpush.bf16.msra.mxu0 %v1844
    %2958 = vmatmul.bf16.gmra.mxu0 %v2858
    %v2959 = vpop.f32.mrf.mxu0
    %v2960 = vadd.f32 %v2947, %v2959
    %v2961 = vpop.f32.mrf.mxu0
    %2962 = vdwg.mxu0
    %v2963 = vxor.u32 %v2882, 2147483648
    %v2964 = vmul.f32 %v2963, 1.442695
    %v2965 = vpow.pop %v2964
    %v2966 = vadd.f32 %v2965, 1.0
    %v2967 = vrcp.pop %v2966
    %v2968 = vmul.f32 %v2966, %v2967
    %v2969 = vsub.f32 1.0, %v2968
    %v2970 = vmul.f32 %v2967, %v2969
    %v2971 = vadd.f32 %v2967, %v2970
    %vm2972 = vweird.f32 %v2966
    %vm2973 = vweird.f32 %v2967
    %vm2974 = vmor %vm2972, %vm2973
    %v2975 = vsel %vm2974, %v2967, %v2971
    %v2976 = vand.u32 2147483647, %v2966
    %vm2977 = vcmp.eq.f32.partialorder %v2976, 8.507059e+37
    %v2978 = vand.u32 %v2966, 2147483648
    %v2979 = vor.u32 1.1754944e-38, %v2978
    %v2980 = vsel %vm2977, %v2979, %v2975
    %v2981 = vmul.f32 1.0, %v2980
    %v2982 = vxor.u32 %v2908, 2147483648
    %v2983 = vmul.f32 %v2982, 1.442695
    %v2984 = vpow.pop %v2983
    %v2985 = vadd.f32 %v2984, 1.0
    %v2986 = vrcp.pop %v2985
    %v2987 = vmul.f32 %v2985, %v2986
    %v2988 = vsub.f32 1.0, %v2987
    %v2989 = vmul.f32 %v2986, %v2988
    %v2990 = vadd.f32 %v2986, %v2989
    %vm2991 = vweird.f32 %v2985
    %vm2992 = vweird.f32 %v2986
    %vm2993 = vmor %vm2991, %vm2992
    %v2994 = vsel %vm2993, %v2986, %v2990
    %v2995 = vand.u32 2147483647, %v2985
    %vm2996 = vcmp.eq.f32.partialorder %v2995, 8.507059e+37
    %v2997 = vand.u32 %v2985, 2147483648
    %v2998 = vor.u32 1.1754944e-38, %v2997
    %v2999 = vsel %vm2996, %v2998, %v2994
    %v3000 = vmul.f32 1.0, %v2999
    %v3001 = vtanh.pop %v2934
    %v3002 = vxor.u32 %v2960, 2147483648
    %v3003 = vmul.f32 %v3002, 1.442695
    %v3004 = vpow.pop %v3003
    %v3005 = vadd.f32 %v3004, 1.0
    %v3006 = vrcp.pop %v3005
    %v3007 = vmul.f32 %v3005, %v3006
    %v3008 = vsub.f32 1.0, %v3007
    %v3009 = vmul.f32 %v3006, %v3008
    %v3010 = vadd.f32 %v3006, %v3009
    %vm3011 = vweird.f32 %v3005
    %vm3012 = vweird.f32 %v3006
    %vm3013 = vmor %vm3011, %vm3012
    %v3014 = vsel %vm3013, %v3006, %v3010
    %v3015 = vand.u32 2147483647, %v3005
    %vm3016 = vcmp.eq.f32.partialorder %v3015, 8.507059e+37
    %v3017 = vand.u32 %v3005, 2147483648
    %v3018 = vor.u32 1.1754944e-38, %v3017
    %v3019 = vsel %vm3016, %v3018, %v3014
    %v3020 = vmul.f32 1.0, %v3019
    %v3021 = vmul.f32 %v3000, %v2562
    %v3022 = vmul.f32 %v2981, %v3001
    %v3023 = vadd.f32 %v3021, %v3022
    %v3024 = vtanh.pop %v3023
    %v3025 = vmul.f32 %v3020, %v3024
    %s3026 = scalar_lea.vmem [#allocation2], 160
    %v3027 = vld [vmem:[%s3026] sm:$0xff]
    %v3028 = vld [vmem:[%s3026 + $0x8] sm:$0xff]
    %v3029 = vld [vmem:[%s3026 + $0x10] sm:$0xff]
    %v3030 = vld [vmem:[%s3026 + $0x18] sm:$0xff]
    %v3031 = vpack.c.bf16 %v2689, %v2689
    %3032 = vmatpush.bf16.msra.mxu0 %v408
    %3033 = vmatpush.bf16.msra.mxu0 %v404
    %3034 = vmatpush.bf16.msra.mxu0 %v400
    %3035 = vmatpush.bf16.msra.mxu0 %v396
    %3036 = vmatpush.bf16.msra.mxu0 %v392
    %3037 = vmatpush.bf16.msra.mxu0 %v388
    %3038 = vmatpush.bf16.msra.mxu0 %v384
    %3039 = vmatpush.bf16.msra.mxu0 %v380
    %3040 = vmatmul.bf16.gmra.mxu0 %v3031
    %v3041 = vpop.f32.mrf.mxu0
    %v3042 = vadd.f32 0.0, %v3041
    %v3043 = vpop.f32.mrf.mxu0
    %3044 = vdwg.mxu0
    %3045 = vmatpush.bf16.msra.mxu0 %v409
    %3046 = vmatpush.bf16.msra.mxu0 %v405
    %3047 = vmatpush.bf16.msra.mxu0 %v401
    %3048 = vmatpush.bf16.msra.mxu0 %v397
    %3049 = vmatpush.bf16.msra.mxu0 %v393
    %3050 = vmatpush.bf16.msra.mxu0 %v389
    %3051 = vmatpush.bf16.msra.mxu0 %v385
    %3052 = vmatpush.bf16.msra.mxu0 %v381
    %3053 = vmatmul.bf16.gmra.mxu0 %v3031
    %v3054 = vpop.f32.mrf.mxu0
    %v3055 = vadd.f32 0.0, %v3054
    %v3056 = vpop.f32.mrf.mxu0
    %3057 = vdwg.mxu0
    %3058 = vmatpush.bf16.msra.mxu0 %v410
    %3059 = vmatpush.bf16.msra.mxu0 %v406
    %3060 = vmatpush.bf16.msra.mxu0 %v402
    %3061 = vmatpush.bf16.msra.mxu0 %v398
    %3062 = vmatpush.bf16.msra.mxu0 %v394
    %3063 = vmatpush.bf16.msra.mxu0 %v390
    %3064 = vmatpush.bf16.msra.mxu0 %v386
    %3065 = vmatpush.bf16.msra.mxu0 %v382
    %3066 = vmatmul.bf16.gmra.mxu0 %v3031
    %v3067 = vpop.f32.mrf.mxu0
    %v3068 = vadd.f32 0.0, %v3067
    %v3069 = vpop.f32.mrf.mxu0
    %3070 = vdwg.mxu0
    %3071 = vmatpush.bf16.msra.mxu0 %v411
    %3072 = vmatpush.bf16.msra.mxu0 %v407
    %3073 = vmatpush.bf16.msra.mxu0 %v403
    %3074 = vmatpush.bf16.msra.mxu0 %v399
    %3075 = vmatpush.bf16.msra.mxu0 %v395
    %3076 = vmatpush.bf16.msra.mxu0 %v391
    %3077 = vmatpush.bf16.msra.mxu0 %v387
    %3078 = vmatpush.bf16.msra.mxu0 %v383
    %3079 = vmatmul.bf16.gmra.mxu0 %v3031
    %v3080 = vpop.f32.mrf.mxu0
    %v3081 = vadd.f32 0.0, %v3080
    %v3082 = vpop.f32.mrf.mxu0
    %3083 = vdwg.mxu0
    %v3084 = vadd.f32 %v3027, %v3042
    %v3085 = vadd.f32 %v3028, %v3055
    %v3086 = vadd.f32 %v3029, %v3068
    %v3087 = vadd.f32 %v3030, %v3081
    %v3088 = vxor.u32 %v3084, 2147483648
    %v3089 = vmul.f32 %v3088, 1.442695
    %v3090 = vpow.pop %v3089
    %v3091 = vadd.f32 %v3090, 1.0
    %v3092 = vrcp.pop %v3091
    %v3093 = vmul.f32 %v3091, %v3092
    %v3094 = vsub.f32 1.0, %v3093
    %v3095 = vmul.f32 %v3092, %v3094
    %v3096 = vadd.f32 %v3092, %v3095
    %vm3097 = vweird.f32 %v3091
    %vm3098 = vweird.f32 %v3092
    %vm3099 = vmor %vm3097, %vm3098
    %v3100 = vsel %vm3099, %v3092, %v3096
    %v3101 = vand.u32 2147483647, %v3091
    %vm3102 = vcmp.eq.f32.partialorder %v3101, 8.507059e+37
    %v3103 = vand.u32 %v3091, 2147483648
    %v3104 = vor.u32 1.1754944e-38, %v3103
    %v3105 = vsel %vm3102, %v3104, %v3100
    %v3106 = vmul.f32 1.0, %v3105
    %v3107 = vxor.u32 %v3085, 2147483648
    %v3108 = vmul.f32 %v3107, 1.442695
    %v3109 = vpow.pop %v3108
    %v3110 = vadd.f32 %v3109, 1.0
    %v3111 = vrcp.pop %v3110
    %v3112 = vmul.f32 %v3110, %v3111
    %v3113 = vsub.f32 1.0, %v3112
    %v3114 = vmul.f32 %v3111, %v3113
    %v3115 = vadd.f32 %v3111, %v3114
    %vm3116 = vweird.f32 %v3110
    %vm3117 = vweird.f32 %v3111
    %vm3118 = vmor %vm3116, %vm3117
    %v3119 = vsel %vm3118, %v3111, %v3115
    %v3120 = vand.u32 2147483647, %v3110
    %vm3121 = vcmp.eq.f32.partialorder %v3120, 8.507059e+37
    %v3122 = vand.u32 %v3110, 2147483648
    %v3123 = vor.u32 1.1754944e-38, %v3122
    %v3124 = vsel %vm3121, %v3123, %v3119
    %v3125 = vmul.f32 1.0, %v3124
    %v3126 = vtanh.pop %v3086
    %v3127 = vxor.u32 %v3087, 2147483648
    %v3128 = vmul.f32 %v3127, 1.442695
    %v3129 = vpow.pop %v3128
    %v3130 = vadd.f32 %v3129, 1.0
    %v3131 = vrcp.pop %v3130
    %v3132 = vmul.f32 %v3130, %v3131
    %v3133 = vsub.f32 1.0, %v3132
    %v3134 = vmul.f32 %v3131, %v3133
    %v3135 = vadd.f32 %v3131, %v3134
    %vm3136 = vweird.f32 %v3130
    %vm3137 = vweird.f32 %v3131
    %vm3138 = vmor %vm3136, %vm3137
    %v3139 = vsel %vm3138, %v3131, %v3135
    %v3140 = vand.u32 2147483647, %v3130
    %vm3141 = vcmp.eq.f32.partialorder %v3140, 8.507059e+37
    %v3142 = vand.u32 %v3130, 2147483648
    %v3143 = vor.u32 1.1754944e-38, %v3142
    %v3144 = vsel %vm3141, %v3143, %v3139
    %v3145 = vmul.f32 1.0, %v3144
    %v3146 = vmul.f32 %v3125, %v2687
    %v3147 = vmul.f32 %v3106, %v3126
    %v3148 = vadd.f32 %v3146, %v3147
    %v3149 = vtanh.pop %v3148
    %v3150 = vmul.f32 %v3145, %v3149
    %v3151 = vpack.c.bf16 %v2857, %v2857
    %3152 = vmatpush.bf16.msra.mxu0 %v983
    %3153 = vmatpush.bf16.msra.mxu0 %v979
    %3154 = vmatpush.bf16.msra.mxu0 %v975
    %3155 = vmatpush.bf16.msra.mxu0 %v971
    %3156 = vmatpush.bf16.msra.mxu0 %v967
    %3157 = vmatpush.bf16.msra.mxu0 %v963
    %3158 = vmatpush.bf16.msra.mxu0 %v959
    %3159 = vmatpush.bf16.msra.mxu0 %v955
    %3160 = vmatmul.bf16.gmra.mxu0 %v3031
    %v3161 = vpop.f32.mrf.mxu0
    %v3162 = vadd.f32 %v755, %v3161
    %v3163 = vpop.f32.mrf.mxu0
    %3164 = vdwg.mxu0
    %3165 = vmatpush.bf16.msra.mxu0 %v1015
    %3166 = vmatpush.bf16.msra.mxu0 %v1011
    %3167 = vmatpush.bf16.msra.mxu0 %v1007
    %3168 = vmatpush.bf16.msra.mxu0 %v1003
    %3169 = vmatpush.bf16.msra.mxu0 %v999
    %3170 = vmatpush.bf16.msra.mxu0 %v995
    %3171 = vmatpush.bf16.msra.mxu0 %v991
    %3172 = vmatpush.bf16.msra.mxu0 %v987
    %3173 = vmatmul.bf16.gmra.mxu0 %v3151
    %v3174 = vpop.f32.mrf.mxu0
    %v3175 = vadd.f32 %v3162, %v3174
    %v3176 = vpop.f32.mrf.mxu0
    %3177 = vdwg.mxu0
    %3178 = vmatpush.bf16.msra.mxu0 %v984
    %3179 = vmatpush.bf16.msra.mxu0 %v980
    %3180 = vmatpush.bf16.msra.mxu0 %v976
    %3181 = vmatpush.bf16.msra.mxu0 %v972
    %3182 = vmatpush.bf16.msra.mxu0 %v968
    %3183 = vmatpush.bf16.msra.mxu0 %v964
    %3184 = vmatpush.bf16.msra.mxu0 %v960
    %3185 = vmatpush.bf16.msra.mxu0 %v956
    %3186 = vmatmul.bf16.gmra.mxu0 %v3031
    %v3187 = vpop.f32.mrf.mxu0
    %v3188 = vadd.f32 %v756, %v3187
    %v3189 = vpop.f32.mrf.mxu0
    %3190 = vdwg.mxu0
    %3191 = vmatpush.bf16.msra.mxu0 %v1016
    %3192 = vmatpush.bf16.msra.mxu0 %v1012
    %3193 = vmatpush.bf16.msra.mxu0 %v1008
    %3194 = vmatpush.bf16.msra.mxu0 %v1004
    %3195 = vmatpush.bf16.msra.mxu0 %v1000
    %3196 = vmatpush.bf16.msra.mxu0 %v996
    %3197 = vmatpush.bf16.msra.mxu0 %v992
    %3198 = vmatpush.bf16.msra.mxu0 %v988
    %3199 = vmatmul.bf16.gmra.mxu0 %v3151
    %v3200 = vpop.f32.mrf.mxu0
    %v3201 = vadd.f32 %v3188, %v3200
    %v3202 = vpop.f32.mrf.mxu0
    %3203 = vdwg.mxu0
    %3204 = vmatpush.bf16.msra.mxu0 %v985
    %3205 = vmatpush.bf16.msra.mxu0 %v981
    %3206 = vmatpush.bf16.msra.mxu0 %v977
    %3207 = vmatpush.bf16.msra.mxu0 %v973
    %3208 = vmatpush.bf16.msra.mxu0 %v969
    %3209 = vmatpush.bf16.msra.mxu0 %v965
    %3210 = vmatpush.bf16.msra.mxu0 %v961
    %3211 = vmatpush.bf16.msra.mxu0 %v957
    %3212 = vmatmul.bf16.gmra.mxu0 %v3031
    %v3213 = vpop.f32.mrf.mxu0
    %v3214 = vadd.f32 %v757, %v3213
    %v3215 = vpop.f32.mrf.mxu0
    %3216 = vdwg.mxu0
    %3217 = vmatpush.bf16.msra.mxu0 %v1017
    %3218 = vmatpush.bf16.msra.mxu0 %v1013
    %3219 = vmatpush.bf16.msra.mxu0 %v1009
    %3220 = vmatpush.bf16.msra.mxu0 %v1005
    %3221 = vmatpush.bf16.msra.mxu0 %v1001
    %3222 = vmatpush.bf16.msra.mxu0 %v997
    %3223 = vmatpush.bf16.msra.mxu0 %v993
    %3224 = vmatpush.bf16.msra.mxu0 %v989
    %3225 = vmatmul.bf16.gmra.mxu0 %v3151
    %v3226 = vpop.f32.mrf.mxu0
    %v3227 = vadd.f32 %v3214, %v3226
    %v3228 = vpop.f32.mrf.mxu0
    %3229 = vdwg.mxu0
    %3230 = vmatpush.bf16.msra.mxu0 %v986
    %3231 = vmatpush.bf16.msra.mxu0 %v982
    %3232 = vmatpush.bf16.msra.mxu0 %v978
    %3233 = vmatpush.bf16.msra.mxu0 %v974
    %3234 = vmatpush.bf16.msra.mxu0 %v970
    %3235 = vmatpush.bf16.msra.mxu0 %v966
    %3236 = vmatpush.bf16.msra.mxu0 %v962
    %3237 = vmatpush.bf16.msra.mxu0 %v958
    %3238 = vmatmul.bf16.gmra.mxu0 %v3031
    %v3239 = vpop.f32.mrf.mxu0
    %v3240 = vadd.f32 %v758, %v3239
    %v3241 = vpop.f32.mrf.mxu0
    %3242 = vdwg.mxu0
    %3243 = vmatpush.bf16.msra.mxu0 %v1018
    %3244 = vmatpush.bf16.msra.mxu0 %v1014
    %3245 = vmatpush.bf16.msra.mxu0 %v1010
    %3246 = vmatpush.bf16.msra.mxu0 %v1006
    %3247 = vmatpush.bf16.msra.mxu0 %v1002
    %3248 = vmatpush.bf16.msra.mxu0 %v998
    %3249 = vmatpush.bf16.msra.mxu0 %v994
    %3250 = vmatpush.bf16.msra.mxu0 %v990
    %3251 = vmatmul.bf16.gmra.mxu0 %v3151
    %v3252 = vpop.f32.mrf.mxu0
    %v3253 = vadd.f32 %v3240, %v3252
    %v3254 = vpop.f32.mrf.mxu0
    %3255 = vdwg.mxu0
    %v3256 = vxor.u32 %v3175, 2147483648
    %v3257 = vmul.f32 %v3256, 1.442695
    %v3258 = vpow.pop %v3257
    %v3259 = vadd.f32 %v3258, 1.0
    %v3260 = vrcp.pop %v3259
    %v3261 = vmul.f32 %v3259, %v3260
    %v3262 = vsub.f32 1.0, %v3261
    %v3263 = vmul.f32 %v3260, %v3262
    %v3264 = vadd.f32 %v3260, %v3263
    %vm3265 = vweird.f32 %v3259
    %vm3266 = vweird.f32 %v3260
    %vm3267 = vmor %vm3265, %vm3266
    %v3268 = vsel %vm3267, %v3260, %v3264
    %v3269 = vand.u32 2147483647, %v3259
    %vm3270 = vcmp.eq.f32.partialorder %v3269, 8.507059e+37
    %v3271 = vand.u32 %v3259, 2147483648
    %v3272 = vor.u32 1.1754944e-38, %v3271
    %v3273 = vsel %vm3270, %v3272, %v3268
    %v3274 = vmul.f32 1.0, %v3273
    %v3275 = vxor.u32 %v3201, 2147483648
    %v3276 = vmul.f32 %v3275, 1.442695
    %v3277 = vpow.pop %v3276
    %v3278 = vadd.f32 %v3277, 1.0
    %v3279 = vrcp.pop %v3278
    %v3280 = vmul.f32 %v3278, %v3279
    %v3281 = vsub.f32 1.0, %v3280
    %v3282 = vmul.f32 %v3279, %v3281
    %v3283 = vadd.f32 %v3279, %v3282
    %vm3284 = vweird.f32 %v3278
    %vm3285 = vweird.f32 %v3279
    %vm3286 = vmor %vm3284, %vm3285
    %v3287 = vsel %vm3286, %v3279, %v3283
    %v3288 = vand.u32 2147483647, %v3278
    %vm3289 = vcmp.eq.f32.partialorder %v3288, 8.507059e+37
    %v3290 = vand.u32 %v3278, 2147483648
    %v3291 = vor.u32 1.1754944e-38, %v3290
    %v3292 = vsel %vm3289, %v3291, %v3287
    %v3293 = vmul.f32 1.0, %v3292
    %v3294 = vtanh.pop %v3227
    %v3295 = vxor.u32 %v3253, 2147483648
    %v3296 = vmul.f32 %v3295, 1.442695
    %v3297 = vpow.pop %v3296
    %v3298 = vadd.f32 %v3297, 1.0
    %v3299 = vrcp.pop %v3298
    %v3300 = vmul.f32 %v3298, %v3299
    %v3301 = vsub.f32 1.0, %v3300
    %v3302 = vmul.f32 %v3299, %v3301
    %v3303 = vadd.f32 %v3299, %v3302
    %vm3304 = vweird.f32 %v3298
    %vm3305 = vweird.f32 %v3299
    %vm3306 = vmor %vm3304, %vm3305
    %v3307 = vsel %vm3306, %v3299, %v3303
    %v3308 = vand.u32 2147483647, %v3298
    %vm3309 = vcmp.eq.f32.partialorder %v3308, 8.507059e+37
    %v3310 = vand.u32 %v3298, 2147483648
    %v3311 = vor.u32 1.1754944e-38, %v3310
    %v3312 = vsel %vm3309, %v3311, %v3307
    %v3313 = vmul.f32 1.0, %v3312
    %v3314 = vmul.f32 %v3293, %v2855
    %v3315 = vmul.f32 %v3274, %v3294
    %v3316 = vadd.f32 %v3314, %v3315
    %v3317 = vtanh.pop %v3316
    %v3318 = vmul.f32 %v3313, %v3317
    %v3319 = vpack.c.bf16 %v3025, %v3025
    %3320 = vmatpush.bf16.msra.mxu0 %v1837
    %3321 = vmatpush.bf16.msra.mxu0 %v1833
    %3322 = vmatpush.bf16.msra.mxu0 %v1829
    %3323 = vmatpush.bf16.msra.mxu0 %v1825
    %3324 = vmatpush.bf16.msra.mxu0 %v1821
    %3325 = vmatpush.bf16.msra.mxu0 %v1817
    %3326 = vmatpush.bf16.msra.mxu0 %v1813
    %3327 = vmatpush.bf16.msra.mxu0 %v1809
    %3328 = vmatmul.bf16.gmra.mxu0 %v3151
    %v3329 = vpop.f32.mrf.mxu0
    %v3330 = vadd.f32 %v1609, %v3329
    %v3331 = vpop.f32.mrf.mxu0
    %3332 = vdwg.mxu0
    %3333 = vmatpush.bf16.msra.mxu0 %v1869
    %3334 = vmatpush.bf16.msra.mxu0 %v1865
    %3335 = vmatpush.bf16.msra.mxu0 %v1861
    %3336 = vmatpush.bf16.msra.mxu0 %v1857
    %3337 = vmatpush.bf16.msra.mxu0 %v1853
    %3338 = vmatpush.bf16.msra.mxu0 %v1849
    %3339 = vmatpush.bf16.msra.mxu0 %v1845
    %3340 = vmatpush.bf16.msra.mxu0 %v1841
    %3341 = vmatmul.bf16.gmra.mxu0 %v3319
    %v3342 = vpop.f32.mrf.mxu0
    %v3343 = vadd.f32 %v3330, %v3342
    %v3344 = vpop.f32.mrf.mxu0
    %3345 = vdwg.mxu0
    %3346 = vmatpush.bf16.msra.mxu0 %v1838
    %3347 = vmatpush.bf16.msra.mxu0 %v1834
    %3348 = vmatpush.bf16.msra.mxu0 %v1830
    %3349 = vmatpush.bf16.msra.mxu0 %v1826
    %3350 = vmatpush.bf16.msra.mxu0 %v1822
    %3351 = vmatpush.bf16.msra.mxu0 %v1818
    %3352 = vmatpush.bf16.msra.mxu0 %v1814
    %3353 = vmatpush.bf16.msra.mxu0 %v1810
    %3354 = vmatmul.bf16.gmra.mxu0 %v3151
    %v3355 = vpop.f32.mrf.mxu0
    %v3356 = vadd.f32 %v1610, %v3355
    %v3357 = vpop.f32.mrf.mxu0
    %3358 = vdwg.mxu0
    %3359 = vmatpush.bf16.msra.mxu0 %v1870
    %3360 = vmatpush.bf16.msra.mxu0 %v1866
    %3361 = vmatpush.bf16.msra.mxu0 %v1862
    %3362 = vmatpush.bf16.msra.mxu0 %v1858
    %3363 = vmatpush.bf16.msra.mxu0 %v1854
    %3364 = vmatpush.bf16.msra.mxu0 %v1850
    %3365 = vmatpush.bf16.msra.mxu0 %v1846
    %3366 = vmatpush.bf16.msra.mxu0 %v1842
    %3367 = vmatmul.bf16.gmra.mxu0 %v3319
    %v3368 = vpop.f32.mrf.mxu0
    %v3369 = vadd.f32 %v3356, %v3368
    %v3370 = vpop.f32.mrf.mxu0
    %3371 = vdwg.mxu0
    %3372 = vmatpush.bf16.msra.mxu0 %v1839
    %3373 = vmatpush.bf16.msra.mxu0 %v1835
    %3374 = vmatpush.bf16.msra.mxu0 %v1831
    %3375 = vmatpush.bf16.msra.mxu0 %v1827
    %3376 = vmatpush.bf16.msra.mxu0 %v1823
    %3377 = vmatpush.bf16.msra.mxu0 %v1819
    %3378 = vmatpush.bf16.msra.mxu0 %v1815
    %3379 = vmatpush.bf16.msra.mxu0 %v1811
    %3380 = vmatmul.bf16.gmra.mxu0 %v3151
    %v3381 = vpop.f32.mrf.mxu0
    %v3382 = vadd.f32 %v1611, %v3381
    %v3383 = vpop.f32.mrf.mxu0
    %3384 = vdwg.mxu0
    %3385 = vmatpush.bf16.msra.mxu0 %v1871
    %3386 = vmatpush.bf16.msra.mxu0 %v1867
    %3387 = vmatpush.bf16.msra.mxu0 %v1863
    %3388 = vmatpush.bf16.msra.mxu0 %v1859
    %3389 = vmatpush.bf16.msra.mxu0 %v1855
    %3390 = vmatpush.bf16.msra.mxu0 %v1851
    %3391 = vmatpush.bf16.msra.mxu0 %v1847
    %3392 = vmatpush.bf16.msra.mxu0 %v1843
    %3393 = vmatmul.bf16.gmra.mxu0 %v3319
    %v3394 = vpop.f32.mrf.mxu0
    %v3395 = vadd.f32 %v3382, %v3394
    %v3396 = vpop.f32.mrf.mxu0
    %3397 = vdwg.mxu0
    %3398 = vmatpush.bf16.msra.mxu0 %v1840
    %3399 = vmatpush.bf16.msra.mxu0 %v1836
    %3400 = vmatpush.bf16.msra.mxu0 %v1832
    %3401 = vmatpush.bf16.msra.mxu0 %v1828
    %3402 = vmatpush.bf16.msra.mxu0 %v1824
    %3403 = vmatpush.bf16.msra.mxu0 %v1820
    %3404 = vmatpush.bf16.msra.mxu0 %v1816
    %3405 = vmatpush.bf16.msra.mxu0 %v1812
    %3406 = vmatmul.bf16.gmra.mxu0 %v3151
    %v3407 = vpop.f32.mrf.mxu0
    %v3408 = vadd.f32 %v1612, %v3407
    %v3409 = vpop.f32.mrf.mxu0
    %3410 = vdwg.mxu0
    %3411 = vmatpush.bf16.msra.mxu0 %v1872
    %3412 = vmatpush.bf16.msra.mxu0 %v1868
    %3413 = vmatpush.bf16.msra.mxu0 %v1864
    %3414 = vmatpush.bf16.msra.mxu0 %v1860
    %3415 = vmatpush.bf16.msra.mxu0 %v1856
    %3416 = vmatpush.bf16.msra.mxu0 %v1852
    %3417 = vmatpush.bf16.msra.mxu0 %v1848
    %3418 = vmatpush.bf16.msra.mxu0 %v1844
    %3419 = vmatmul.bf16.gmra.mxu0 %v3319
    %v3420 = vpop.f32.mrf.mxu0
    %v3421 = vadd.f32 %v3408, %v3420
    %v3422 = vpop.f32.mrf.mxu0
    %3423 = vdwg.mxu0
    %v3424 = vxor.u32 %v3343, 2147483648
    %v3425 = vmul.f32 %v3424, 1.442695
    %v3426 = vpow.pop %v3425
    %v3427 = vadd.f32 %v3426, 1.0
    %v3428 = vrcp.pop %v3427
    %v3429 = vmul.f32 %v3427, %v3428
    %v3430 = vsub.f32 1.0, %v3429
    %v3431 = vmul.f32 %v3428, %v3430
    %v3432 = vadd.f32 %v3428, %v3431
    %vm3433 = vweird.f32 %v3427
    %vm3434 = vweird.f32 %v3428
    %vm3435 = vmor %vm3433, %vm3434
    %v3436 = vsel %vm3435, %v3428, %v3432
    %v3437 = vand.u32 2147483647, %v3427
    %vm3438 = vcmp.eq.f32.partialorder %v3437, 8.507059e+37
    %v3439 = vand.u32 %v3427, 2147483648
    %v3440 = vor.u32 1.1754944e-38, %v3439
    %v3441 = vsel %vm3438, %v3440, %v3436
    %v3442 = vmul.f32 1.0, %v3441
    %v3443 = vxor.u32 %v3369, 2147483648
    %v3444 = vmul.f32 %v3443, 1.442695
    %v3445 = vpow.pop %v3444
    %v3446 = vadd.f32 %v3445, 1.0
    %v3447 = vrcp.pop %v3446
    %v3448 = vmul.f32 %v3446, %v3447
    %v3449 = vsub.f32 1.0, %v3448
    %v3450 = vmul.f32 %v3447, %v3449
    %v3451 = vadd.f32 %v3447, %v3450
    %vm3452 = vweird.f32 %v3446
    %vm3453 = vweird.f32 %v3447
    %vm3454 = vmor %vm3452, %vm3453
    %v3455 = vsel %vm3454, %v3447, %v3451
    %v3456 = vand.u32 2147483647, %v3446
    %vm3457 = vcmp.eq.f32.partialorder %v3456, 8.507059e+37
    %v3458 = vand.u32 %v3446, 2147483648
    %v3459 = vor.u32 1.1754944e-38, %v3458
    %v3460 = vsel %vm3457, %v3459, %v3455
    %v3461 = vmul.f32 1.0, %v3460
    %v3462 = vtanh.pop %v3395
    %v3463 = vxor.u32 %v3421, 2147483648
    %v3464 = vmul.f32 %v3463, 1.442695
    %v3465 = vpow.pop %v3464
    %v3466 = vadd.f32 %v3465, 1.0
    %v3467 = vrcp.pop %v3466
    %v3468 = vmul.f32 %v3466, %v3467
    %v3469 = vsub.f32 1.0, %v3468
    %v3470 = vmul.f32 %v3467, %v3469
    %v3471 = vadd.f32 %v3467, %v3470
    %vm3472 = vweird.f32 %v3466
    %vm3473 = vweird.f32 %v3467
    %vm3474 = vmor %vm3472, %vm3473
    %v3475 = vsel %vm3474, %v3467, %v3471
    %v3476 = vand.u32 2147483647, %v3466
    %vm3477 = vcmp.eq.f32.partialorder %v3476, 8.507059e+37
    %v3478 = vand.u32 %v3466, 2147483648
    %v3479 = vor.u32 1.1754944e-38, %v3478
    %v3480 = vsel %vm3477, %v3479, %v3475
    %v3481 = vmul.f32 1.0, %v3480
    %v3482 = vmul.f32 %v3461, %v3023
    %v3483 = vmul.f32 %v3442, %v3462
    %v3484 = vadd.f32 %v3482, %v3483
    %v3485 = vtanh.pop %v3484
    %v3486 = vmul.f32 %v3481, %v3485
    %s3487 = scalar_lea.vmem [#allocation2], 192
    %v3488 = vld [vmem:[%s3487] sm:$0xff]
    %v3489 = vld [vmem:[%s3487 + $0x8] sm:$0xff]
    %v3490 = vld [vmem:[%s3487 + $0x10] sm:$0xff]
    %v3491 = vld [vmem:[%s3487 + $0x18] sm:$0xff]
    %v3492 = vpack.c.bf16 %v3150, %v3150
    %3493 = vmatpush.bf16.msra.mxu0 %v408
    %3494 = vmatpush.bf16.msra.mxu0 %v404
    %3495 = vmatpush.bf16.msra.mxu0 %v400
    %3496 = vmatpush.bf16.msra.mxu0 %v396
    %3497 = vmatpush.bf16.msra.mxu0 %v392
    %3498 = vmatpush.bf16.msra.mxu0 %v388
    %3499 = vmatpush.bf16.msra.mxu0 %v384
    %3500 = vmatpush.bf16.msra.mxu0 %v380
    %3501 = vmatmul.bf16.gmra.mxu0 %v3492
    %v3502 = vpop.f32.mrf.mxu0
    %v3503 = vadd.f32 0.0, %v3502
    %v3504 = vpop.f32.mrf.mxu0
    %3505 = vdwg.mxu0
    %3506 = vmatpush.bf16.msra.mxu0 %v409
    %3507 = vmatpush.bf16.msra.mxu0 %v405
    %3508 = vmatpush.bf16.msra.mxu0 %v401
    %3509 = vmatpush.bf16.msra.mxu0 %v397
    %3510 = vmatpush.bf16.msra.mxu0 %v393
    %3511 = vmatpush.bf16.msra.mxu0 %v389
    %3512 = vmatpush.bf16.msra.mxu0 %v385
    %3513 = vmatpush.bf16.msra.mxu0 %v381
    %3514 = vmatmul.bf16.gmra.mxu0 %v3492
    %v3515 = vpop.f32.mrf.mxu0
    %v3516 = vadd.f32 0.0, %v3515
    %v3517 = vpop.f32.mrf.mxu0
    %3518 = vdwg.mxu0
    %3519 = vmatpush.bf16.msra.mxu0 %v410
    %3520 = vmatpush.bf16.msra.mxu0 %v406
    %3521 = vmatpush.bf16.msra.mxu0 %v402
    %3522 = vmatpush.bf16.msra.mxu0 %v398
    %3523 = vmatpush.bf16.msra.mxu0 %v394
    %3524 = vmatpush.bf16.msra.mxu0 %v390
    %3525 = vmatpush.bf16.msra.mxu0 %v386
    %3526 = vmatpush.bf16.msra.mxu0 %v382
    %3527 = vmatmul.bf16.gmra.mxu0 %v3492
    %v3528 = vpop.f32.mrf.mxu0
    %v3529 = vadd.f32 0.0, %v3528
    %v3530 = vpop.f32.mrf.mxu0
    %3531 = vdwg.mxu0
    %3532 = vmatpush.bf16.msra.mxu0 %v411
    %3533 = vmatpush.bf16.msra.mxu0 %v407
    %3534 = vmatpush.bf16.msra.mxu0 %v403
    %3535 = vmatpush.bf16.msra.mxu0 %v399
    %3536 = vmatpush.bf16.msra.mxu0 %v395
    %3537 = vmatpush.bf16.msra.mxu0 %v391
    %3538 = vmatpush.bf16.msra.mxu0 %v387
    %3539 = vmatpush.bf16.msra.mxu0 %v383
    %3540 = vmatmul.bf16.gmra.mxu0 %v3492
    %v3541 = vpop.f32.mrf.mxu0
    %v3542 = vadd.f32 0.0, %v3541
    %v3543 = vpop.f32.mrf.mxu0
    %3544 = vdwg.mxu0
    %v3545 = vadd.f32 %v3488, %v3503
    %v3546 = vadd.f32 %v3489, %v3516
    %v3547 = vadd.f32 %v3490, %v3529
    %v3548 = vadd.f32 %v3491, %v3542
    %v3549 = vxor.u32 %v3545, 2147483648
    %v3550 = vmul.f32 %v3549, 1.442695
    %v3551 = vpow.pop %v3550
    %v3552 = vadd.f32 %v3551, 1.0
    %v3553 = vrcp.pop %v3552
    %v3554 = vmul.f32 %v3552, %v3553
    %v3555 = vsub.f32 1.0, %v3554
    %v3556 = vmul.f32 %v3553, %v3555
    %v3557 = vadd.f32 %v3553, %v3556
    %vm3558 = vweird.f32 %v3552
    %vm3559 = vweird.f32 %v3553
    %vm3560 = vmor %vm3558, %vm3559
    %v3561 = vsel %vm3560, %v3553, %v3557
    %v3562 = vand.u32 2147483647, %v3552
    %vm3563 = vcmp.eq.f32.partialorder %v3562, 8.507059e+37
    %v3564 = vand.u32 %v3552, 2147483648
    %v3565 = vor.u32 1.1754944e-38, %v3564
    %v3566 = vsel %vm3563, %v3565, %v3561
    %v3567 = vmul.f32 1.0, %v3566
    %v3568 = vxor.u32 %v3546, 2147483648
    %v3569 = vmul.f32 %v3568, 1.442695
    %v3570 = vpow.pop %v3569
    %v3571 = vadd.f32 %v3570, 1.0
    %v3572 = vrcp.pop %v3571
    %v3573 = vmul.f32 %v3571, %v3572
    %v3574 = vsub.f32 1.0, %v3573
    %v3575 = vmul.f32 %v3572, %v3574
    %v3576 = vadd.f32 %v3572, %v3575
    %vm3577 = vweird.f32 %v3571
    %vm3578 = vweird.f32 %v3572
    %vm3579 = vmor %vm3577, %vm3578
    %v3580 = vsel %vm3579, %v3572, %v3576
    %v3581 = vand.u32 2147483647, %v3571
    %vm3582 = vcmp.eq.f32.partialorder %v3581, 8.507059e+37
    %v3583 = vand.u32 %v3571, 2147483648
    %v3584 = vor.u32 1.1754944e-38, %v3583
    %v3585 = vsel %vm3582, %v3584, %v3580
    %v3586 = vmul.f32 1.0, %v3585
    %v3587 = vtanh.pop %v3547
    %v3588 = vxor.u32 %v3548, 2147483648
    %v3589 = vmul.f32 %v3588, 1.442695
    %v3590 = vpow.pop %v3589
    %v3591 = vadd.f32 %v3590, 1.0
    %v3592 = vrcp.pop %v3591
    %v3593 = vmul.f32 %v3591, %v3592
    %v3594 = vsub.f32 1.0, %v3593
    %v3595 = vmul.f32 %v3592, %v3594
    %v3596 = vadd.f32 %v3592, %v3595
    %vm3597 = vweird.f32 %v3591
    %vm3598 = vweird.f32 %v3592
    %vm3599 = vmor %vm3597, %vm3598
    %v3600 = vsel %vm3599, %v3592, %v3596
    %v3601 = vand.u32 2147483647, %v3591
    %vm3602 = vcmp.eq.f32.partialorder %v3601, 8.507059e+37
    %v3603 = vand.u32 %v3591, 2147483648
    %v3604 = vor.u32 1.1754944e-38, %v3603
    %v3605 = vsel %vm3602, %v3604, %v3600
    %v3606 = vmul.f32 1.0, %v3605
    %v3607 = vmul.f32 %v3586, %v3148
    %v3608 = vmul.f32 %v3567, %v3587
    %v3609 = vadd.f32 %v3607, %v3608
    %v3610 = vtanh.pop %v3609
    %v3611 = vmul.f32 %v3606, %v3610
    %v3612 = vpack.c.bf16 %v3318, %v3318
    %3613 = vmatpush.bf16.msra.mxu0 %v983
    %3614 = vmatpush.bf16.msra.mxu0 %v979
    %3615 = vmatpush.bf16.msra.mxu0 %v975
    %3616 = vmatpush.bf16.msra.mxu0 %v971
    %3617 = vmatpush.bf16.msra.mxu0 %v967
    %3618 = vmatpush.bf16.msra.mxu0 %v963
    %3619 = vmatpush.bf16.msra.mxu0 %v959
    %3620 = vmatpush.bf16.msra.mxu0 %v955
    %3621 = vmatmul.bf16.gmra.mxu0 %v3492
    %v3622 = vpop.f32.mrf.mxu0
    %v3623 = vadd.f32 %v755, %v3622
    %v3624 = vpop.f32.mrf.mxu0
    %3625 = vdwg.mxu0
    %3626 = vmatpush.bf16.msra.mxu0 %v1015
    %3627 = vmatpush.bf16.msra.mxu0 %v1011
    %3628 = vmatpush.bf16.msra.mxu0 %v1007
    %3629 = vmatpush.bf16.msra.mxu0 %v1003
    %3630 = vmatpush.bf16.msra.mxu0 %v999
    %3631 = vmatpush.bf16.msra.mxu0 %v995
    %3632 = vmatpush.bf16.msra.mxu0 %v991
    %3633 = vmatpush.bf16.msra.mxu0 %v987
    %3634 = vmatmul.bf16.gmra.mxu0 %v3612
    %v3635 = vpop.f32.mrf.mxu0
    %v3636 = vadd.f32 %v3623, %v3635
    %v3637 = vpop.f32.mrf.mxu0
    %3638 = vdwg.mxu0
    %3639 = vmatpush.bf16.msra.mxu0 %v984
    %3640 = vmatpush.bf16.msra.mxu0 %v980
    %3641 = vmatpush.bf16.msra.mxu0 %v976
    %3642 = vmatpush.bf16.msra.mxu0 %v972
    %3643 = vmatpush.bf16.msra.mxu0 %v968
    %3644 = vmatpush.bf16.msra.mxu0 %v964
    %3645 = vmatpush.bf16.msra.mxu0 %v960
    %3646 = vmatpush.bf16.msra.mxu0 %v956
    %3647 = vmatmul.bf16.gmra.mxu0 %v3492
    %v3648 = vpop.f32.mrf.mxu0
    %v3649 = vadd.f32 %v756, %v3648
    %v3650 = vpop.f32.mrf.mxu0
    %3651 = vdwg.mxu0
    %3652 = vmatpush.bf16.msra.mxu0 %v1016
    %3653 = vmatpush.bf16.msra.mxu0 %v1012
    %3654 = vmatpush.bf16.msra.mxu0 %v1008
    %3655 = vmatpush.bf16.msra.mxu0 %v1004
    %3656 = vmatpush.bf16.msra.mxu0 %v1000
    %3657 = vmatpush.bf16.msra.mxu0 %v996
    %3658 = vmatpush.bf16.msra.mxu0 %v992
    %3659 = vmatpush.bf16.msra.mxu0 %v988
    %3660 = vmatmul.bf16.gmra.mxu0 %v3612
    %v3661 = vpop.f32.mrf.mxu0
    %v3662 = vadd.f32 %v3649, %v3661
    %v3663 = vpop.f32.mrf.mxu0
    %3664 = vdwg.mxu0
    %3665 = vmatpush.bf16.msra.mxu0 %v985
    %3666 = vmatpush.bf16.msra.mxu0 %v981
    %3667 = vmatpush.bf16.msra.mxu0 %v977
    %3668 = vmatpush.bf16.msra.mxu0 %v973
    %3669 = vmatpush.bf16.msra.mxu0 %v969
    %3670 = vmatpush.bf16.msra.mxu0 %v965
    %3671 = vmatpush.bf16.msra.mxu0 %v961
    %3672 = vmatpush.bf16.msra.mxu0 %v957
    %3673 = vmatmul.bf16.gmra.mxu0 %v3492
    %v3674 = vpop.f32.mrf.mxu0
    %v3675 = vadd.f32 %v757, %v3674
    %v3676 = vpop.f32.mrf.mxu0
    %3677 = vdwg.mxu0
    %3678 = vmatpush.bf16.msra.mxu0 %v1017
    %3679 = vmatpush.bf16.msra.mxu0 %v1013
    %3680 = vmatpush.bf16.msra.mxu0 %v1009
    %3681 = vmatpush.bf16.msra.mxu0 %v1005
    %3682 = vmatpush.bf16.msra.mxu0 %v1001
    %3683 = vmatpush.bf16.msra.mxu0 %v997
    %3684 = vmatpush.bf16.msra.mxu0 %v993
    %3685 = vmatpush.bf16.msra.mxu0 %v989
    %3686 = vmatmul.bf16.gmra.mxu0 %v3612
    %v3687 = vpop.f32.mrf.mxu0
    %v3688 = vadd.f32 %v3675, %v3687
    %v3689 = vpop.f32.mrf.mxu0
    %3690 = vdwg.mxu0
    %3691 = vmatpush.bf16.msra.mxu0 %v986
    %3692 = vmatpush.bf16.msra.mxu0 %v982
    %3693 = vmatpush.bf16.msra.mxu0 %v978
    %3694 = vmatpush.bf16.msra.mxu0 %v974
    %3695 = vmatpush.bf16.msra.mxu0 %v970
    %3696 = vmatpush.bf16.msra.mxu0 %v966
    %3697 = vmatpush.bf16.msra.mxu0 %v962
    %3698 = vmatpush.bf16.msra.mxu0 %v958
    %3699 = vmatmul.bf16.gmra.mxu0 %v3492
    %v3700 = vpop.f32.mrf.mxu0
    %v3701 = vadd.f32 %v758, %v3700
    %v3702 = vpop.f32.mrf.mxu0
    %3703 = vdwg.mxu0
    %3704 = vmatpush.bf16.msra.mxu0 %v1018
    %3705 = vmatpush.bf16.msra.mxu0 %v1014
    %3706 = vmatpush.bf16.msra.mxu0 %v1010
    %3707 = vmatpush.bf16.msra.mxu0 %v1006
    %3708 = vmatpush.bf16.msra.mxu0 %v1002
    %3709 = vmatpush.bf16.msra.mxu0 %v998
    %3710 = vmatpush.bf16.msra.mxu0 %v994
    %3711 = vmatpush.bf16.msra.mxu0 %v990
    %3712 = vmatmul.bf16.gmra.mxu0 %v3612
    %v3713 = vpop.f32.mrf.mxu0
    %v3714 = vadd.f32 %v3701, %v3713
    %v3715 = vpop.f32.mrf.mxu0
    %3716 = vdwg.mxu0
    %v3717 = vxor.u32 %v3636, 2147483648
    %v3718 = vmul.f32 %v3717, 1.442695
    %v3719 = vpow.pop %v3718
    %v3720 = vadd.f32 %v3719, 1.0
    %v3721 = vrcp.pop %v3720
    %v3722 = vmul.f32 %v3720, %v3721
    %v3723 = vsub.f32 1.0, %v3722
    %v3724 = vmul.f32 %v3721, %v3723
    %v3725 = vadd.f32 %v3721, %v3724
    %vm3726 = vweird.f32 %v3720
    %vm3727 = vweird.f32 %v3721
    %vm3728 = vmor %vm3726, %vm3727
    %v3729 = vsel %vm3728, %v3721, %v3725
    %v3730 = vand.u32 2147483647, %v3720
    %vm3731 = vcmp.eq.f32.partialorder %v3730, 8.507059e+37
    %v3732 = vand.u32 %v3720, 2147483648
    %v3733 = vor.u32 1.1754944e-38, %v3732
    %v3734 = vsel %vm3731, %v3733, %v3729
    %v3735 = vmul.f32 1.0, %v3734
    %v3736 = vxor.u32 %v3662, 2147483648
    %v3737 = vmul.f32 %v3736, 1.442695
    %v3738 = vpow.pop %v3737
    %v3739 = vadd.f32 %v3738, 1.0
    %v3740 = vrcp.pop %v3739
    %v3741 = vmul.f32 %v3739, %v3740
    %v3742 = vsub.f32 1.0, %v3741
    %v3743 = vmul.f32 %v3740, %v3742
    %v3744 = vadd.f32 %v3740, %v3743
    %vm3745 = vweird.f32 %v3739
    %vm3746 = vweird.f32 %v3740
    %vm3747 = vmor %vm3745, %vm3746
    %v3748 = vsel %vm3747, %v3740, %v3744
    %v3749 = vand.u32 2147483647, %v3739
    %vm3750 = vcmp.eq.f32.partialorder %v3749, 8.507059e+37
    %v3751 = vand.u32 %v3739, 2147483648
    %v3752 = vor.u32 1.1754944e-38, %v3751
    %v3753 = vsel %vm3750, %v3752, %v3748
    %v3754 = vmul.f32 1.0, %v3753
    %v3755 = vtanh.pop %v3688
    %v3756 = vxor.u32 %v3714, 2147483648
    %v3757 = vmul.f32 %v3756, 1.442695
    %v3758 = vpow.pop %v3757
    %v3759 = vadd.f32 %v3758, 1.0
    %v3760 = vrcp.pop %v3759
    %v3761 = vmul.f32 %v3759, %v3760
    %v3762 = vsub.f32 1.0, %v3761
    %v3763 = vmul.f32 %v3760, %v3762
    %v3764 = vadd.f32 %v3760, %v3763
    %vm3765 = vweird.f32 %v3759
    %vm3766 = vweird.f32 %v3760
    %vm3767 = vmor %vm3765, %vm3766
    %v3768 = vsel %vm3767, %v3760, %v3764
    %v3769 = vand.u32 2147483647, %v3759
    %vm3770 = vcmp.eq.f32.partialorder %v3769, 8.507059e+37
    %v3771 = vand.u32 %v3759, 2147483648
    %v3772 = vor.u32 1.1754944e-38, %v3771
    %v3773 = vsel %vm3770, %v3772, %v3768
    %v3774 = vmul.f32 1.0, %v3773
    %v3775 = vmul.f32 %v3754, %v3316
    %v3776 = vmul.f32 %v3735, %v3755
    %v3777 = vadd.f32 %v3775, %v3776
    %v3778 = vtanh.pop %v3777
    %v3779 = vmul.f32 %v3774, %v3778
    %v3780 = vpack.c.bf16 %v3486, %v3486
    %3781 = vmatpush.bf16.msra.mxu0 %v1837
    %3782 = vmatpush.bf16.msra.mxu0 %v1833
    %3783 = vmatpush.bf16.msra.mxu0 %v1829
    %3784 = vmatpush.bf16.msra.mxu0 %v1825
    %3785 = vmatpush.bf16.msra.mxu0 %v1821
    %3786 = vmatpush.bf16.msra.mxu0 %v1817
    %3787 = vmatpush.bf16.msra.mxu0 %v1813
    %3788 = vmatpush.bf16.msra.mxu0 %v1809
    %3789 = vmatmul.bf16.gmra.mxu0 %v3612
    %v3790 = vpop.f32.mrf.mxu0
    %v3791 = vadd.f32 %v1609, %v3790
    %v3792 = vpop.f32.mrf.mxu0
    %3793 = vdwg.mxu0
    %3794 = vmatpush.bf16.msra.mxu0 %v1869
    %3795 = vmatpush.bf16.msra.mxu0 %v1865
    %3796 = vmatpush.bf16.msra.mxu0 %v1861
    %3797 = vmatpush.bf16.msra.mxu0 %v1857
    %3798 = vmatpush.bf16.msra.mxu0 %v1853
    %3799 = vmatpush.bf16.msra.mxu0 %v1849
    %3800 = vmatpush.bf16.msra.mxu0 %v1845
    %3801 = vmatpush.bf16.msra.mxu0 %v1841
    %3802 = vmatmul.bf16.gmra.mxu0 %v3780
    %v3803 = vpop.f32.mrf.mxu0
    %v3804 = vadd.f32 %v3791, %v3803
    %v3805 = vpop.f32.mrf.mxu0
    %3806 = vdwg.mxu0
    %3807 = vmatpush.bf16.msra.mxu0 %v1838
    %3808 = vmatpush.bf16.msra.mxu0 %v1834
    %3809 = vmatpush.bf16.msra.mxu0 %v1830
    %3810 = vmatpush.bf16.msra.mxu0 %v1826
    %3811 = vmatpush.bf16.msra.mxu0 %v1822
    %3812 = vmatpush.bf16.msra.mxu0 %v1818
    %3813 = vmatpush.bf16.msra.mxu0 %v1814
    %3814 = vmatpush.bf16.msra.mxu0 %v1810
    %3815 = vmatmul.bf16.gmra.mxu0 %v3612
    %v3816 = vpop.f32.mrf.mxu0
    %v3817 = vadd.f32 %v1610, %v3816
    %v3818 = vpop.f32.mrf.mxu0
    %3819 = vdwg.mxu0
    %3820 = vmatpush.bf16.msra.mxu0 %v1870
    %3821 = vmatpush.bf16.msra.mxu0 %v1866
    %3822 = vmatpush.bf16.msra.mxu0 %v1862
    %3823 = vmatpush.bf16.msra.mxu0 %v1858
    %3824 = vmatpush.bf16.msra.mxu0 %v1854
    %3825 = vmatpush.bf16.msra.mxu0 %v1850
    %3826 = vmatpush.bf16.msra.mxu0 %v1846
    %3827 = vmatpush.bf16.msra.mxu0 %v1842
    %3828 = vmatmul.bf16.gmra.mxu0 %v3780
    %v3829 = vpop.f32.mrf.mxu0
    %v3830 = vadd.f32 %v3817, %v3829
    %v3831 = vpop.f32.mrf.mxu0
    %3832 = vdwg.mxu0
    %3833 = vmatpush.bf16.msra.mxu0 %v1839
    %3834 = vmatpush.bf16.msra.mxu0 %v1835
    %3835 = vmatpush.bf16.msra.mxu0 %v1831
    %3836 = vmatpush.bf16.msra.mxu0 %v1827
    %3837 = vmatpush.bf16.msra.mxu0 %v1823
    %3838 = vmatpush.bf16.msra.mxu0 %v1819
    %3839 = vmatpush.bf16.msra.mxu0 %v1815
    %3840 = vmatpush.bf16.msra.mxu0 %v1811
    %3841 = vmatmul.bf16.gmra.mxu0 %v3612
    %v3842 = vpop.f32.mrf.mxu0
    %v3843 = vadd.f32 %v1611, %v3842
    %v3844 = vpop.f32.mrf.mxu0
    %3845 = vdwg.mxu0
    %3846 = vmatpush.bf16.msra.mxu0 %v1871
    %3847 = vmatpush.bf16.msra.mxu0 %v1867
    %3848 = vmatpush.bf16.msra.mxu0 %v1863
    %3849 = vmatpush.bf16.msra.mxu0 %v1859
    %3850 = vmatpush.bf16.msra.mxu0 %v1855
    %3851 = vmatpush.bf16.msra.mxu0 %v1851
    %3852 = vmatpush.bf16.msra.mxu0 %v1847
    %3853 = vmatpush.bf16.msra.mxu0 %v1843
    %3854 = vmatmul.bf16.gmra.mxu0 %v3780
    %v3855 = vpop.f32.mrf.mxu0
    %v3856 = vadd.f32 %v3843, %v3855
    %v3857 = vpop.f32.mrf.mxu0
    %3858 = vdwg.mxu0
    %3859 = vmatpush.bf16.msra.mxu0 %v1840
    %3860 = vmatpush.bf16.msra.mxu0 %v1836
    %3861 = vmatpush.bf16.msra.mxu0 %v1832
    %3862 = vmatpush.bf16.msra.mxu0 %v1828
    %3863 = vmatpush.bf16.msra.mxu0 %v1824
    %3864 = vmatpush.bf16.msra.mxu0 %v1820
    %3865 = vmatpush.bf16.msra.mxu0 %v1816
    %3866 = vmatpush.bf16.msra.mxu0 %v1812
    %3867 = vmatmul.bf16.gmra.mxu0 %v3612
    %v3868 = vpop.f32.mrf.mxu0
    %v3869 = vadd.f32 %v1612, %v3868
    %v3870 = vpop.f32.mrf.mxu0
    %3871 = vdwg.mxu0
    %3872 = vmatpush.bf16.msra.mxu0 %v1872
    %3873 = vmatpush.bf16.msra.mxu0 %v1868
    %3874 = vmatpush.bf16.msra.mxu0 %v1864
    %3875 = vmatpush.bf16.msra.mxu0 %v1860
    %3876 = vmatpush.bf16.msra.mxu0 %v1856
    %3877 = vmatpush.bf16.msra.mxu0 %v1852
    %3878 = vmatpush.bf16.msra.mxu0 %v1848
    %3879 = vmatpush.bf16.msra.mxu0 %v1844
    %3880 = vmatmul.bf16.gmra.mxu0 %v3780
    %v3881 = vpop.f32.mrf.mxu0
    %v3882 = vadd.f32 %v3869, %v3881
    %v3883 = vpop.f32.mrf.mxu0
    %3884 = vdwg.mxu0
    %v3885 = vxor.u32 %v3804, 2147483648
    %v3886 = vmul.f32 %v3885, 1.442695
    %v3887 = vpow.pop %v3886
    %v3888 = vadd.f32 %v3887, 1.0
    %v3889 = vrcp.pop %v3888
    %v3890 = vmul.f32 %v3888, %v3889
    %v3891 = vsub.f32 1.0, %v3890
    %v3892 = vmul.f32 %v3889, %v3891
    %v3893 = vadd.f32 %v3889, %v3892
    %vm3894 = vweird.f32 %v3888
    %vm3895 = vweird.f32 %v3889
    %vm3896 = vmor %vm3894, %vm3895
    %v3897 = vsel %vm3896, %v3889, %v3893
    %v3898 = vand.u32 2147483647, %v3888
    %vm3899 = vcmp.eq.f32.partialorder %v3898, 8.507059e+37
    %v3900 = vand.u32 %v3888, 2147483648
    %v3901 = vor.u32 1.1754944e-38, %v3900
    %v3902 = vsel %vm3899, %v3901, %v3897
    %v3903 = vmul.f32 1.0, %v3902
    %v3904 = vxor.u32 %v3830, 2147483648
    %v3905 = vmul.f32 %v3904, 1.442695
    %v3906 = vpow.pop %v3905
    %v3907 = vadd.f32 %v3906, 1.0
    %v3908 = vrcp.pop %v3907
    %v3909 = vmul.f32 %v3907, %v3908
    %v3910 = vsub.f32 1.0, %v3909
    %v3911 = vmul.f32 %v3908, %v3910
    %v3912 = vadd.f32 %v3908, %v3911
    %vm3913 = vweird.f32 %v3907
    %vm3914 = vweird.f32 %v3908
    %vm3915 = vmor %vm3913, %vm3914
    %v3916 = vsel %vm3915, %v3908, %v3912
    %v3917 = vand.u32 2147483647, %v3907
    %vm3918 = vcmp.eq.f32.partialorder %v3917, 8.507059e+37
    %v3919 = vand.u32 %v3907, 2147483648
    %v3920 = vor.u32 1.1754944e-38, %v3919
    %v3921 = vsel %vm3918, %v3920, %v3916
    %v3922 = vmul.f32 1.0, %v3921
    %v3923 = vtanh.pop %v3856
    %v3924 = vxor.u32 %v3882, 2147483648
    %v3925 = vmul.f32 %v3924, 1.442695
    %v3926 = vpow.pop %v3925
    %v3927 = vadd.f32 %v3926, 1.0
    %v3928 = vrcp.pop %v3927
    %v3929 = vmul.f32 %v3927, %v3928
    %v3930 = vsub.f32 1.0, %v3929
    %v3931 = vmul.f32 %v3928, %v3930
    %v3932 = vadd.f32 %v3928, %v3931
    %vm3933 = vweird.f32 %v3927
    %vm3934 = vweird.f32 %v3928
    %vm3935 = vmor %vm3933, %vm3934
    %v3936 = vsel %vm3935, %v3928, %v3932
    %v3937 = vand.u32 2147483647, %v3927
    %vm3938 = vcmp.eq.f32.partialorder %v3937, 8.507059e+37
    %v3939 = vand.u32 %v3927, 2147483648
    %v3940 = vor.u32 1.1754944e-38, %v3939
    %v3941 = vsel %vm3938, %v3940, %v3936
    %v3942 = vmul.f32 1.0, %v3941
    %v3943 = vmul.f32 %v3922, %v3484
    %v3944 = vmul.f32 %v3903, %v3923
    %v3945 = vadd.f32 %v3943, %v3944
    %v3946 = vtanh.pop %v3945
    %v3947 = vmul.f32 %v3942, %v3946
    %s3948 = scalar_lea.vmem [#allocation2], 224
    %v3949 = vld [vmem:[%s3948] sm:$0xff]
    %v3950 = vld [vmem:[%s3948 + $0x8] sm:$0xff]
    %v3951 = vld [vmem:[%s3948 + $0x10] sm:$0xff]
    %v3952 = vld [vmem:[%s3948 + $0x18] sm:$0xff]
    %v3953 = vpack.c.bf16 %v3611, %v3611
    %3954 = vmatpush.bf16.msra.mxu0 %v408
    %3955 = vmatpush.bf16.msra.mxu0 %v404
    %3956 = vmatpush.bf16.msra.mxu0 %v400
    %3957 = vmatpush.bf16.msra.mxu0 %v396
    %3958 = vmatpush.bf16.msra.mxu0 %v392
    %3959 = vmatpush.bf16.msra.mxu0 %v388
    %3960 = vmatpush.bf16.msra.mxu0 %v384
    %3961 = vmatpush.bf16.msra.mxu0 %v380
    %3962 = vmatmul.bf16.gmra.mxu0 %v3953
    %v3963 = vpop.f32.mrf.mxu0
    %v3964 = vadd.f32 0.0, %v3963
    %v3965 = vpop.f32.mrf.mxu0
    %3966 = vdwg.mxu0
    %3967 = vmatpush.bf16.msra.mxu0 %v409
    %3968 = vmatpush.bf16.msra.mxu0 %v405
    %3969 = vmatpush.bf16.msra.mxu0 %v401
    %3970 = vmatpush.bf16.msra.mxu0 %v397
    %3971 = vmatpush.bf16.msra.mxu0 %v393
    %3972 = vmatpush.bf16.msra.mxu0 %v389
    %3973 = vmatpush.bf16.msra.mxu0 %v385
    %3974 = vmatpush.bf16.msra.mxu0 %v381
    %3975 = vmatmul.bf16.gmra.mxu0 %v3953
    %v3976 = vpop.f32.mrf.mxu0
    %v3977 = vadd.f32 0.0, %v3976
    %v3978 = vpop.f32.mrf.mxu0
    %3979 = vdwg.mxu0
    %3980 = vmatpush.bf16.msra.mxu0 %v410
    %3981 = vmatpush.bf16.msra.mxu0 %v406
    %3982 = vmatpush.bf16.msra.mxu0 %v402
    %3983 = vmatpush.bf16.msra.mxu0 %v398
    %3984 = vmatpush.bf16.msra.mxu0 %v394
    %3985 = vmatpush.bf16.msra.mxu0 %v390
    %3986 = vmatpush.bf16.msra.mxu0 %v386
    %3987 = vmatpush.bf16.msra.mxu0 %v382
    %3988 = vmatmul.bf16.gmra.mxu0 %v3953
    %v3989 = vpop.f32.mrf.mxu0
    %v3990 = vadd.f32 0.0, %v3989
    %v3991 = vpop.f32.mrf.mxu0
    %3992 = vdwg.mxu0
    %3993 = vmatpush.bf16.msra.mxu0 %v411
    %3994 = vmatpush.bf16.msra.mxu0 %v407
    %3995 = vmatpush.bf16.msra.mxu0 %v403
    %3996 = vmatpush.bf16.msra.mxu0 %v399
    %3997 = vmatpush.bf16.msra.mxu0 %v395
    %3998 = vmatpush.bf16.msra.mxu0 %v391
    %3999 = vmatpush.bf16.msra.mxu0 %v387
    %4000 = vmatpush.bf16.msra.mxu0 %v383
    %4001 = vmatmul.bf16.gmra.mxu0 %v3953
    %v4002 = vpop.f32.mrf.mxu0
    %v4003 = vadd.f32 0.0, %v4002
    %v4004 = vpop.f32.mrf.mxu0
    %4005 = vdwg.mxu0
    %v4006 = vadd.f32 %v3949, %v3964
    %v4007 = vadd.f32 %v3950, %v3977
    %v4008 = vadd.f32 %v3951, %v3990
    %v4009 = vadd.f32 %v3952, %v4003
    %v4010 = vxor.u32 %v4006, 2147483648
    %v4011 = vmul.f32 %v4010, 1.442695
    %v4012 = vpow.pop %v4011
    %v4013 = vadd.f32 %v4012, 1.0
    %v4014 = vrcp.pop %v4013
    %v4015 = vmul.f32 %v4013, %v4014
    %v4016 = vsub.f32 1.0, %v4015
    %v4017 = vmul.f32 %v4014, %v4016
    %v4018 = vadd.f32 %v4014, %v4017
    %vm4019 = vweird.f32 %v4013
    %vm4020 = vweird.f32 %v4014
    %vm4021 = vmor %vm4019, %vm4020
    %v4022 = vsel %vm4021, %v4014, %v4018
    %v4023 = vand.u32 2147483647, %v4013
    %vm4024 = vcmp.eq.f32.partialorder %v4023, 8.507059e+37
    %v4025 = vand.u32 %v4013, 2147483648
    %v4026 = vor.u32 1.1754944e-38, %v4025
    %v4027 = vsel %vm4024, %v4026, %v4022
    %v4028 = vmul.f32 1.0, %v4027
    %v4029 = vxor.u32 %v4007, 2147483648
    %v4030 = vmul.f32 %v4029, 1.442695
    %v4031 = vpow.pop %v4030
    %v4032 = vadd.f32 %v4031, 1.0
    %v4033 = vrcp.pop %v4032
    %v4034 = vmul.f32 %v4032, %v4033
    %v4035 = vsub.f32 1.0, %v4034
    %v4036 = vmul.f32 %v4033, %v4035
    %v4037 = vadd.f32 %v4033, %v4036
    %vm4038 = vweird.f32 %v4032
    %vm4039 = vweird.f32 %v4033
    %vm4040 = vmor %vm4038, %vm4039
    %v4041 = vsel %vm4040, %v4033, %v4037
    %v4042 = vand.u32 2147483647, %v4032
    %vm4043 = vcmp.eq.f32.partialorder %v4042, 8.507059e+37
    %v4044 = vand.u32 %v4032, 2147483648
    %v4045 = vor.u32 1.1754944e-38, %v4044
    %v4046 = vsel %vm4043, %v4045, %v4041
    %v4047 = vmul.f32 1.0, %v4046
    %v4048 = vtanh.pop %v4008
    %v4049 = vxor.u32 %v4009, 2147483648
    %v4050 = vmul.f32 %v4049, 1.442695
    %v4051 = vpow.pop %v4050
    %v4052 = vadd.f32 %v4051, 1.0
    %v4053 = vrcp.pop %v4052
    %v4054 = vmul.f32 %v4052, %v4053
    %v4055 = vsub.f32 1.0, %v4054
    %v4056 = vmul.f32 %v4053, %v4055
    %v4057 = vadd.f32 %v4053, %v4056
    %vm4058 = vweird.f32 %v4052
    %vm4059 = vweird.f32 %v4053
    %vm4060 = vmor %vm4058, %vm4059
    %v4061 = vsel %vm4060, %v4053, %v4057
    %v4062 = vand.u32 2147483647, %v4052
    %vm4063 = vcmp.eq.f32.partialorder %v4062, 8.507059e+37
    %v4064 = vand.u32 %v4052, 2147483648
    %v4065 = vor.u32 1.1754944e-38, %v4064
    %v4066 = vsel %vm4063, %v4065, %v4061
    %v4067 = vmul.f32 1.0, %v4066
    %v4068 = vmul.f32 %v4047, %v3609
    %v4069 = vmul.f32 %v4028, %v4048
    %v4070 = vadd.f32 %v4068, %v4069
    %v4071 = vtanh.pop %v4070
    %v4072 = vmul.f32 %v4067, %v4071
    %v4073 = vpack.c.bf16 %v3779, %v3779
    %4074 = vmatpush.bf16.msra.mxu0 %v983
    %4075 = vmatpush.bf16.msra.mxu0 %v979
    %4076 = vmatpush.bf16.msra.mxu0 %v975
    %4077 = vmatpush.bf16.msra.mxu0 %v971
    %4078 = vmatpush.bf16.msra.mxu0 %v967
    %4079 = vmatpush.bf16.msra.mxu0 %v963
    %4080 = vmatpush.bf16.msra.mxu0 %v959
    %4081 = vmatpush.bf16.msra.mxu0 %v955
    %4082 = vmatmul.bf16.gmra.mxu0 %v3953
    %v4083 = vpop.f32.mrf.mxu0
    %v4084 = vadd.f32 %v755, %v4083
    %v4085 = vpop.f32.mrf.mxu0
    %4086 = vdwg.mxu0
    %4087 = vmatpush.bf16.msra.mxu0 %v1015
    %4088 = vmatpush.bf16.msra.mxu0 %v1011
    %4089 = vmatpush.bf16.msra.mxu0 %v1007
    %4090 = vmatpush.bf16.msra.mxu0 %v1003
    %4091 = vmatpush.bf16.msra.mxu0 %v999
    %4092 = vmatpush.bf16.msra.mxu0 %v995
    %4093 = vmatpush.bf16.msra.mxu0 %v991
    %4094 = vmatpush.bf16.msra.mxu0 %v987
    %4095 = vmatmul.bf16.gmra.mxu0 %v4073
    %v4096 = vpop.f32.mrf.mxu0
    %v4097 = vadd.f32 %v4084, %v4096
    %v4098 = vpop.f32.mrf.mxu0
    %4099 = vdwg.mxu0
    %4100 = vmatpush.bf16.msra.mxu0 %v984
    %4101 = vmatpush.bf16.msra.mxu0 %v980
    %4102 = vmatpush.bf16.msra.mxu0 %v976
    %4103 = vmatpush.bf16.msra.mxu0 %v972
    %4104 = vmatpush.bf16.msra.mxu0 %v968
    %4105 = vmatpush.bf16.msra.mxu0 %v964
    %4106 = vmatpush.bf16.msra.mxu0 %v960
    %4107 = vmatpush.bf16.msra.mxu0 %v956
    %4108 = vmatmul.bf16.gmra.mxu0 %v3953
    %v4109 = vpop.f32.mrf.mxu0
    %v4110 = vadd.f32 %v756, %v4109
    %v4111 = vpop.f32.mrf.mxu0
    %4112 = vdwg.mxu0
    %4113 = vmatpush.bf16.msra.mxu0 %v1016
    %4114 = vmatpush.bf16.msra.mxu0 %v1012
    %4115 = vmatpush.bf16.msra.mxu0 %v1008
    %4116 = vmatpush.bf16.msra.mxu0 %v1004
    %4117 = vmatpush.bf16.msra.mxu0 %v1000
    %4118 = vmatpush.bf16.msra.mxu0 %v996
    %4119 = vmatpush.bf16.msra.mxu0 %v992
    %4120 = vmatpush.bf16.msra.mxu0 %v988
    %4121 = vmatmul.bf16.gmra.mxu0 %v4073
    %v4122 = vpop.f32.mrf.mxu0
    %v4123 = vadd.f32 %v4110, %v4122
    %v4124 = vpop.f32.mrf.mxu0
    %4125 = vdwg.mxu0
    %4126 = vmatpush.bf16.msra.mxu0 %v985
    %4127 = vmatpush.bf16.msra.mxu0 %v981
    %4128 = vmatpush.bf16.msra.mxu0 %v977
    %4129 = vmatpush.bf16.msra.mxu0 %v973
    %4130 = vmatpush.bf16.msra.mxu0 %v969
    %4131 = vmatpush.bf16.msra.mxu0 %v965
    %4132 = vmatpush.bf16.msra.mxu0 %v961
    %4133 = vmatpush.bf16.msra.mxu0 %v957
    %4134 = vmatmul.bf16.gmra.mxu0 %v3953
    %v4135 = vpop.f32.mrf.mxu0
    %v4136 = vadd.f32 %v757, %v4135
    %v4137 = vpop.f32.mrf.mxu0
    %4138 = vdwg.mxu0
    %4139 = vmatpush.bf16.msra.mxu0 %v1017
    %4140 = vmatpush.bf16.msra.mxu0 %v1013
    %4141 = vmatpush.bf16.msra.mxu0 %v1009
    %4142 = vmatpush.bf16.msra.mxu0 %v1005
    %4143 = vmatpush.bf16.msra.mxu0 %v1001
    %4144 = vmatpush.bf16.msra.mxu0 %v997
    %4145 = vmatpush.bf16.msra.mxu0 %v993
    %4146 = vmatpush.bf16.msra.mxu0 %v989
    %4147 = vmatmul.bf16.gmra.mxu0 %v4073
    %v4148 = vpop.f32.mrf.mxu0
    %v4149 = vadd.f32 %v4136, %v4148
    %v4150 = vpop.f32.mrf.mxu0
    %4151 = vdwg.mxu0
    %4152 = vmatpush.bf16.msra.mxu0 %v986
    %4153 = vmatpush.bf16.msra.mxu0 %v982
    %4154 = vmatpush.bf16.msra.mxu0 %v978
    %4155 = vmatpush.bf16.msra.mxu0 %v974
    %4156 = vmatpush.bf16.msra.mxu0 %v970
    %4157 = vmatpush.bf16.msra.mxu0 %v966
    %4158 = vmatpush.bf16.msra.mxu0 %v962
    %4159 = vmatpush.bf16.msra.mxu0 %v958
    %4160 = vmatmul.bf16.gmra.mxu0 %v3953
    %v4161 = vpop.f32.mrf.mxu0
    %v4162 = vadd.f32 %v758, %v4161
    %v4163 = vpop.f32.mrf.mxu0
    %4164 = vdwg.mxu0
    %4165 = vmatpush.bf16.msra.mxu0 %v1018
    %4166 = vmatpush.bf16.msra.mxu0 %v1014
    %4167 = vmatpush.bf16.msra.mxu0 %v1010
    %4168 = vmatpush.bf16.msra.mxu0 %v1006
    %4169 = vmatpush.bf16.msra.mxu0 %v1002
    %4170 = vmatpush.bf16.msra.mxu0 %v998
    %4171 = vmatpush.bf16.msra.mxu0 %v994
    %4172 = vmatpush.bf16.msra.mxu0 %v990
    %4173 = vmatmul.bf16.gmra.mxu0 %v4073
    %v4174 = vpop.f32.mrf.mxu0
    %v4175 = vadd.f32 %v4162, %v4174
    %v4176 = vpop.f32.mrf.mxu0
    %4177 = vdwg.mxu0
    %v4178 = vxor.u32 %v4097, 2147483648
    %v4179 = vmul.f32 %v4178, 1.442695
    %v4180 = vpow.pop %v4179
    %v4181 = vadd.f32 %v4180, 1.0
    %v4182 = vrcp.pop %v4181
    %v4183 = vmul.f32 %v4181, %v4182
    %v4184 = vsub.f32 1.0, %v4183
    %v4185 = vmul.f32 %v4182, %v4184
    %v4186 = vadd.f32 %v4182, %v4185
    %vm4187 = vweird.f32 %v4181
    %vm4188 = vweird.f32 %v4182
    %vm4189 = vmor %vm4187, %vm4188
    %v4190 = vsel %vm4189, %v4182, %v4186
    %v4191 = vand.u32 2147483647, %v4181
    %vm4192 = vcmp.eq.f32.partialorder %v4191, 8.507059e+37
    %v4193 = vand.u32 %v4181, 2147483648
    %v4194 = vor.u32 1.1754944e-38, %v4193
    %v4195 = vsel %vm4192, %v4194, %v4190
    %v4196 = vmul.f32 1.0, %v4195
    %v4197 = vxor.u32 %v4123, 2147483648
    %v4198 = vmul.f32 %v4197, 1.442695
    %v4199 = vpow.pop %v4198
    %v4200 = vadd.f32 %v4199, 1.0
    %v4201 = vrcp.pop %v4200
    %v4202 = vmul.f32 %v4200, %v4201
    %v4203 = vsub.f32 1.0, %v4202
    %v4204 = vmul.f32 %v4201, %v4203
    %v4205 = vadd.f32 %v4201, %v4204
    %vm4206 = vweird.f32 %v4200
    %vm4207 = vweird.f32 %v4201
    %vm4208 = vmor %vm4206, %vm4207
    %v4209 = vsel %vm4208, %v4201, %v4205
    %v4210 = vand.u32 2147483647, %v4200
    %vm4211 = vcmp.eq.f32.partialorder %v4210, 8.507059e+37
    %v4212 = vand.u32 %v4200, 2147483648
    %v4213 = vor.u32 1.1754944e-38, %v4212
    %v4214 = vsel %vm4211, %v4213, %v4209
    %v4215 = vmul.f32 1.0, %v4214
    %v4216 = vtanh.pop %v4149
    %v4217 = vxor.u32 %v4175, 2147483648
    %v4218 = vmul.f32 %v4217, 1.442695
    %v4219 = vpow.pop %v4218
    %v4220 = vadd.f32 %v4219, 1.0
    %v4221 = vrcp.pop %v4220
    %v4222 = vmul.f32 %v4220, %v4221
    %v4223 = vsub.f32 1.0, %v4222
    %v4224 = vmul.f32 %v4221, %v4223
    %v4225 = vadd.f32 %v4221, %v4224
    %vm4226 = vweird.f32 %v4220
    %vm4227 = vweird.f32 %v4221
    %vm4228 = vmor %vm4226, %vm4227
    %v4229 = vsel %vm4228, %v4221, %v4225
    %v4230 = vand.u32 2147483647, %v4220
    %vm4231 = vcmp.eq.f32.partialorder %v4230, 8.507059e+37
    %v4232 = vand.u32 %v4220, 2147483648
    %v4233 = vor.u32 1.1754944e-38, %v4232
    %v4234 = vsel %vm4231, %v4233, %v4229
    %v4235 = vmul.f32 1.0, %v4234
    %v4236 = vmul.f32 %v4215, %v3777
    %v4237 = vmul.f32 %v4196, %v4216
    %v4238 = vadd.f32 %v4236, %v4237
    %v4239 = vtanh.pop %v4238
    %v4240 = vmul.f32 %v4235, %v4239
    %v4241 = vpack.c.bf16 %v3947, %v3947
    %4242 = vmatpush.bf16.msra.mxu0 %v1837
    %4243 = vmatpush.bf16.msra.mxu0 %v1833
    %4244 = vmatpush.bf16.msra.mxu0 %v1829
    %4245 = vmatpush.bf16.msra.mxu0 %v1825
    %4246 = vmatpush.bf16.msra.mxu0 %v1821
    %4247 = vmatpush.bf16.msra.mxu0 %v1817
    %4248 = vmatpush.bf16.msra.mxu0 %v1813
    %4249 = vmatpush.bf16.msra.mxu0 %v1809
    %4250 = vmatmul.bf16.gmra.mxu0 %v4073
    %v4251 = vpop.f32.mrf.mxu0
    %v4252 = vadd.f32 %v1609, %v4251
    %v4253 = vpop.f32.mrf.mxu0
    %4254 = vdwg.mxu0
    %4255 = vmatpush.bf16.msra.mxu0 %v1869
    %4256 = vmatpush.bf16.msra.mxu0 %v1865
    %4257 = vmatpush.bf16.msra.mxu0 %v1861
    %4258 = vmatpush.bf16.msra.mxu0 %v1857
    %4259 = vmatpush.bf16.msra.mxu0 %v1853
    %4260 = vmatpush.bf16.msra.mxu0 %v1849
    %4261 = vmatpush.bf16.msra.mxu0 %v1845
    %4262 = vmatpush.bf16.msra.mxu0 %v1841
    %4263 = vmatmul.bf16.gmra.mxu0 %v4241
    %v4264 = vpop.f32.mrf.mxu0
    %v4265 = vadd.f32 %v4252, %v4264
    %v4266 = vpop.f32.mrf.mxu0
    %4267 = vdwg.mxu0
    %4268 = vmatpush.bf16.msra.mxu0 %v1838
    %4269 = vmatpush.bf16.msra.mxu0 %v1834
    %4270 = vmatpush.bf16.msra.mxu0 %v1830
    %4271 = vmatpush.bf16.msra.mxu0 %v1826
    %4272 = vmatpush.bf16.msra.mxu0 %v1822
    %4273 = vmatpush.bf16.msra.mxu0 %v1818
    %4274 = vmatpush.bf16.msra.mxu0 %v1814
    %4275 = vmatpush.bf16.msra.mxu0 %v1810
    %4276 = vmatmul.bf16.gmra.mxu0 %v4073
    %v4277 = vpop.f32.mrf.mxu0
    %v4278 = vadd.f32 %v1610, %v4277
    %v4279 = vpop.f32.mrf.mxu0
    %4280 = vdwg.mxu0
    %4281 = vmatpush.bf16.msra.mxu0 %v1870
    %4282 = vmatpush.bf16.msra.mxu0 %v1866
    %4283 = vmatpush.bf16.msra.mxu0 %v1862
    %4284 = vmatpush.bf16.msra.mxu0 %v1858
    %4285 = vmatpush.bf16.msra.mxu0 %v1854
    %4286 = vmatpush.bf16.msra.mxu0 %v1850
    %4287 = vmatpush.bf16.msra.mxu0 %v1846
    %4288 = vmatpush.bf16.msra.mxu0 %v1842
    %4289 = vmatmul.bf16.gmra.mxu0 %v4241
    %v4290 = vpop.f32.mrf.mxu0
    %v4291 = vadd.f32 %v4278, %v4290
    %v4292 = vpop.f32.mrf.mxu0
    %4293 = vdwg.mxu0
    %4294 = vmatpush.bf16.msra.mxu0 %v1839
    %4295 = vmatpush.bf16.msra.mxu0 %v1835
    %4296 = vmatpush.bf16.msra.mxu0 %v1831
    %4297 = vmatpush.bf16.msra.mxu0 %v1827
    %4298 = vmatpush.bf16.msra.mxu0 %v1823
    %4299 = vmatpush.bf16.msra.mxu0 %v1819
    %4300 = vmatpush.bf16.msra.mxu0 %v1815
    %4301 = vmatpush.bf16.msra.mxu0 %v1811
    %4302 = vmatmul.bf16.gmra.mxu0 %v4073
    %v4303 = vpop.f32.mrf.mxu0
    %v4304 = vadd.f32 %v1611, %v4303
    %v4305 = vpop.f32.mrf.mxu0
    %4306 = vdwg.mxu0
    %4307 = vmatpush.bf16.msra.mxu0 %v1871
    %4308 = vmatpush.bf16.msra.mxu0 %v1867
    %4309 = vmatpush.bf16.msra.mxu0 %v1863
    %4310 = vmatpush.bf16.msra.mxu0 %v1859
    %4311 = vmatpush.bf16.msra.mxu0 %v1855
    %4312 = vmatpush.bf16.msra.mxu0 %v1851
    %4313 = vmatpush.bf16.msra.mxu0 %v1847
    %4314 = vmatpush.bf16.msra.mxu0 %v1843
    %4315 = vmatmul.bf16.gmra.mxu0 %v4241
    %v4316 = vpop.f32.mrf.mxu0
    %v4317 = vadd.f32 %v4304, %v4316
    %v4318 = vpop.f32.mrf.mxu0
    %4319 = vdwg.mxu0
    %4320 = vmatpush.bf16.msra.mxu0 %v1840
    %4321 = vmatpush.bf16.msra.mxu0 %v1836
    %4322 = vmatpush.bf16.msra.mxu0 %v1832
    %4323 = vmatpush.bf16.msra.mxu0 %v1828
    %4324 = vmatpush.bf16.msra.mxu0 %v1824
    %4325 = vmatpush.bf16.msra.mxu0 %v1820
    %4326 = vmatpush.bf16.msra.mxu0 %v1816
    %4327 = vmatpush.bf16.msra.mxu0 %v1812
    %4328 = vmatmul.bf16.gmra.mxu0 %v4073
    %v4329 = vpop.f32.mrf.mxu0
    %v4330 = vadd.f32 %v1612, %v4329
    %v4331 = vpop.f32.mrf.mxu0
    %4332 = vdwg.mxu0
    %4333 = vmatpush.bf16.msra.mxu0 %v1872
    %4334 = vmatpush.bf16.msra.mxu0 %v1868
    %4335 = vmatpush.bf16.msra.mxu0 %v1864
    %4336 = vmatpush.bf16.msra.mxu0 %v1860
    %4337 = vmatpush.bf16.msra.mxu0 %v1856
    %4338 = vmatpush.bf16.msra.mxu0 %v1852
    %4339 = vmatpush.bf16.msra.mxu0 %v1848
    %4340 = vmatpush.bf16.msra.mxu0 %v1844
    %4341 = vmatmul.bf16.gmra.mxu0 %v4241
    %v4342 = vpop.f32.mrf.mxu0
    %v4343 = vadd.f32 %v4330, %v4342
    %v4344 = vpop.f32.mrf.mxu0
    %4345 = vdwg.mxu0
    %v4346 = vxor.u32 %v4265, 2147483648
    %v4347 = vmul.f32 %v4346, 1.442695
    %v4348 = vpow.pop %v4347
    %v4349 = vadd.f32 %v4348, 1.0
    %v4350 = vrcp.pop %v4349
    %v4351 = vmul.f32 %v4349, %v4350
    %v4352 = vsub.f32 1.0, %v4351
    %v4353 = vmul.f32 %v4350, %v4352
    %v4354 = vadd.f32 %v4350, %v4353
    %vm4355 = vweird.f32 %v4349
    %vm4356 = vweird.f32 %v4350
    %vm4357 = vmor %vm4355, %vm4356
    %v4358 = vsel %vm4357, %v4350, %v4354
    %v4359 = vand.u32 2147483647, %v4349
    %vm4360 = vcmp.eq.f32.partialorder %v4359, 8.507059e+37
    %v4361 = vand.u32 %v4349, 2147483648
    %v4362 = vor.u32 1.1754944e-38, %v4361
    %v4363 = vsel %vm4360, %v4362, %v4358
    %v4364 = vmul.f32 1.0, %v4363
    %v4365 = vxor.u32 %v4291, 2147483648
    %v4366 = vmul.f32 %v4365, 1.442695
    %v4367 = vpow.pop %v4366
    %v4368 = vadd.f32 %v4367, 1.0
    %v4369 = vrcp.pop %v4368
    %v4370 = vmul.f32 %v4368, %v4369
    %v4371 = vsub.f32 1.0, %v4370
    %v4372 = vmul.f32 %v4369, %v4371
    %v4373 = vadd.f32 %v4369, %v4372
    %vm4374 = vweird.f32 %v4368
    %vm4375 = vweird.f32 %v4369
    %vm4376 = vmor %vm4374, %vm4375
    %v4377 = vsel %vm4376, %v4369, %v4373
    %v4378 = vand.u32 2147483647, %v4368
    %vm4379 = vcmp.eq.f32.partialorder %v4378, 8.507059e+37
    %v4380 = vand.u32 %v4368, 2147483648
    %v4381 = vor.u32 1.1754944e-38, %v4380
    %v4382 = vsel %vm4379, %v4381, %v4377
    %v4383 = vmul.f32 1.0, %v4382
    %v4384 = vtanh.pop %v4317
    %v4385 = vxor.u32 %v4343, 2147483648
    %v4386 = vmul.f32 %v4385, 1.442695
    %v4387 = vpow.pop %v4386
    %v4388 = vadd.f32 %v4387, 1.0
    %v4389 = vrcp.pop %v4388
    %v4390 = vmul.f32 %v4388, %v4389
    %v4391 = vsub.f32 1.0, %v4390
    %v4392 = vmul.f32 %v4389, %v4391
    %v4393 = vadd.f32 %v4389, %v4392
    %vm4394 = vweird.f32 %v4388
    %vm4395 = vweird.f32 %v4389
    %vm4396 = vmor %vm4394, %vm4395
    %v4397 = vsel %vm4396, %v4389, %v4393
    %v4398 = vand.u32 2147483647, %v4388
    %vm4399 = vcmp.eq.f32.partialorder %v4398, 8.507059e+37
    %v4400 = vand.u32 %v4388, 2147483648
    %v4401 = vor.u32 1.1754944e-38, %v4400
    %v4402 = vsel %vm4399, %v4401, %v4397
    %v4403 = vmul.f32 1.0, %v4402
    %v4404 = vmul.f32 %v4383, %v3945
    %v4405 = vmul.f32 %v4364, %v4384
    %v4406 = vadd.f32 %v4404, %v4405
    %v4407 = vtanh.pop %v4406
    %v4408 = vmul.f32 %v4403, %v4407
    %v4409 = vpack.c.bf16 %v4072, %v4072
    %v4410 = vpack.c.bf16 %v4240, %v4240
    %4411 = vmatpush.bf16.msra.mxu0 %v983
    %4412 = vmatpush.bf16.msra.mxu0 %v979
    %4413 = vmatpush.bf16.msra.mxu0 %v975
    %4414 = vmatpush.bf16.msra.mxu0 %v971
    %4415 = vmatpush.bf16.msra.mxu0 %v967
    %4416 = vmatpush.bf16.msra.mxu0 %v963
    %4417 = vmatpush.bf16.msra.mxu0 %v959
    %4418 = vmatpush.bf16.msra.mxu0 %v955
    %4419 = vmatmul.bf16.gmra.mxu0 %v4409
    %v4420 = vpop.f32.mrf.mxu0
    %v4421 = vadd.f32 %v755, %v4420
    %v4422 = vpop.f32.mrf.mxu0
    %4423 = vdwg.mxu0
    %4424 = vmatpush.bf16.msra.mxu0 %v1015
    %4425 = vmatpush.bf16.msra.mxu0 %v1011
    %4426 = vmatpush.bf16.msra.mxu0 %v1007
    %4427 = vmatpush.bf16.msra.mxu0 %v1003
    %4428 = vmatpush.bf16.msra.mxu0 %v999
    %4429 = vmatpush.bf16.msra.mxu0 %v995
    %4430 = vmatpush.bf16.msra.mxu0 %v991
    %4431 = vmatpush.bf16.msra.mxu0 %v987
    %4432 = vmatmul.bf16.gmra.mxu0 %v4410
    %v4433 = vpop.f32.mrf.mxu0
    %v4434 = vadd.f32 %v4421, %v4433
    %v4435 = vpop.f32.mrf.mxu0
    %4436 = vdwg.mxu0
    %4437 = vmatpush.bf16.msra.mxu0 %v984
    %4438 = vmatpush.bf16.msra.mxu0 %v980
    %4439 = vmatpush.bf16.msra.mxu0 %v976
    %4440 = vmatpush.bf16.msra.mxu0 %v972
    %4441 = vmatpush.bf16.msra.mxu0 %v968
    %4442 = vmatpush.bf16.msra.mxu0 %v964
    %4443 = vmatpush.bf16.msra.mxu0 %v960
    %4444 = vmatpush.bf16.msra.mxu0 %v956
    %4445 = vmatmul.bf16.gmra.mxu0 %v4409
    %v4446 = vpop.f32.mrf.mxu0
    %v4447 = vadd.f32 %v756, %v4446
    %v4448 = vpop.f32.mrf.mxu0
    %4449 = vdwg.mxu0
    %4450 = vmatpush.bf16.msra.mxu0 %v1016
    %4451 = vmatpush.bf16.msra.mxu0 %v1012
    %4452 = vmatpush.bf16.msra.mxu0 %v1008
    %4453 = vmatpush.bf16.msra.mxu0 %v1004
    %4454 = vmatpush.bf16.msra.mxu0 %v1000
    %4455 = vmatpush.bf16.msra.mxu0 %v996
    %4456 = vmatpush.bf16.msra.mxu0 %v992
    %4457 = vmatpush.bf16.msra.mxu0 %v988
    %4458 = vmatmul.bf16.gmra.mxu0 %v4410
    %v4459 = vpop.f32.mrf.mxu0
    %v4460 = vadd.f32 %v4447, %v4459
    %v4461 = vpop.f32.mrf.mxu0
    %4462 = vdwg.mxu0
    %4463 = vmatpush.bf16.msra.mxu0 %v985
    %4464 = vmatpush.bf16.msra.mxu0 %v981
    %4465 = vmatpush.bf16.msra.mxu0 %v977
    %4466 = vmatpush.bf16.msra.mxu0 %v973
    %4467 = vmatpush.bf16.msra.mxu0 %v969
    %4468 = vmatpush.bf16.msra.mxu0 %v965
    %4469 = vmatpush.bf16.msra.mxu0 %v961
    %4470 = vmatpush.bf16.msra.mxu0 %v957
    %4471 = vmatmul.bf16.gmra.mxu0 %v4409
    %v4472 = vpop.f32.mrf.mxu0
    %v4473 = vadd.f32 %v757, %v4472
    %v4474 = vpop.f32.mrf.mxu0
    %4475 = vdwg.mxu0
    %4476 = vmatpush.bf16.msra.mxu0 %v1017
    %4477 = vmatpush.bf16.msra.mxu0 %v1013
    %4478 = vmatpush.bf16.msra.mxu0 %v1009
    %4479 = vmatpush.bf16.msra.mxu0 %v1005
    %4480 = vmatpush.bf16.msra.mxu0 %v1001
    %4481 = vmatpush.bf16.msra.mxu0 %v997
    %4482 = vmatpush.bf16.msra.mxu0 %v993
    %4483 = vmatpush.bf16.msra.mxu0 %v989
    %4484 = vmatmul.bf16.gmra.mxu0 %v4410
    %v4485 = vpop.f32.mrf.mxu0
    %v4486 = vadd.f32 %v4473, %v4485
    %v4487 = vpop.f32.mrf.mxu0
    %4488 = vdwg.mxu0
    %4489 = vmatpush.bf16.msra.mxu0 %v986
    %4490 = vmatpush.bf16.msra.mxu0 %v982
    %4491 = vmatpush.bf16.msra.mxu0 %v978
    %4492 = vmatpush.bf16.msra.mxu0 %v974
    %4493 = vmatpush.bf16.msra.mxu0 %v970
    %4494 = vmatpush.bf16.msra.mxu0 %v966
    %4495 = vmatpush.bf16.msra.mxu0 %v962
    %4496 = vmatpush.bf16.msra.mxu0 %v958
    %4497 = vmatmul.bf16.gmra.mxu0 %v4409
    %v4498 = vpop.f32.mrf.mxu0
    %v4499 = vadd.f32 %v758, %v4498
    %v4500 = vpop.f32.mrf.mxu0
    %4501 = vdwg.mxu0
    %4502 = vmatpush.bf16.msra.mxu0 %v1018
    %4503 = vmatpush.bf16.msra.mxu0 %v1014
    %4504 = vmatpush.bf16.msra.mxu0 %v1010
    %4505 = vmatpush.bf16.msra.mxu0 %v1006
    %4506 = vmatpush.bf16.msra.mxu0 %v1002
    %4507 = vmatpush.bf16.msra.mxu0 %v998
    %4508 = vmatpush.bf16.msra.mxu0 %v994
    %4509 = vmatpush.bf16.msra.mxu0 %v990
    %4510 = vmatmul.bf16.gmra.mxu0 %v4410
    %v4511 = vpop.f32.mrf.mxu0
    %v4512 = vadd.f32 %v4499, %v4511
    %v4513 = vpop.f32.mrf.mxu0
    %4514 = vdwg.mxu0
    %v4515 = vxor.u32 %v4434, 2147483648
    %v4516 = vmul.f32 %v4515, 1.442695
    %v4517 = vpow.pop %v4516
    %v4518 = vadd.f32 %v4517, 1.0
    %v4519 = vrcp.pop %v4518
    %v4520 = vmul.f32 %v4518, %v4519
    %v4521 = vsub.f32 1.0, %v4520
    %v4522 = vmul.f32 %v4519, %v4521
    %v4523 = vadd.f32 %v4519, %v4522
    %vm4524 = vweird.f32 %v4518
    %vm4525 = vweird.f32 %v4519
    %vm4526 = vmor %vm4524, %vm4525
    %v4527 = vsel %vm4526, %v4519, %v4523
    %v4528 = vand.u32 2147483647, %v4518
    %vm4529 = vcmp.eq.f32.partialorder %v4528, 8.507059e+37
    %v4530 = vand.u32 %v4518, 2147483648
    %v4531 = vor.u32 1.1754944e-38, %v4530
    %v4532 = vsel %vm4529, %v4531, %v4527
    %v4533 = vmul.f32 1.0, %v4532
    %v4534 = vxor.u32 %v4460, 2147483648
    %v4535 = vmul.f32 %v4534, 1.442695
    %v4536 = vpow.pop %v4535
    %v4537 = vadd.f32 %v4536, 1.0
    %v4538 = vrcp.pop %v4537
    %v4539 = vmul.f32 %v4537, %v4538
    %v4540 = vsub.f32 1.0, %v4539
    %v4541 = vmul.f32 %v4538, %v4540
    %v4542 = vadd.f32 %v4538, %v4541
    %vm4543 = vweird.f32 %v4537
    %vm4544 = vweird.f32 %v4538
    %vm4545 = vmor %vm4543, %vm4544
    %v4546 = vsel %vm4545, %v4538, %v4542
    %v4547 = vand.u32 2147483647, %v4537
    %vm4548 = vcmp.eq.f32.partialorder %v4547, 8.507059e+37
    %v4549 = vand.u32 %v4537, 2147483648
    %v4550 = vor.u32 1.1754944e-38, %v4549
    %v4551 = vsel %vm4548, %v4550, %v4546
    %v4552 = vmul.f32 1.0, %v4551
    %v4553 = vtanh.pop %v4486
    %v4554 = vxor.u32 %v4512, 2147483648
    %v4555 = vmul.f32 %v4554, 1.442695
    %v4556 = vpow.pop %v4555
    %v4557 = vadd.f32 %v4556, 1.0
    %v4558 = vrcp.pop %v4557
    %v4559 = vmul.f32 %v4557, %v4558
    %v4560 = vsub.f32 1.0, %v4559
    %v4561 = vmul.f32 %v4558, %v4560
    %v4562 = vadd.f32 %v4558, %v4561
    %vm4563 = vweird.f32 %v4557
    %vm4564 = vweird.f32 %v4558
    %vm4565 = vmor %vm4563, %vm4564
    %v4566 = vsel %vm4565, %v4558, %v4562
    %v4567 = vand.u32 2147483647, %v4557
    %vm4568 = vcmp.eq.f32.partialorder %v4567, 8.507059e+37
    %v4569 = vand.u32 %v4557, 2147483648
    %v4570 = vor.u32 1.1754944e-38, %v4569
    %v4571 = vsel %vm4568, %v4570, %v4566
    %v4572 = vmul.f32 1.0, %v4571
    %v4573 = vmul.f32 %v4552, %v4238
    %v4574 = vmul.f32 %v4533, %v4553
    %v4575 = vadd.f32 %v4573, %v4574
    %v4576 = vtanh.pop %v4575
    %v4577 = vmul.f32 %v4572, %v4576
    %v4578 = vpack.c.bf16 %v4408, %v4408
    %4579 = vmatpush.bf16.msra.mxu0 %v1837
    %4580 = vmatpush.bf16.msra.mxu0 %v1833
    %4581 = vmatpush.bf16.msra.mxu0 %v1829
    %4582 = vmatpush.bf16.msra.mxu0 %v1825
    %4583 = vmatpush.bf16.msra.mxu0 %v1821
    %4584 = vmatpush.bf16.msra.mxu0 %v1817
    %4585 = vmatpush.bf16.msra.mxu0 %v1813
    %4586 = vmatpush.bf16.msra.mxu0 %v1809
    %4587 = vmatmul.bf16.gmra.mxu0 %v4410
    %v4588 = vpop.f32.mrf.mxu0
    %v4589 = vadd.f32 %v1609, %v4588
    %v4590 = vpop.f32.mrf.mxu0
    %4591 = vdwg.mxu0
    %4592 = vmatpush.bf16.msra.mxu0 %v1869
    %4593 = vmatpush.bf16.msra.mxu0 %v1865
    %4594 = vmatpush.bf16.msra.mxu0 %v1861
    %4595 = vmatpush.bf16.msra.mxu0 %v1857
    %4596 = vmatpush.bf16.msra.mxu0 %v1853
    %4597 = vmatpush.bf16.msra.mxu0 %v1849
    %4598 = vmatpush.bf16.msra.mxu0 %v1845
    %4599 = vmatpush.bf16.msra.mxu0 %v1841
    %4600 = vmatmul.bf16.gmra.mxu0 %v4578
    %v4601 = vpop.f32.mrf.mxu0
    %v4602 = vadd.f32 %v4589, %v4601
    %v4603 = vpop.f32.mrf.mxu0
    %4604 = vdwg.mxu0
    %4605 = vmatpush.bf16.msra.mxu0 %v1838
    %4606 = vmatpush.bf16.msra.mxu0 %v1834
    %4607 = vmatpush.bf16.msra.mxu0 %v1830
    %4608 = vmatpush.bf16.msra.mxu0 %v1826
    %4609 = vmatpush.bf16.msra.mxu0 %v1822
    %4610 = vmatpush.bf16.msra.mxu0 %v1818
    %4611 = vmatpush.bf16.msra.mxu0 %v1814
    %4612 = vmatpush.bf16.msra.mxu0 %v1810
    %4613 = vmatmul.bf16.gmra.mxu0 %v4410
    %v4614 = vpop.f32.mrf.mxu0
    %v4615 = vadd.f32 %v1610, %v4614
    %v4616 = vpop.f32.mrf.mxu0
    %4617 = vdwg.mxu0
    %4618 = vmatpush.bf16.msra.mxu0 %v1870
    %4619 = vmatpush.bf16.msra.mxu0 %v1866
    %4620 = vmatpush.bf16.msra.mxu0 %v1862
    %4621 = vmatpush.bf16.msra.mxu0 %v1858
    %4622 = vmatpush.bf16.msra.mxu0 %v1854
    %4623 = vmatpush.bf16.msra.mxu0 %v1850
    %4624 = vmatpush.bf16.msra.mxu0 %v1846
    %4625 = vmatpush.bf16.msra.mxu0 %v1842
    %4626 = vmatmul.bf16.gmra.mxu0 %v4578
    %v4627 = vpop.f32.mrf.mxu0
    %v4628 = vadd.f32 %v4615, %v4627
    %v4629 = vpop.f32.mrf.mxu0
    %4630 = vdwg.mxu0
    %4631 = vmatpush.bf16.msra.mxu0 %v1839
    %4632 = vmatpush.bf16.msra.mxu0 %v1835
    %4633 = vmatpush.bf16.msra.mxu0 %v1831
    %4634 = vmatpush.bf16.msra.mxu0 %v1827
    %4635 = vmatpush.bf16.msra.mxu0 %v1823
    %4636 = vmatpush.bf16.msra.mxu0 %v1819
    %4637 = vmatpush.bf16.msra.mxu0 %v1815
    %4638 = vmatpush.bf16.msra.mxu0 %v1811
    %4639 = vmatmul.bf16.gmra.mxu0 %v4410
    %v4640 = vpop.f32.mrf.mxu0
    %v4641 = vadd.f32 %v1611, %v4640
    %v4642 = vpop.f32.mrf.mxu0
    %4643 = vdwg.mxu0
    %4644 = vmatpush.bf16.msra.mxu0 %v1871
    %4645 = vmatpush.bf16.msra.mxu0 %v1867
    %4646 = vmatpush.bf16.msra.mxu0 %v1863
    %4647 = vmatpush.bf16.msra.mxu0 %v1859
    %4648 = vmatpush.bf16.msra.mxu0 %v1855
    %4649 = vmatpush.bf16.msra.mxu0 %v1851
    %4650 = vmatpush.bf16.msra.mxu0 %v1847
    %4651 = vmatpush.bf16.msra.mxu0 %v1843
    %4652 = vmatmul.bf16.gmra.mxu0 %v4578
    %v4653 = vpop.f32.mrf.mxu0
    %v4654 = vadd.f32 %v4641, %v4653
    %v4655 = vpop.f32.mrf.mxu0
    %4656 = vdwg.mxu0
    %4657 = vmatpush.bf16.msra.mxu0 %v1840
    %4658 = vmatpush.bf16.msra.mxu0 %v1836
    %4659 = vmatpush.bf16.msra.mxu0 %v1832
    %4660 = vmatpush.bf16.msra.mxu0 %v1828
    %4661 = vmatpush.bf16.msra.mxu0 %v1824
    %4662 = vmatpush.bf16.msra.mxu0 %v1820
    %4663 = vmatpush.bf16.msra.mxu0 %v1816
    %4664 = vmatpush.bf16.msra.mxu0 %v1812
    %4665 = vmatmul.bf16.gmra.mxu0 %v4410
    %v4666 = vpop.f32.mrf.mxu0
    %v4667 = vadd.f32 %v1612, %v4666
    %v4668 = vpop.f32.mrf.mxu0
    %4669 = vdwg.mxu0
    %4670 = vmatpush.bf16.msra.mxu0 %v1872
    %4671 = vmatpush.bf16.msra.mxu0 %v1868
    %4672 = vmatpush.bf16.msra.mxu0 %v1864
    %4673 = vmatpush.bf16.msra.mxu0 %v1860
    %4674 = vmatpush.bf16.msra.mxu0 %v1856
    %4675 = vmatpush.bf16.msra.mxu0 %v1852
    %4676 = vmatpush.bf16.msra.mxu0 %v1848
    %4677 = vmatpush.bf16.msra.mxu0 %v1844
    %4678 = vmatmul.bf16.gmra.mxu0 %v4578
    %v4679 = vpop.f32.mrf.mxu0
    %v4680 = vadd.f32 %v4667, %v4679
    %v4681 = vpop.f32.mrf.mxu0
    %4682 = vdwg.mxu0
    %v4683 = vxor.u32 %v4602, 2147483648
    %v4684 = vmul.f32 %v4683, 1.442695
    %v4685 = vpow.pop %v4684
    %v4686 = vadd.f32 %v4685, 1.0
    %v4687 = vrcp.pop %v4686
    %v4688 = vmul.f32 %v4686, %v4687
    %v4689 = vsub.f32 1.0, %v4688
    %v4690 = vmul.f32 %v4687, %v4689
    %v4691 = vadd.f32 %v4687, %v4690
    %vm4692 = vweird.f32 %v4686
    %vm4693 = vweird.f32 %v4687
    %vm4694 = vmor %vm4692, %vm4693
    %v4695 = vsel %vm4694, %v4687, %v4691
    %v4696 = vand.u32 2147483647, %v4686
    %vm4697 = vcmp.eq.f32.partialorder %v4696, 8.507059e+37
    %v4698 = vand.u32 %v4686, 2147483648
    %v4699 = vor.u32 1.1754944e-38, %v4698
    %v4700 = vsel %vm4697, %v4699, %v4695
    %v4701 = vmul.f32 1.0, %v4700
    %v4702 = vxor.u32 %v4628, 2147483648
    %v4703 = vmul.f32 %v4702, 1.442695
    %v4704 = vpow.pop %v4703
    %v4705 = vadd.f32 %v4704, 1.0
    %v4706 = vrcp.pop %v4705
    %v4707 = vmul.f32 %v4705, %v4706
    %v4708 = vsub.f32 1.0, %v4707
    %v4709 = vmul.f32 %v4706, %v4708
    %v4710 = vadd.f32 %v4706, %v4709
    %vm4711 = vweird.f32 %v4705
    %vm4712 = vweird.f32 %v4706
    %vm4713 = vmor %vm4711, %vm4712
    %v4714 = vsel %vm4713, %v4706, %v4710
    %v4715 = vand.u32 2147483647, %v4705
    %vm4716 = vcmp.eq.f32.partialorder %v4715, 8.507059e+37
    %v4717 = vand.u32 %v4705, 2147483648
    %v4718 = vor.u32 1.1754944e-38, %v4717
    %v4719 = vsel %vm4716, %v4718, %v4714
    %v4720 = vmul.f32 1.0, %v4719
    %v4721 = vtanh.pop %v4654
    %v4722 = vxor.u32 %v4680, 2147483648
    %v4723 = vmul.f32 %v4722, 1.442695
    %v4724 = vpow.pop %v4723
    %v4725 = vadd.f32 %v4724, 1.0
    %v4726 = vrcp.pop %v4725
    %v4727 = vmul.f32 %v4725, %v4726
    %v4728 = vsub.f32 1.0, %v4727
    %v4729 = vmul.f32 %v4726, %v4728
    %v4730 = vadd.f32 %v4726, %v4729
    %vm4731 = vweird.f32 %v4725
    %vm4732 = vweird.f32 %v4726
    %vm4733 = vmor %vm4731, %vm4732
    %v4734 = vsel %vm4733, %v4726, %v4730
    %v4735 = vand.u32 2147483647, %v4725
    %vm4736 = vcmp.eq.f32.partialorder %v4735, 8.507059e+37
    %v4737 = vand.u32 %v4725, 2147483648
    %v4738 = vor.u32 1.1754944e-38, %v4737
    %v4739 = vsel %vm4736, %v4738, %v4734
    %v4740 = vmul.f32 1.0, %v4739
    %v4741 = vmul.f32 %v4720, %v4406
    %v4742 = vmul.f32 %v4701, %v4721
    %v4743 = vadd.f32 %v4741, %v4742
    %v4744 = vtanh.pop %v4743
    %v4745 = vmul.f32 %v4740, %v4744
    %v4746 = vpack.c.bf16 %v4577, %v4577
    %v4747 = vpack.c.bf16 %v4745, %v4745
    %4748 = vmatpush.bf16.msra.mxu0 %v1837
    %4749 = vmatpush.bf16.msra.mxu0 %v1833
    %4750 = vmatpush.bf16.msra.mxu0 %v1829
    %4751 = vmatpush.bf16.msra.mxu0 %v1825
    %4752 = vmatpush.bf16.msra.mxu0 %v1821
    %4753 = vmatpush.bf16.msra.mxu0 %v1817
    %4754 = vmatpush.bf16.msra.mxu0 %v1813
    %4755 = vmatpush.bf16.msra.mxu0 %v1809
    %4756 = vmatmul.bf16.gmra.mxu0 %v4746
    %v4757 = vpop.f32.mrf.mxu0
    %v4758 = vadd.f32 %v1609, %v4757
    %v4759 = vpop.f32.mrf.mxu0
    %4760 = vdwg.mxu0
    %4761 = vmatpush.bf16.msra.mxu0 %v1869
    %4762 = vmatpush.bf16.msra.mxu0 %v1865
    %4763 = vmatpush.bf16.msra.mxu0 %v1861
    %4764 = vmatpush.bf16.msra.mxu0 %v1857
    %4765 = vmatpush.bf16.msra.mxu0 %v1853
    %4766 = vmatpush.bf16.msra.mxu0 %v1849
    %4767 = vmatpush.bf16.msra.mxu0 %v1845
    %4768 = vmatpush.bf16.msra.mxu0 %v1841
    %4769 = vmatmul.bf16.gmra.mxu0 %v4747
    %v4770 = vpop.f32.mrf.mxu0
    %v4771 = vadd.f32 %v4758, %v4770
    %v4772 = vpop.f32.mrf.mxu0
    %4773 = vdwg.mxu0
    %4774 = vmatpush.bf16.msra.mxu0 %v1838
    %4775 = vmatpush.bf16.msra.mxu0 %v1834
    %4776 = vmatpush.bf16.msra.mxu0 %v1830
    %4777 = vmatpush.bf16.msra.mxu0 %v1826
    %4778 = vmatpush.bf16.msra.mxu0 %v1822
    %4779 = vmatpush.bf16.msra.mxu0 %v1818
    %4780 = vmatpush.bf16.msra.mxu0 %v1814
    %4781 = vmatpush.bf16.msra.mxu0 %v1810
    %4782 = vmatmul.bf16.gmra.mxu0 %v4746
    %v4783 = vpop.f32.mrf.mxu0
    %v4784 = vadd.f32 %v1610, %v4783
    %v4785 = vpop.f32.mrf.mxu0
    %4786 = vdwg.mxu0
    %4787 = vmatpush.bf16.msra.mxu0 %v1870
    %4788 = vmatpush.bf16.msra.mxu0 %v1866
    %4789 = vmatpush.bf16.msra.mxu0 %v1862
    %4790 = vmatpush.bf16.msra.mxu0 %v1858
    %4791 = vmatpush.bf16.msra.mxu0 %v1854
    %4792 = vmatpush.bf16.msra.mxu0 %v1850
    %4793 = vmatpush.bf16.msra.mxu0 %v1846
    %4794 = vmatpush.bf16.msra.mxu0 %v1842
    %4795 = vmatmul.bf16.gmra.mxu0 %v4747
    %v4796 = vpop.f32.mrf.mxu0
    %v4797 = vadd.f32 %v4784, %v4796
    %v4798 = vpop.f32.mrf.mxu0
    %4799 = vdwg.mxu0
    %4800 = vmatpush.bf16.msra.mxu0 %v1839
    %4801 = vmatpush.bf16.msra.mxu0 %v1835
    %4802 = vmatpush.bf16.msra.mxu0 %v1831
    %4803 = vmatpush.bf16.msra.mxu0 %v1827
    %4804 = vmatpush.bf16.msra.mxu0 %v1823
    %4805 = vmatpush.bf16.msra.mxu0 %v1819
    %4806 = vmatpush.bf16.msra.mxu0 %v1815
    %4807 = vmatpush.bf16.msra.mxu0 %v1811
    %4808 = vmatmul.bf16.gmra.mxu0 %v4746
    %v4809 = vpop.f32.mrf.mxu0
    %v4810 = vadd.f32 %v1611, %v4809
    %v4811 = vpop.f32.mrf.mxu0
    %4812 = vdwg.mxu0
    %4813 = vmatpush.bf16.msra.mxu0 %v1871
    %4814 = vmatpush.bf16.msra.mxu0 %v1867
    %4815 = vmatpush.bf16.msra.mxu0 %v1863
    %4816 = vmatpush.bf16.msra.mxu0 %v1859
    %4817 = vmatpush.bf16.msra.mxu0 %v1855
    %4818 = vmatpush.bf16.msra.mxu0 %v1851
    %4819 = vmatpush.bf16.msra.mxu0 %v1847
    %4820 = vmatpush.bf16.msra.mxu0 %v1843
    %4821 = vmatmul.bf16.gmra.mxu0 %v4747
    %v4822 = vpop.f32.mrf.mxu0
    %v4823 = vadd.f32 %v4810, %v4822
    %v4824 = vpop.f32.mrf.mxu0
    %4825 = vdwg.mxu0
    %4826 = vmatpush.bf16.msra.mxu0 %v1840
    %4827 = vmatpush.bf16.msra.mxu0 %v1836
    %4828 = vmatpush.bf16.msra.mxu0 %v1832
    %4829 = vmatpush.bf16.msra.mxu0 %v1828
    %4830 = vmatpush.bf16.msra.mxu0 %v1824
    %4831 = vmatpush.bf16.msra.mxu0 %v1820
    %4832 = vmatpush.bf16.msra.mxu0 %v1816
    %4833 = vmatpush.bf16.msra.mxu0 %v1812
    %4834 = vmatmul.bf16.gmra.mxu0 %v4746
    %v4835 = vpop.f32.mrf.mxu0
    %v4836 = vadd.f32 %v1612, %v4835
    %v4837 = vpop.f32.mrf.mxu0
    %4838 = vdwg.mxu0
    %4839 = vmatpush.bf16.msra.mxu0 %v1872
    %4840 = vmatpush.bf16.msra.mxu0 %v1868
    %4841 = vmatpush.bf16.msra.mxu0 %v1864
    %4842 = vmatpush.bf16.msra.mxu0 %v1860
    %4843 = vmatpush.bf16.msra.mxu0 %v1856
    %4844 = vmatpush.bf16.msra.mxu0 %v1852
    %4845 = vmatpush.bf16.msra.mxu0 %v1848
    %4846 = vmatpush.bf16.msra.mxu0 %v1844
    %4847 = vmatmul.bf16.gmra.mxu0 %v4747
    %v4848 = vpop.f32.mrf.mxu0
    %v4849 = vadd.f32 %v4836, %v4848
    %v4850 = vpop.f32.mrf.mxu0
    %4851 = vdwg.mxu0
    %v4852 = vxor.u32 %v4771, 2147483648
    %v4853 = vmul.f32 %v4852, 1.442695
    %v4854 = vpow.pop %v4853
    %v4855 = vadd.f32 %v4854, 1.0
    %v4856 = vrcp.pop %v4855
    %v4857 = vmul.f32 %v4855, %v4856
    %v4858 = vsub.f32 1.0, %v4857
    %v4859 = vmul.f32 %v4856, %v4858
    %v4860 = vadd.f32 %v4856, %v4859
    %vm4861 = vweird.f32 %v4855
    %vm4862 = vweird.f32 %v4856
    %vm4863 = vmor %vm4861, %vm4862
    %v4864 = vsel %vm4863, %v4856, %v4860
    %v4865 = vand.u32 2147483647, %v4855
    %vm4866 = vcmp.eq.f32.partialorder %v4865, 8.507059e+37
    %v4867 = vand.u32 %v4855, 2147483648
    %v4868 = vor.u32 1.1754944e-38, %v4867
    %v4869 = vsel %vm4866, %v4868, %v4864
    %v4870 = vmul.f32 1.0, %v4869
    %v4871 = vxor.u32 %v4797, 2147483648
    %v4872 = vmul.f32 %v4871, 1.442695
    %v4873 = vpow.pop %v4872
    %v4874 = vadd.f32 %v4873, 1.0
    %v4875 = vrcp.pop %v4874
    %v4876 = vmul.f32 %v4874, %v4875
    %v4877 = vsub.f32 1.0, %v4876
    %v4878 = vmul.f32 %v4875, %v4877
    %v4879 = vadd.f32 %v4875, %v4878
    %vm4880 = vweird.f32 %v4874
    %vm4881 = vweird.f32 %v4875
    %vm4882 = vmor %vm4880, %vm4881
    %v4883 = vsel %vm4882, %v4875, %v4879
    %v4884 = vand.u32 2147483647, %v4874
    %vm4885 = vcmp.eq.f32.partialorder %v4884, 8.507059e+37
    %v4886 = vand.u32 %v4874, 2147483648
    %v4887 = vor.u32 1.1754944e-38, %v4886
    %v4888 = vsel %vm4885, %v4887, %v4883
    %v4889 = vmul.f32 1.0, %v4888
    %v4890 = vtanh.pop %v4823
    %v4891 = vxor.u32 %v4849, 2147483648
    %v4892 = vmul.f32 %v4891, 1.442695
    %v4893 = vpow.pop %v4892
    %v4894 = vadd.f32 %v4893, 1.0
    %v4895 = vrcp.pop %v4894
    %v4896 = vmul.f32 %v4894, %v4895
    %v4897 = vsub.f32 1.0, %v4896
    %v4898 = vmul.f32 %v4895, %v4897
    %v4899 = vadd.f32 %v4895, %v4898
    %vm4900 = vweird.f32 %v4894
    %vm4901 = vweird.f32 %v4895
    %vm4902 = vmor %vm4900, %vm4901
    %v4903 = vsel %vm4902, %v4895, %v4899
    %v4904 = vand.u32 2147483647, %v4894
    %vm4905 = vcmp.eq.f32.partialorder %v4904, 8.507059e+37
    %v4906 = vand.u32 %v4894, 2147483648
    %v4907 = vor.u32 1.1754944e-38, %v4906
    %v4908 = vsel %vm4905, %v4907, %v4903
    %v4909 = vmul.f32 1.0, %v4908
    %v4910 = vmul.f32 %v4889, %v4743
    %v4911 = vmul.f32 %v4870, %v4890
    %v4912 = vadd.f32 %v4910, %v4911
    %v4913 = vtanh.pop %v4912
    %v4914 = vmul.f32 %v4909, %v4913
    %v4915 = vld [vmem:[%s8] sm:$0x1]
    %v4917 = vperm.slane %v4915, 0
    %v4919 = vmul.f32 %v4914, %v4917
    %4920 = vadd.xlane.f32.xlu0 %v4919
    %v4921 = vpop.xlane.xlu0 %4920
    %s4922 = sld [smem:[#allocation3]]
    %v4923 = vstv %s4922
    %v4924 = vadd.f32 %v4921, %v4923
    %vm4925 = vcmask 7168
    %4926 = vst.msk [vmem:[%s10] sm:$0xff] %vm4925, %v4924
    // Predicated region
    $region54: #{lstm_model_forward.1} parent=1 // pred_check
      _
    $region55: #{lstm_model_forward.1} parent=1 // pred_check_branch
      %4928 = sbr.rel (0) target = $region57
    $region56: #{lstm_model_forward.1} parent=1 // pred_region
      _
    $region57: #{lstm_model_forward.1} parent=1 // pred_fallthru
      _
    // Predicated region
    $region58: #{lstm_model_forward.1} parent=1 // pred_check
      _
    $region59: #{lstm_model_forward.1} parent=1 // pred_check_branch
      %4930 = sbr.rel (0) target = $region61
    $region60: #{lstm_model_forward.1} parent=1 // pred_region
      _
    $region61: #{lstm_model_forward.1} parent=1 // pred_fallthru
      _
    %4931 = vsyncpa [#allocation5], 1
    %4932 = vsyncpa [#allocation7], 1

</llo_original>
